<compile_context>
chip_gen: v7x
topology: tpu7x:2x2x1
jax: 0.10.0
libtpu: 0.0.40
codegen_flags: <defaults>
</compile_context>

<pallas_src>
import functools

import jax
import jax.numpy as jnp
from jax.experimental import pallas as pl
from jax.experimental.pallas import tpu as pltpu


# ---------------------------------------------------------------------------
# Kernel
# ---------------------------------------------------------------------------
def _conv3x3_bias_relu_kernel(xm_ref, xt_ref, xb_ref, m_ref, w_ref, b_ref,
                              o_ref, *, TH, W, Cin, CO, activate):
    """One (batch, row-tile, cout-block) grid step of a 3x3 'same' conv.

    xm_ref: (1, TH*W, Cin) bf16  main rows of the tile, HW-flattened
    xt_ref: (1, W,    Cin) bf16  image row just above the tile (clamped)
    xb_ref: (1, W,    Cin) bf16  image row just below the tile (clamped)
    m_ref : (TH*W, 2)      f32   [left-edge mask, right-edge mask]
    w_ref : (3, 1, Cin, 3*CO) bf16  pre-packed weights, one Cout block
    b_ref : (1, CO)        f32   bias for this Cout block
    o_ref : (1, TH*W, CO)        output tile (lane-dense, CO = 128)
    """
    flat = TH * W
    r = pl.program_id(1)
    n_rows = pl.num_programs(1)

    # Halo rows: DMA'd with a clamped index_map; zero them at the image
    # top/bottom border (replaces an HBM-side jnp.pad).
    top = xt_ref[0]
    bot = xb_ref[0]
    top = top * (r > 0).astype(top.dtype)
    bot = bot * (r < n_rows - 1).astype(bot.dtype)

    # Row-extended slab, flattened over (rows, W): ((TH + 2) * W, Cin).
    xext = jnp.concatenate([top, xm_ref[0], bot], axis=0)

    # W-edge masks for the kw = 0 / kw = 2 taps (applied post-matmul instead
    # of padding the input along W).
    mask_l = m_ref[:, 0:1]        # 0 where w == 0      (flat, 1)
    mask_r = m_ref[:, 1:2]        # 0 where w == W - 1  (flat, 1)
    zrow = jnp.zeros((1, CO), jnp.float32)

    # Accumulator starts at the broadcast bias -> no separate bias pass.
    acc = jnp.broadcast_to(b_ref[...].astype(jnp.float32), (flat, CO))

    for kh in range(3):
        # Contiguous row window of the slab -- no strided patch relayout.
        slab = xext[kh * W:kh * W + flat, :]                       # (flat, Cin)
        # Three kw taps fused on the MXU N axis: one dot per kh tap.
        wk = w_ref[kh, 0]                                          # (Cin, 3*CO)
        p = jnp.dot(slab, wk, preferred_element_type=jnp.float32)  # (flat, 3*CO)
        p0 = p[:, :CO]            # kw = 0 tap
        p1 = p[:, CO:2 * CO]      # kw = 1 tap
        p2 = p[:, 2 * CO:]        # kw = 2 tap

        # kw = 1: already aligned with the output.
        acc = acc + p1
        # kw = 0: output column w reads input column w-1 -> shift the product
        # down one flat row, mask column 0.
        s0 = jnp.concatenate([zrow, p0[:flat - 1, :]], axis=0)
        acc = acc + s0 * mask_l
        # kw = 2: output column w reads input column w+1 -> shift up one row,
        # mask column W-1.
        s2 = jnp.concatenate([p2[1:, :], zrow], axis=0)
        acc = acc + s2 * mask_r

    if activate:
        acc = jnp.maximum(acc, 0.0)
    o_ref[...] = acc[None].astype(o_ref.dtype)


# ---------------------------------------------------------------------------
# Wrappers
# ---------------------------------------------------------------------------
def _round_up(x, m):
    return (x + m - 1) // m * m


def _pick_row_tile(h, w, flat_target=512):
    """Largest divisor of h keeping flat = d*w at ~flat_target (acc in vregs)."""
    best = 1
    for d in range(1, h + 1):
        if h % d == 0 and d * w <= max(flat_target, w):
            best = d
    return best


def conv3x3_relu_nhwc(x, weight_hwio, bias, *, activate=True, row_tile=None,
                      co_block=128, out_dtype=None):
    """3x3 conv, padding=1, + bias (+ ReLU).  x: (B, H, W, Cin) NHWC."""
    B, H, W, Cin = x.shape
    assert weight_hwio.shape[:3] == (3, 3, Cin)
    Cout = weight_hwio.shape[-1]
    # TODO(synk): widths that are not a multiple of 8 need a W-padding path.
    assert W % 8 == 0, "kernel assumes W % 8 == 0"

    CO = co_block
    Coutp = _round_up(Cout, CO)             # lane-dense output blocks
    nblk = Coutp // CO
    TH = row_tile or _pick_row_tile(H, W)
    assert H % TH == 0
    flat = TH * W
    out_dtype = out_dtype or x.dtype

    # bf16 feeds the MXU at full rate; accumulation stays f32 in the kernel.
    xf = x.astype(jnp.bfloat16).reshape(B, H * W, Cin)
    wf = weight_hwio.astype(jnp.bfloat16)
    bf = bias.astype(jnp.float32)
    if Coutp != Cout:
        wf = jnp.pad(wf, ((0, 0), (0, 0), (0, 0), (0, Coutp - Cout)))
        bf = jnp.pad(bf, (0, Coutp - Cout))
    bf = bf.reshape(1, Coutp)

    # Pre-pack weights: (3, 3, Cin, Coutp) -> (3, nblk, Cin, 3*CO), with the
    # three kw taps contiguous along the last (lane) axis of each Cout block.
    wfb = wf.reshape(3, 3, Cin, nblk, CO)
    wfb = jnp.transpose(wfb, (0, 3, 2, 1, 4)).reshape(3, nblk, Cin, 3 * CO)

    # Precomputed W-edge masks (tiny, fetched once, resident across the grid).
    col = jnp.arange(flat, dtype=jnp.int32) % W
    edge_masks = jnp.stack([(col != 0), (col != W - 1)],
                           axis=1).astype(jnp.float32)      # (flat, 2)

    kernel = functools.partial(_conv3x3_bias_relu_kernel,
                               TH=TH, W=W, Cin=Cin, CO=CO, activate=activate)

    # Rough per-step VMEM need (pipeline double-buffers inputs/outputs); keep
    # an explicit limit that also fits v7x's 64 MiB VMEM.
    tile_bytes = (flat * Cin * 2 + 2 * W * Cin * 2 + 9 * Cin * CO * 2
                  + flat * 2 * 4 + CO * 4 + flat * CO * 4)
    vmem_limit = int(min(48 * 2**20, max(16 * 2**20, 16 * tile_bytes)))

    y = pl.pallas_call(
        kernel,
        out_shape=jax.ShapeDtypeStruct((B, H * W, Coutp), out_dtype),
        grid_spec=pltpu.PrefetchScalarGridSpec(
            num_scalar_prefetch=0,
            grid=(B, H // TH, nblk),
            in_specs=[
                # main rows of the tile (flat over H*W)
                pl.BlockSpec((1, flat, Cin), lambda b, r, c: (b, r, 0)),
                # halo row above (clamped to row 0; zeroed in-kernel at r==0)
                pl.BlockSpec(
                    (1, W, Cin),
                    lambda b, r, c: (b, jnp.maximum(r * TH - 1, 0), 0)),
                # halo row below (clamped to row H-1; zeroed at the last tile)
                pl.BlockSpec(
                    (1, W, Cin),
                    lambda b, r, c: (b, jnp.minimum(r * TH + TH, H - 1), 0)),
                # W-edge masks (constant across the grid)
                pl.BlockSpec((flat, 2), lambda b, r, c: (0, 0)),
                # weights / bias: one Cout block, resident across b and r
                pl.BlockSpec((3, 1, Cin, 3 * CO), lambda b, r, c: (0, c, 0, 0)),
                pl.BlockSpec((1, CO), lambda b, r, c: (0, c)),
            ],
            out_specs=pl.BlockSpec((1, flat, CO), lambda b, r, c: (b, r, c)),
        ),
        compiler_params=pltpu.CompilerParams(
            dimension_semantics=("parallel", "parallel", "parallel"),
            vmem_limit_bytes=vmem_limit,
        ),
    )(xf, xf, xf, edge_masks, wfb, bf)

    y = y.reshape(B, H, W, Coutp)
    if Coutp != Cout:
        y = y[..., :Cout]
    return y


def conv_relu_nchw(x_nchw, weight_oihw, bias, activate=True):
    """PyTorch-convention ConvRelu: x (B, Cin, H, W), weight (Cout, Cin, 3, 3)."""
    x_nhwc = jnp.transpose(x_nchw, (0, 2, 3, 1))
    w_hwio = jnp.transpose(weight_oihw, (2, 3, 1, 0))
    y = conv3x3_relu_nhwc(x_nhwc, w_hwio, bias, activate=activate)
    return jnp.transpose(y, (0, 3, 1, 2))


def init_params(key, in_ch, out_ch):
    # Deterministic init mimicking nn.Conv2d defaults (kaiming-uniform-ish).
    kw, kb = jax.random.split(key)
    fan_in = in_ch * 3 * 3
    bound = 1.0 / jnp.sqrt(fan_in)
    weight = jax.random.uniform(kw, (out_ch, in_ch, 3, 3), jnp.float32,
                                -bound, bound)
    bias = jax.random.uniform(kb, (out_ch,), jnp.float32, -bound, bound)
    return weight, bias


# ---------------------------------------------------------------------------
# Self-test
# ---------------------------------------------------------------------------
if __name__ == "__main__":
    key = jax.random.PRNGKey(0)
    k_x, k_p, k_x2, k_p2 = jax.random.split(key, 4)

    conv_relu = jax.jit(conv_relu_nchw, static_argnames=("activate",))

    def reference(x, weight, bias, activate):
        # Same bf16-rounded inputs as the kernel, full-precision f32 conv.
        xr = x.astype(jnp.bfloat16).astype(jnp.float32)
        wr = weight.astype(jnp.bfloat16).astype(jnp.float32)
        ref = jax.lax.conv_general_dilated(
            xr, wr, window_strides=(1, 1), padding=((1, 1), (1, 1)),
            dimension_numbers=("NCHW", "OIHW", "NCHW"),
            precision=jax.lax.Precision.HIGHEST)
        ref = ref + bias[None, :, None, None]
        return jnp.maximum(ref, 0.0) if activate else ref

    # Case 1: ConvRelu(4 -> 8) on a (2, 4, 16, 16) input, activate=True.
    B, Cin, Cout, H, W = 2, 4, 8, 16, 16
    x = jax.random.normal(k_x, (B, Cin, H, W), jnp.float32)
    weight, bias = init_params(k_p, Cin, Cout)
    out = jax.block_until_ready(conv_relu(x, weight, bias, activate=True))
    ref = reference(x, weight, bias, True)
    assert out.shape == (B, Cout, H, W)
    assert jnp.allclose(out, ref, atol=1e-2, rtol=1e-2), \
        float(jnp.max(jnp.abs(out - ref)))

    # Case 2: no activation, odd channel counts, single row tile.
    B2, Cin2, Cout2, H2, W2 = 1, 3, 5, 8, 8
    x2 = jax.random.normal(k_x2, (B2, Cin2, H2, W2), jnp.float32)
    w2, b2 = init_params(k_p2, Cin2, Cout2)
    out2 = jax.block_until_ready(conv_relu(x2, w2, b2, activate=False))
    ref2 = reference(x2, w2, b2, False)
    assert out2.shape == (B2, Cout2, H2, W2)
    assert jnp.allclose(out2, ref2, atol=1e-2, rtol=1e-2), \
        float(jnp.max(jnp.abs(out2 - ref2)))

    print("KERNEL_OK")
</pallas_src>

<mosaic_0001>
module attributes {stable_mosaic.version = 11 : i64} {
  func.func @_conv3x3_bias_relu_kernel(%arg0: i32, %arg1: i32, %arg2: i32, %arg3: memref<1x256x4xbf16, #tpu.memory_space<vmem>>, %arg4: memref<1x16x4xbf16, #tpu.memory_space<vmem>>, %arg5: memref<1x16x4xbf16, #tpu.memory_space<vmem>>, %arg6: memref<256x2xf32, #tpu.memory_space<vmem>>, %arg7: memref<3x1x4x384xbf16, #tpu.memory_space<vmem>>, %arg8: memref<1x128xf32, #tpu.memory_space<vmem>>, %arg9: memref<1x256x128xf32, #tpu.memory_space<vmem>>) attributes {dimension_semantics = [#tpu.dimension_semantics<parallel>, #tpu.dimension_semantics<parallel>, #tpu.dimension_semantics<parallel>], iteration_bounds = array<i64: 2, 1, 1>, scalar_prefetch = 0 : i64, scratch_operands = 0 : i64, tpu.core_type = #tpu.core_type<tc>, window_params = [{transform_indices = @transform_0, window_bounds = array<i64: 1, 256, 4>}, {transform_indices = @transform_1, window_bounds = array<i64: 1, 16, 4>}, {transform_indices = @transform_2, window_bounds = array<i64: 1, 16, 4>}, {pipeline_mode = #tpu.pipeline_mode<synchronous>, transform_indices = @transform_3, window_bounds = array<i64: 256, 2>}, {transform_indices = @transform_4, window_bounds = array<i64: 3, 1, 4, 384>}, {transform_indices = @transform_5, window_bounds = array<i64: 1, 128>}, {transform_indices = @transform_6, window_bounds = array<i64: 1, 256, 128>}]} {
    %c0 = arith.constant 0 : index
    %c0_0 = arith.constant 0 : index
    %c0_1 = arith.constant 0 : index
    %0 = vector.load %arg4[%c0, %c0_0, %c0_1] : memref<1x16x4xbf16, #tpu.memory_space<vmem>>, vector<1x16x4xbf16>
    %1 = vector.shape_cast %0 : vector<1x16x4xbf16> to vector<16x4xbf16>
    %c0_2 = arith.constant 0 : index
    %c0_3 = arith.constant 0 : index
    %c0_4 = arith.constant 0 : index
    %2 = vector.load %arg5[%c0_2, %c0_3, %c0_4] : memref<1x16x4xbf16, #tpu.memory_space<vmem>>, vector<1x16x4xbf16>
    %3 = vector.shape_cast %2 : vector<1x16x4xbf16> to vector<16x4xbf16>
    %c0_i32 = arith.constant 0 : i32
    %4 = arith.cmpi sgt, %arg1, %c0_i32 : i32
    %5 = arith.extui %4 : i1 to i32
    %6 = arith.sitofp %5 : i32 to f32
    %7 = arith.truncf %6 : f32 to bf16
    %8 = vector.broadcast %7 : bf16 to vector<16x4xbf16>
    %9 = arith.mulf %1, %8 : vector<16x4xbf16>
    %c0_i32_5 = arith.constant 0 : i32
    %10 = arith.cmpi slt, %arg1, %c0_i32_5 : i32
    %11 = arith.extui %10 : i1 to i32
    %12 = arith.sitofp %11 : i32 to f32
    %13 = arith.truncf %12 : f32 to bf16
    %14 = vector.broadcast %13 : bf16 to vector<16x4xbf16>
    %15 = arith.mulf %3, %14 : vector<16x4xbf16>
    %c0_6 = arith.constant 0 : index
    %c0_7 = arith.constant 0 : index
    %c0_8 = arith.constant 0 : index
    %16 = vector.load %arg3[%c0_6, %c0_7, %c0_8] : memref<1x256x4xbf16, #tpu.memory_space<vmem>>, vector<1x256x4xbf16>
    %17 = vector.shape_cast %16 : vector<1x256x4xbf16> to vector<256x4xbf16>
    %18 = tpu.concatenate %9, %17, %15 in 0 : vector<16x4xbf16>, vector<256x4xbf16>, vector<16x4xbf16> -> vector<288x4xbf16>
    %c0_9 = arith.constant 0 : index
    %c0_10 = arith.constant 0 : index
    %19 = vector.load %arg6[%c0_9, %c0_10] : memref<256x2xf32, #tpu.memory_space<vmem>>, vector<256x1xf32>
    %c0_11 = arith.constant 0 : index
    %c1 = arith.constant 1 : index
    %20 = vector.load %arg6[%c0_11, %c1] : memref<256x2xf32, #tpu.memory_space<vmem>>, vector<256x1xf32>
    %cst = arith.constant 0.000000e+00 : f32
    %21 = vector.broadcast %cst : f32 to vector<1x128xf32>
    %c0_12 = arith.constant 0 : index
    %c0_13 = arith.constant 0 : index
    %22 = vector.load %arg8[%c0_12, %c0_13] : memref<1x128xf32, #tpu.memory_space<vmem>>, vector<1x128xf32>
    %23 = vector.shape_cast %22 : vector<1x128xf32> to vector<1x128xf32>
    %24 = vector.broadcast %23 : vector<1x128xf32> to vector<256x128xf32>
    %25 = vector.extract_strided_slice %18 {offsets = [0, 0], sizes = [256, 4], strides = [1, 1]} : vector<288x4xbf16> to vector<256x4xbf16>
    %c0_14 = arith.constant 0 : index
    %c0_15 = arith.constant 0 : index
    %c0_16 = arith.constant 0 : index
    %c0_17 = arith.constant 0 : index
    %26 = vector.load %arg7[%c0_14, %c0_15, %c0_16, %c0_17] : memref<3x1x4x384xbf16, #tpu.memory_space<vmem>>, vector<1x1x4x384xbf16>
    %27 = vector.shape_cast %26 : vector<1x1x4x384xbf16> to vector<4x384xbf16>
    %cst_18 = arith.constant dense<0.000000e+00> : vector<256x384xf32>
    %28 = tpu.matmul %25, %27, %cst_18 {dimension_numbers = #tpu.dot_dimension_numbers<[1], [0], [0], [1], [0, 0, 1, 1], [], []>} : vector<256x4xbf16>, vector<4x384xbf16>, vector<256x384xf32> -> vector<256x384xf32>
    %29 = vector.extract_strided_slice %28 {offsets = [0, 0], sizes = [256, 128], strides = [1, 1]} : vector<256x384xf32> to vector<256x128xf32>
    %30 = vector.extract_strided_slice %28 {offsets = [0, 128], sizes = [256, 128], strides = [1, 1]} : vector<256x384xf32> to vector<256x128xf32>
    %31 = vector.extract_strided_slice %28 {offsets = [0, 256], sizes = [256, 128], strides = [1, 1]} : vector<256x384xf32> to vector<256x128xf32>
    %32 = arith.addf %24, %30 : vector<256x128xf32>
    %33 = vector.extract_strided_slice %29 {offsets = [0, 0], sizes = [255, 128], strides = [1, 1]} : vector<256x128xf32> to vector<255x128xf32>
    %34 = tpu.concatenate %21, %33 in 0 : vector<1x128xf32>, vector<255x128xf32> -> vector<256x128xf32>
    %35 = vector.broadcast %19 : vector<256x1xf32> to vector<256x128xf32>
    %36 = arith.mulf %34, %35 : vector<256x128xf32>
    %37 = arith.addf %32, %36 : vector<256x128xf32>
    %38 = vector.extract_strided_slice %31 {offsets = [1, 0], sizes = [255, 128], strides = [1, 1]} : vector<256x128xf32> to vector<255x128xf32>
    %39 = tpu.concatenate %38, %21 in 0 : vector<255x128xf32>, vector<1x128xf32> -> vector<256x128xf32>
    %40 = vector.broadcast %20 : vector<256x1xf32> to vector<256x128xf32>
    %41 = arith.mulf %39, %40 : vector<256x128xf32>
    %42 = arith.addf %37, %41 : vector<256x128xf32>
    %43 = vector.extract_strided_slice %18 {offsets = [16, 0], sizes = [256, 4], strides = [1, 1]} : vector<288x4xbf16> to vector<256x4xbf16>
    %c1_19 = arith.constant 1 : index
    %c0_20 = arith.constant 0 : index
    %c0_21 = arith.constant 0 : index
    %c0_22 = arith.constant 0 : index
    %44 = vector.load %arg7[%c1_19, %c0_20, %c0_21, %c0_22] : memref<3x1x4x384xbf16, #tpu.memory_space<vmem>>, vector<1x1x4x384xbf16>
    %45 = vector.shape_cast %44 : vector<1x1x4x384xbf16> to vector<4x384xbf16>
    %cst_23 = arith.constant dense<0.000000e+00> : vector<256x384xf32>
    %46 = tpu.matmul %43, %45, %cst_23 {dimension_numbers = #tpu.dot_dimension_numbers<[1], [0], [0], [1], [0, 0, 1, 1], [], []>} : vector<256x4xbf16>, vector<4x384xbf16>, vector<256x384xf32> -> vector<256x384xf32>
    %47 = vector.extract_strided_slice %46 {offsets = [0, 0], sizes = [256, 128], strides = [1, 1]} : vector<256x384xf32> to vector<256x128xf32>
    %48 = vector.extract_strided_slice %46 {offsets = [0, 128], sizes = [256, 128], strides = [1, 1]} : vector<256x384xf32> to vector<256x128xf32>
    %49 = vector.extract_strided_slice %46 {offsets = [0, 256], sizes = [256, 128], strides = [1, 1]} : vector<256x384xf32> to vector<256x128xf32>
    %50 = arith.addf %42, %48 : vector<256x128xf32>
    %51 = vector.extract_strided_slice %47 {offsets = [0, 0], sizes = [255, 128], strides = [1, 1]} : vector<256x128xf32> to vector<255x128xf32>
    %52 = tpu.concatenate %21, %51 in 0 : vector<1x128xf32>, vector<255x128xf32> -> vector<256x128xf32>
    %53 = vector.broadcast %19 : vector<256x1xf32> to vector<256x128xf32>
    %54 = arith.mulf %52, %53 : vector<256x128xf32>
    %55 = arith.addf %50, %54 : vector<256x128xf32>
    %56 = vector.extract_strided_slice %49 {offsets = [1, 0], sizes = [255, 128], strides = [1, 1]} : vector<256x128xf32> to vector<255x128xf32>
    %57 = tpu.concatenate %56, %21 in 0 : vector<255x128xf32>, vector<1x128xf32> -> vector<256x128xf32>
    %58 = vector.broadcast %20 : vector<256x1xf32> to vector<256x128xf32>
    %59 = arith.mulf %57, %58 : vector<256x128xf32>
    %60 = arith.addf %55, %59 : vector<256x128xf32>
    %61 = vector.extract_strided_slice %18 {offsets = [32, 0], sizes = [256, 4], strides = [1, 1]} : vector<288x4xbf16> to vector<256x4xbf16>
    %c2 = arith.constant 2 : index
    %c0_24 = arith.constant 0 : index
    %c0_25 = arith.constant 0 : index
    %c0_26 = arith.constant 0 : index
    %62 = vector.load %arg7[%c2, %c0_24, %c0_25, %c0_26] : memref<3x1x4x384xbf16, #tpu.memory_space<vmem>>, vector<1x1x4x384xbf16>
    %63 = vector.shape_cast %62 : vector<1x1x4x384xbf16> to vector<4x384xbf16>
    %cst_27 = arith.constant dense<0.000000e+00> : vector<256x384xf32>
    %64 = tpu.matmul %61, %63, %cst_27 {dimension_numbers = #tpu.dot_dimension_numbers<[1], [0], [0], [1], [0, 0, 1, 1], [], []>} : vector<256x4xbf16>, vector<4x384xbf16>, vector<256x384xf32> -> vector<256x384xf32>
    %65 = vector.extract_strided_slice %64 {offsets = [0, 0], sizes = [256, 128], strides = [1, 1]} : vector<256x384xf32> to vector<256x128xf32>
    %66 = vector.extract_strided_slice %64 {offsets = [0, 128], sizes = [256, 128], strides = [1, 1]} : vector<256x384xf32> to vector<256x128xf32>
    %67 = vector.extract_strided_slice %64 {offsets = [0, 256], sizes = [256, 128], strides = [1, 1]} : vector<256x384xf32> to vector<256x128xf32>
    %68 = arith.addf %60, %66 : vector<256x128xf32>
    %69 = vector.extract_strided_slice %65 {offsets = [0, 0], sizes = [255, 128], strides = [1, 1]} : vector<256x128xf32> to vector<255x128xf32>
    %70 = tpu.concatenate %21, %69 in 0 : vector<1x128xf32>, vector<255x128xf32> -> vector<256x128xf32>
    %71 = vector.broadcast %19 : vector<256x1xf32> to vector<256x128xf32>
    %72 = arith.mulf %70, %71 : vector<256x128xf32>
    %73 = arith.addf %68, %72 : vector<256x128xf32>
    %74 = vector.extract_strided_slice %67 {offsets = [1, 0], sizes = [255, 128], strides = [1, 1]} : vector<256x128xf32> to vector<255x128xf32>
    %75 = tpu.concatenate %74, %21 in 0 : vector<255x128xf32>, vector<1x128xf32> -> vector<256x128xf32>
    %76 = vector.broadcast %20 : vector<256x1xf32> to vector<256x128xf32>
    %77 = arith.mulf %75, %76 : vector<256x128xf32>
    %78 = arith.addf %73, %77 : vector<256x128xf32>
    %cst_28 = arith.constant 0.000000e+00 : f32
    %79 = vector.broadcast %cst_28 : f32 to vector<256x128xf32>
    %80 = arith.maximumf %78, %79 : vector<256x128xf32>
    %81 = vector.shape_cast %80 : vector<256x128xf32> to vector<1x256x128xf32>
    %c0_29 = arith.constant 0 : index
    %c0_30 = arith.constant 0 : index
    %c0_31 = arith.constant 0 : index
    %82 = vector.load %arg9[%c0_29, %c0_30, %c0_31] : memref<1x256x128xf32, #tpu.memory_space<vmem>>, vector<1x256x128xf32>
    tpu.vector_store %arg9[%c0_29, %c0_30, %c0_31], %81 {strides = array<i32>} : memref<1x256x128xf32, #tpu.memory_space<vmem>>, vector<1x256x128xf32>,
    return
  }
  func.func @transform_0(%arg0: i32, %arg1: i32, %arg2: i32) -> (i32, i32, i32) {
    %c0_i32 = arith.constant 0 : i32
    %c0_i32_0 = arith.constant 0 : i32
    return %arg0, %arg1, %c0_i32 : i32, i32, i32
  }
  func.func @transform_1(%arg0: i32, %arg1: i32, %arg2: i32) -> (i32, i32, i32) {
    %c16_i32 = arith.constant 16 : i32
    %0 = arith.muli %arg1, %c16_i32 : i32
    %c1_i32 = arith.constant 1 : i32
    %1 = arith.subi %0, %c1_i32 : i32
    %c0_i32 = arith.constant 0 : i32
    %2 = arith.maxsi %1, %c0_i32 : i32
    %c0_i32_0 = arith.constant 0 : i32
    %c0_i32_1 = arith.constant 0 : i32
    return %arg0, %2, %c0_i32_0 : i32, i32, i32
  }
  func.func @transform_2(%arg0: i32, %arg1: i32, %arg2: i32) -> (i32, i32, i32) {
    %c16_i32 = arith.constant 16 : i32
    %0 = arith.muli %arg1, %c16_i32 : i32
    %c16_i32_0 = arith.constant 16 : i32
    %1 = arith.addi %0, %c16_i32_0 : i32
    %c15_i32 = arith.constant 15 : i32
    %2 = arith.minsi %1, %c15_i32 : i32
    %c0_i32 = arith.constant 0 : i32
    %c0_i32_1 = arith.constant 0 : i32
    return %arg0, %2, %c0_i32 : i32, i32, i32
  }
  func.func @transform_3(%arg0: i32, %arg1: i32, %arg2: i32) -> (i32, i32) {
    %c0_i32 = arith.constant 0 : i32
    %c0_i32_0 = arith.constant 0 : i32
    %c0_i32_1 = arith.constant 0 : i32
    return %c0_i32, %c0_i32_0 : i32, i32
  }
  func.func @transform_4(%arg0: i32, %arg1: i32, %arg2: i32) -> (i32, i32, i32, i32) {
    %c0_i32 = arith.constant 0 : i32
    %c0_i32_0 = arith.constant 0 : i32
    %c0_i32_1 = arith.constant 0 : i32
    %c0_i32_2 = arith.constant 0 : i32
    return %c0_i32, %arg2, %c0_i32_0, %c0_i32_1 : i32, i32, i32, i32
  }
  func.func @transform_5(%arg0: i32, %arg1: i32, %arg2: i32) -> (i32, i32) {
    %c0_i32 = arith.constant 0 : i32
    %c0_i32_0 = arith.constant 0 : i32
    return %c0_i32, %arg2 : i32, i32
  }
  func.func @transform_6(%arg0: i32, %arg1: i32, %arg2: i32) -> (i32, i32, i32) {
    %c0_i32 = arith.constant 0 : i32
    return %arg0, %arg1, %arg2 : i32, i32, i32
  }
}

</mosaic_0001>

<llo_original>
// kernel: conv_relu_nchw.1
$region0: #{conv_relu_nchw.1}
  #allocation0 [shape = 'u32[]', space=smem, size = 0x4, offset = 0x4, fixed_abs, tag = 'smem constant byte address 0x4 - core index']
  #allocation1 [shape = 'u32[144,128]{1,0:T(1,128)}', space=vmem, size = 0x12000, scoped, tag = 'internal scratch']
  %s0 = inlined_call_operand.vmem [shape: bf16[2,256,4], index: 0, kind: input, shape index: {}, may-alias: {0,1,2}]
  %s1 = inlined_call_operand.vmem [shape: bf16[2,256,4], index: 1, kind: input, shape index: {}, may-alias: {0,1,2}]
  %s2 = inlined_call_operand.vmem [shape: bf16[2,256,4], index: 2, kind: input, shape index: {}, may-alias: {0,1,2}]
  %s3 = inlined_call_operand.vmem [shape: f32[256,2], index: 3, kind: input, shape index: {}]
  %s4 = inlined_call_operand.vmem [shape: bf16[3,1,4,384], index: 4, kind: input, shape index: {}]
  %s5 = inlined_call_operand.vmem [shape: f32[1,128], index: 5, kind: input, shape index: {}]
  %s6 = inlined_call_operand.vmem [shape: f32[2,256,128], index: 6, kind: output, shape index: {}]
  %s7 = sld [smem:[#allocation0]]
  $region57: #{conv_relu_nchw.1} parent=0
    _
  %s9 = ssub.s32 1, %s7
  %s10 = scalar_select 0, %s9, %s7
  loop: start=0, step=1, limit=4
  $region2: #{conv_relu_nchw.1} parent=0 // loop_pre_header
    _
  $region3: #{conv_relu_nchw.1} parent=0 // loop_header
    %s12 = sphi 0, %s16
    %p13 = scmp.ge.s32.totalorder %s12, 4
    %s19 = sphi 0, %s38
    %s20 = sphi 0, %s34
    %s21 = sphi 0, %s30
    %s22 = sphi 0, %s19
    %s23 = sphi 0, %s20
    %s24 = sphi 0, %s21
    %s25 = sphi 0, %s22
    %s26 = sphi 0, %s23
    %s27 = sphi 0, %s24
    %s43 = sphi 0, %s45
    %s46 = sphi 0, %s43
    %s47 = sphi 0, %s46
    %s63 = sphi 0, %s47
    %s79 = sphi 0, %s81
    %s82 = sphi 0, %s79
    %s83 = sphi 0, %s82
    %s99 = sphi 0, %s83
    %s115 = sphi 0, %s117
    %s118 = sphi 0, %s115
    %s119 = sphi 0, %s118
    %s135 = sphi 0, %s119
    %s139 = sphi 0, %s139
    %s141 = sphi 0, %s139
    %s142 = sphi 0, %s141
    %s156 = sphi 0, %s142
    %s162 = sphi 0, %s164
    %s165 = sphi 0, %s162
    %s166 = sphi 0, %s165
    %s182 = sphi 0, %s166
    %s188 = sphi 0, %s190
    %s191 = sphi 0, %s188
    %s192 = sphi 0, %s191
    %s208 = sphi 0, %s192
    %s218 = sphi 0, %s220
    %s221 = sphi 0, %s218
    %s222 = sphi 0, %s221
    %s238 = sphi 0, %s222
  $region4: #{conv_relu_nchw.1} parent=0 // loop_header_branch
    %15 = sbr.rel (%p13) target = $region8
  $region5: #{conv_relu_nchw.1} parent=0 // loop_body
    %s17 = ssub.s32 %s12, 1
    %s18 = ssub.s32 %s12, 2
    %s28 = sadd.s32 1, %s21
    %p29 = scmp.ge.s32.totalorder %s28, 1
    %s30 = scalar_select %p29, 0, %s28
    %s31 = sadd.s32 1, %s20
    %s32 = scalar_select %p29, %s31, %s20
    %p33 = scmp.ge.s32.totalorder %s32, 1
    %s34 = scalar_select %p33, 0, %s32
    %s35 = sadd.s32 1, %s19
    %s36 = scalar_select %p33, %s35, %s19
    %p37 = scmp.ge.s32.totalorder %s36, 2
    %s38 = scalar_select %p37, 0, %s36
    %s39 = ssub.s32 %s19, %s38
    %s40 = ssub.s32 %s20, %s34
    %s41 = sor.u32 %s39, %s40
    %p42 = scmp.eq.s32.totalorder %s41, 0
    %s44 = sadd.s32 %s43, 1
    %s45 = scalar_select %p42, %s43, %s44
    %p48 = pneg %p42
    %p49 = scmp.eq.s32.totalorder %s12, 1
    %p50 = por %p48, %p49
    %p51 = scmp.ne.s32.totalorder %s43, %s46
    %p52 = scmp.eq.s32.totalorder %s12, 0
    %p53 = por %p51, %p52
    %p54 = scmp.ne.s32.totalorder %s43, %s46
    %p55 = scmp.eq.s32.totalorder %s17, 1
    %p56 = por %p54, %p55
    %p57 = scmp.ne.s32.totalorder %s46, %s47
    %p58 = scmp.eq.s32.totalorder %s17, 0
    %p59 = por %p57, %p58
    %p60 = scmp.ne.s32.totalorder %s46, %s47
    %p61 = scmp.eq.s32.totalorder %s18, 1
    %p62 = por %p60, %p61
    %p64 = scmp.ne.s32.totalorder %s47, %s63
    %p65 = scmp.eq.s32.totalorder %s18, 0
    %p66 = por %p64, %p65
    %s67 = smul.u32 %s20, 16
    %s68 = ssub.s32 %s67, 1
    %p69 = scmp.gt.s32.totalorder %s68, 0
    %s70 = scalar_select %p69, %s68, 0
    %s71 = smul.u32 %s34, 16
    %s72 = ssub.s32 %s71, 1
    %p73 = scmp.gt.s32.totalorder %s72, 0
    %s74 = scalar_select %p73, %s72, 0
    %s75 = ssub.s32 %s19, %s38
    %s76 = ssub.s32 %s70, %s74
    %s77 = sor.u32 %s75, %s76
    %p78 = scmp.eq.s32.totalorder %s77, 0
    %s80 = sadd.s32 %s79, 1
    %s81 = scalar_select %p78, %s79, %s80
    %p84 = pneg %p78
    %p85 = scmp.eq.s32.totalorder %s12, 1
    %p86 = por %p84, %p85
    %p87 = scmp.ne.s32.totalorder %s79, %s82
    %p88 = scmp.eq.s32.totalorder %s12, 0
    %p89 = por %p87, %p88
    %p90 = scmp.ne.s32.totalorder %s79, %s82
    %p91 = scmp.eq.s32.totalorder %s17, 1
    %p92 = por %p90, %p91
    %p93 = scmp.ne.s32.totalorder %s82, %s83
    %p94 = scmp.eq.s32.totalorder %s17, 0
    %p95 = por %p93, %p94
    %p96 = scmp.ne.s32.totalorder %s82, %s83
    %p97 = scmp.eq.s32.totalorder %s18, 1
    %p98 = por %p96, %p97
    %p100 = scmp.ne.s32.totalorder %s83, %s99
    %p101 = scmp.eq.s32.totalorder %s18, 0
    %p102 = por %p100, %p101
    %s103 = smul.u32 %s20, 16
    %s104 = sadd.s32 %s103, 16
    %p105 = scmp.lt.s32.totalorder %s104, 15
    %s106 = scalar_select %p105, %s104, 15
    %s107 = smul.u32 %s34, 16
    %s108 = sadd.s32 %s107, 16
    %p109 = scmp.lt.s32.totalorder %s108, 15
    %s110 = scalar_select %p109, %s108, 15
    %s111 = ssub.s32 %s19, %s38
    %s112 = ssub.s32 %s106, %s110
    %s113 = sor.u32 %s111, %s112
    %p114 = scmp.eq.s32.totalorder %s113, 0
    %s116 = sadd.s32 %s115, 1
    %s117 = scalar_select %p114, %s115, %s116
    %p120 = pneg %p114
    %p121 = scmp.eq.s32.totalorder %s12, 1
    %p122 = por %p120, %p121
    %p123 = scmp.ne.s32.totalorder %s115, %s118
    %p124 = scmp.eq.s32.totalorder %s12, 0
    %p125 = por %p123, %p124
    %p126 = scmp.ne.s32.totalorder %s115, %s118
    %p127 = scmp.eq.s32.totalorder %s17, 1
    %p128 = por %p126, %p127
    %p129 = scmp.ne.s32.totalorder %s118, %s119
    %p130 = scmp.eq.s32.totalorder %s17, 0
    %p131 = por %p129, %p130
    %p132 = scmp.ne.s32.totalorder %s118, %s119
    %p133 = scmp.eq.s32.totalorder %s18, 1
    %p134 = por %p132, %p133
    %p136 = scmp.ne.s32.totalorder %s119, %s135
    %p137 = scmp.eq.s32.totalorder %s18, 0
    %p138 = por %p136, %p137
    %s140 = sadd.s32 %s139, 1
    %p143 = scmp.eq.s32.totalorder %s12, 1
    %p144 = scmp.ne.s32.totalorder %s139, %s141
    %p145 = scmp.eq.s32.totalorder %s12, 0
    %p146 = por %p144, %p145
    %p147 = scmp.ne.s32.totalorder %s139, %s141
    %p148 = scmp.eq.s32.totalorder %s17, 1
    %p149 = por %p147, %p148
    %p150 = scmp.ne.s32.totalorder %s141, %s142
    %p151 = scmp.eq.s32.totalorder %s17, 0
    %p152 = por %p150, %p151
    %p153 = scmp.ne.s32.totalorder %s141, %s142
    %p154 = scmp.eq.s32.totalorder %s18, 1
    %p155 = por %p153, %p154
    %p157 = scmp.ne.s32.totalorder %s142, %s156
    %p158 = scmp.eq.s32.totalorder %s18, 0
    %p159 = por %p157, %p158
    %s160 = ssub.s32 %s21, %s30
    %p161 = scmp.eq.s32.totalorder %s160, 0
    %s163 = sadd.s32 %s162, 1
    %s164 = scalar_select %p161, %s162, %s163
    %p167 = pneg %p161
    %p168 = scmp.eq.s32.totalorder %s12, 1
    %p169 = por %p167, %p168
    %p170 = scmp.ne.s32.totalorder %s162, %s165
    %p171 = scmp.eq.s32.totalorder %s12, 0
    %p172 = por %p170, %p171
    %p173 = scmp.ne.s32.totalorder %s162, %s165
    %p174 = scmp.eq.s32.totalorder %s17, 1
    %p175 = por %p173, %p174
    %p176 = scmp.ne.s32.totalorder %s165, %s166
    %p177 = scmp.eq.s32.totalorder %s17, 0
    %p178 = por %p176, %p177
    %p179 = scmp.ne.s32.totalorder %s165, %s166
    %p180 = scmp.eq.s32.totalorder %s18, 1
    %p181 = por %p179, %p180
    %p183 = scmp.ne.s32.totalorder %s166, %s182
    %p184 = scmp.eq.s32.totalorder %s18, 0
    %p185 = por %p183, %p184
    %s186 = ssub.s32 %s21, %s30
    %p187 = scmp.eq.s32.totalorder %s186, 0
    %s189 = sadd.s32 %s188, 1
    %s190 = scalar_select %p187, %s188, %s189
    %p193 = pneg %p187
    %p194 = scmp.eq.s32.totalorder %s12, 1
    %p195 = por %p193, %p194
    %p196 = scmp.ne.s32.totalorder %s188, %s191
    %p197 = scmp.eq.s32.totalorder %s12, 0
    %p198 = por %p196, %p197
    %p199 = scmp.ne.s32.totalorder %s188, %s191
    %p200 = scmp.eq.s32.totalorder %s17, 1
    %p201 = por %p199, %p200
    %p202 = scmp.ne.s32.totalorder %s191, %s192
    %p203 = scmp.eq.s32.totalorder %s17, 0
    %p204 = por %p202, %p203
    %p205 = scmp.ne.s32.totalorder %s191, %s192
    %p206 = scmp.eq.s32.totalorder %s18, 1
    %p207 = por %p205, %p206
    %p209 = scmp.ne.s32.totalorder %s192, %s208
    %p210 = scmp.eq.s32.totalorder %s18, 0
    %p211 = por %p209, %p210
    %s212 = ssub.s32 %s19, %s38
    %s213 = ssub.s32 %s20, %s34
    %s214 = sor.u32 %s212, %s213
    %s215 = ssub.s32 %s21, %s30
    %s216 = sor.u32 %s214, %s215
    %p217 = scmp.eq.s32.totalorder %s216, 0
    %s219 = sadd.s32 %s218, 1
    %s220 = scalar_select %p217, %s218, %s219
    %p223 = pneg %p217
    %p224 = scmp.eq.s32.totalorder %s12, 1
    %p225 = por %p223, %p224
    %p226 = scmp.ne.s32.totalorder %s218, %s221
    %p227 = scmp.eq.s32.totalorder %s12, 0
    %p228 = por %p226, %p227
    %p229 = scmp.ne.s32.totalorder %s218, %s221
    %p230 = scmp.eq.s32.totalorder %s17, 1
    %p231 = por %p229, %p230
    %p232 = scmp.ne.s32.totalorder %s221, %s222
    %p233 = scmp.eq.s32.totalorder %s17, 0
    %p234 = por %p232, %p233
    %p235 = scmp.ne.s32.totalorder %s221, %s222
    %p236 = scmp.eq.s32.totalorder %s18, 1
    %p237 = por %p235, %p236
    %p239 = scmp.ne.s32.totalorder %s222, %s238
    %p240 = scmp.eq.s32.totalorder %s18, 0
    %p241 = por %p239, %p240
    %p242 = scmp.le.s32.totalorder 1, %s12
    %p243 = scmp.lt.s32.totalorder %s12, 3
    %p244 = pnand %p242, %p243
    %p245 = pneg %p244
    // Predicated region
    $region9: #{conv_relu_nchw.1} parent=5 // pred_check
      _
    $region10: #{conv_relu_nchw.1} parent=5 // pred_check_branch
      %247 = sbr.rel (%p244) target = $region12
    $region11: #{conv_relu_nchw.1} parent=5 // pred_region
      %s248 = ssub.s32 %s12, 1
      // Predicated region
      $region13: #{conv_relu_nchw.1} parent=11 // pred_check
        %p249 = pneg %p152
      $region14: #{conv_relu_nchw.1} parent=11 // pred_check_branch
        %251 = sbr.rel (%p249) target = $region16
      $region15: #{conv_relu_nchw.1} parent=11 // pred_region
        _
      $region16: #{conv_relu_nchw.1} parent=11 // pred_fallthru
        _
      // Predicated region
      $region17: #{conv_relu_nchw.1} parent=11 // pred_check
        %p252 = pneg %p178
      $region18: #{conv_relu_nchw.1} parent=11 // pred_check_branch
        %254 = sbr.rel (%p252) target = $region20
      $region19: #{conv_relu_nchw.1} parent=11 // pred_region
        %p255 = scmp.lt.s32.totalorder %s24, 0
        %s256 = scalar_select %p255, %s24, 0
        %s257 = smul.addr %s256, 3
        %s258 = smul.addr %s257, 2
        %s259 = scalar_lea.vmem %s4, %s258
      $region20: #{conv_relu_nchw.1} parent=11 // pred_fallthru
        _
      // Predicated region
      $region21: #{conv_relu_nchw.1} parent=11 // pred_check
        %p260 = pneg %p204
      $region22: #{conv_relu_nchw.1} parent=11 // pred_check_branch
        %262 = sbr.rel (%p260) target = $region24
      $region23: #{conv_relu_nchw.1} parent=11 // pred_region
        %p263 = scmp.lt.s32.totalorder %s24, 0
        %s264 = scalar_select %p263, %s24, 0
        %s265 = scalar_lea.vmem %s5, %s264
      $region24: #{conv_relu_nchw.1} parent=11 // pred_fallthru
        _
    $region12: #{conv_relu_nchw.1} parent=5 // pred_fallthru
      _
    %p266 = scmp.lt.s32.totalorder %s12, 2
    // Predicated region
    $region25: #{conv_relu_nchw.1} parent=5 // pred_check
      %p267 = pneg %p266
    $region26: #{conv_relu_nchw.1} parent=5 // pred_check_branch
      %269 = sbr.rel (%p267) target = $region28
    $region27: #{conv_relu_nchw.1} parent=5 // pred_region
      // Predicated region
      $region29: #{conv_relu_nchw.1} parent=27 // pred_check
        %p270 = pneg %p53
      $region30: #{conv_relu_nchw.1} parent=27 // pred_check_branch
        %272 = sbr.rel (%p270) target = $region32
      $region31: #{conv_relu_nchw.1} parent=27 // pred_region
        %s273 = smul.u32 32, %s20
        %p274 = scmp.lt.s32.totalorder %s19, 1
        %s275 = scalar_select %p274, %s19, 1
        %p276 = scmp.lt.s32.totalorder %s273, 31
        %s277 = scalar_select %p276, %s273, 31
        %s278 = smul.addr %s275, 32
        %s279 = sadd.s32 %s277, %s278
        %s280 = smul.addr %s279, 4
        %s281 = scalar_lea.vmem %s0, %s280
        %s282 = smul.u32 32, %s20
      $region32: #{conv_relu_nchw.1} parent=27 // pred_fallthru
        _
      // Predicated region
      $region33: #{conv_relu_nchw.1} parent=27 // pred_check
        %p283 = pneg %p89
      $region34: #{conv_relu_nchw.1} parent=27 // pred_check_branch
        %285 = sbr.rel (%p283) target = $region36
      $region35: #{conv_relu_nchw.1} parent=27 // pred_region
        %s286 = smul.u32 %s20, 16
        %s287 = ssub.s32 %s286, 1
        %p288 = scmp.gt.s32.totalorder %s287, 0
        %s289 = scalar_select %p288, %s287, 0
        %s290 = smul.u32 2, %s289
        %p291 = scmp.lt.s32.totalorder %s19, 1
        %s292 = scalar_select %p291, %s19, 1
        %p293 = scmp.lt.s32.totalorder %s290, 31
        %s294 = scalar_select %p293, %s290, 31
        %s295 = smul.addr %s292, 32
        %s296 = sadd.s32 %s294, %s295
        %s297 = smul.addr %s296, 4
        %s298 = scalar_lea.vmem %s1, %s297
        %s299 = smul.u32 %s20, 16
        %s300 = ssub.s32 %s299, 1
        %p301 = scmp.gt.s32.totalorder %s300, 0
        %s302 = scalar_select %p301, %s300, 0
        %s303 = smul.u32 2, %s302
      $region36: #{conv_relu_nchw.1} parent=27 // pred_fallthru
        _
      // Predicated region
      $region37: #{conv_relu_nchw.1} parent=27 // pred_check
        %p304 = pneg %p125
      $region38: #{conv_relu_nchw.1} parent=27 // pred_check_branch
        %306 = sbr.rel (%p304) target = $region40
      $region39: #{conv_relu_nchw.1} parent=27 // pred_region
        %s307 = smul.u32 %s20, 16
        %s308 = sadd.s32 %s307, 16
        %p309 = scmp.lt.s32.totalorder %s308, 15
        %s310 = scalar_select %p309, %s308, 15
        %s311 = smul.u32 2, %s310
        %p312 = scmp.lt.s32.totalorder %s19, 1
        %s313 = scalar_select %p312, %s19, 1
        %p314 = scmp.lt.s32.totalorder %s311, 31
        %s315 = scalar_select %p314, %s311, 31
        %s316 = smul.addr %s313, 32
        %s317 = sadd.s32 %s315, %s316
        %s318 = smul.addr %s317, 4
        %s319 = scalar_lea.vmem %s2, %s318
        %s320 = smul.u32 %s20, 16
        %s321 = sadd.s32 %s320, 16
        %p322 = scmp.lt.s32.totalorder %s321, 15
        %s323 = scalar_select %p322, %s321, 15
        %s324 = smul.u32 2, %s323
      $region40: #{conv_relu_nchw.1} parent=27 // pred_fallthru
        _
    $region28: #{conv_relu_nchw.1} parent=5 // pred_fallthru
      _
    %p325 = scmp.le.s32.totalorder 1, %s12
    %p326 = scmp.lt.s32.totalorder %s12, 3
    %p327 = pnand %p325, %p326
    %p328 = pneg %p327
    // Predicated region
    $region41: #{conv_relu_nchw.1} parent=5 // pred_check
      _
    $region42: #{conv_relu_nchw.1} parent=5 // pred_check_branch
      %330 = sbr.rel (%p327) target = $region44
    $region43: #{conv_relu_nchw.1} parent=5 // pred_region
      %s331 = ssub.s32 %s12, 1
      %s332 = smul.u32 32, %s23
      %p333 = scmp.lt.s32.totalorder %s22, 1
      %s334 = scalar_select %p333, %s22, 1
      %p335 = scmp.lt.s32.totalorder %s332, 31
      %s336 = scalar_select %p335, %s332, 31
      %s337 = smul.addr %s334, 32
      %s338 = sadd.s32 %s336, %s337
      %s339 = smul.addr %s338, 4
      %s340 = scalar_lea.vmem %s0, %s339
      %p341 = pneg %p59
      %p342 = pneg %p56
      %s343 = smul.u32 %s23, 16
      %s344 = ssub.s32 %s343, 1
      %p345 = scmp.gt.s32.totalorder %s344, 0
      %s346 = scalar_select %p345, %s344, 0
      %s347 = smul.u32 2, %s346
      %p348 = scmp.lt.s32.totalorder %s22, 1
      %s349 = scalar_select %p348, %s22, 1
      %p350 = scmp.lt.s32.totalorder %s347, 31
      %s351 = scalar_select %p350, %s347, 31
      %s352 = smul.addr %s349, 32
      %s353 = sadd.s32 %s351, %s352
      %s354 = smul.addr %s353, 4
      %s355 = scalar_lea.vmem %s1, %s354
      %p356 = pneg %p95
      %p357 = pneg %p92
      %s358 = smul.u32 %s23, 16
      %s359 = sadd.s32 %s358, 16
      %p360 = scmp.lt.s32.totalorder %s359, 15
      %s361 = scalar_select %p360, %s359, 15
      %s362 = smul.u32 2, %s361
      %p363 = scmp.lt.s32.totalorder %s22, 1
      %s364 = scalar_select %p363, %s22, 1
      %p365 = scmp.lt.s32.totalorder %s362, 31
      %s366 = scalar_select %p365, %s362, 31
      %s367 = smul.addr %s364, 32
      %s368 = sadd.s32 %s366, %s367
      %s369 = smul.addr %s368, 4
      %s370 = scalar_lea.vmem %s2, %s369
      %p371 = pneg %p131
      %p372 = pneg %p128
      %p373 = pneg %p152
      %p374 = pneg %p149
      %p375 = scmp.lt.s32.totalorder %s24, 0
      %s376 = scalar_select %p375, %s24, 0
      %s377 = smul.addr %s376, 3
      %s378 = smul.addr %s377, 2
      %s379 = scalar_lea.vmem %s4, %s378
      %p380 = pneg %p178
      %p381 = pneg %p175
      %p382 = scmp.lt.s32.totalorder %s24, 0
      %s383 = scalar_select %p382, %s24, 0
      %s384 = scalar_lea.vmem %s5, %s383
      %p385 = pneg %p204
      %p386 = pneg %p201
      %p387 = pneg %p234
      %p388 = pneg %p231
      %s389 = smul.u32 32, %s23
      %p390 = scmp.lt.s32.totalorder %s22, 1
      %s391 = scalar_select %p390, %s22, 1
      %p392 = scmp.lt.s32.totalorder %s389, 31
      %s393 = scalar_select %p392, %s389, 31
      %p394 = scmp.lt.s32.totalorder %s24, 0
      %s395 = scalar_select %p394, %s24, 0
      %s396 = sadd.s32 %s395, %s393
      %s397 = smul.addr %s391, 32
      %s398 = sadd.s32 %s396, %s397
      %s399 = smul.addr %s398, 8
      %s400 = scalar_lea.vmem %s6, %s399
      %s401 = smul.u32 32, %s23
      %p402 = scmp.lt.s32.totalorder %s22, 1
      %s403 = scalar_select %p402, %s22, 1
      %p404 = scmp.lt.s32.totalorder %s401, 31
      %s405 = scalar_select %p404, %s401, 31
      %s406 = smul.addr %s403, 32
      %s407 = sadd.s32 %s405, %s406
      %s408 = smul.addr %s407, 4
      %s409 = scalar_lea.vmem %s0, %s408
      %s410 = smul.u32 32, %s23
      %s411 = smul.u32 %s23, 16
      %s412 = ssub.s32 %s411, 1
      %p413 = scmp.gt.s32.totalorder %s412, 0
      %s414 = scalar_select %p413, %s412, 0
      %s415 = smul.u32 2, %s414
      %p416 = scmp.lt.s32.totalorder %s22, 1
      %s417 = scalar_select %p416, %s22, 1
      %p418 = scmp.lt.s32.totalorder %s415, 31
      %s419 = scalar_select %p418, %s415, 31
      %s420 = smul.addr %s417, 32
      %s421 = sadd.s32 %s419, %s420
      %s422 = smul.addr %s421, 4
      %s423 = scalar_lea.vmem %s1, %s422
      %s424 = smul.u32 %s23, 16
      %s425 = ssub.s32 %s424, 1
      %p426 = scmp.gt.s32.totalorder %s425, 0
      %s427 = scalar_select %p426, %s425, 0
      %s428 = smul.u32 2, %s427
      %s429 = smul.u32 %s23, 16
      %s430 = sadd.s32 %s429, 16
      %p431 = scmp.lt.s32.totalorder %s430, 15
      %s432 = scalar_select %p431, %s430, 15
      %s433 = smul.u32 2, %s432
      %p434 = scmp.lt.s32.totalorder %s22, 1
      %s435 = scalar_select %p434, %s22, 1
      %p436 = scmp.lt.s32.totalorder %s433, 31
      %s437 = scalar_select %p436, %s433, 31
      %s438 = smul.addr %s435, 32
      %s439 = sadd.s32 %s437, %s438
      %s440 = smul.addr %s439, 4
      %s441 = scalar_lea.vmem %s2, %s440
      %s442 = smul.u32 %s23, 16
      %s443 = sadd.s32 %s442, 16
      %p444 = scmp.lt.s32.totalorder %s443, 15
      %s445 = scalar_select %p444, %s443, 15
      %s446 = smul.u32 2, %s445
      %p447 = scmp.lt.s32.totalorder %s24, 0
      %s448 = scalar_select %p447, %s24, 0
      %s449 = smul.addr %s448, 3
      %s450 = smul.addr %s449, 2
      %s451 = scalar_lea.vmem %s4, %s450
      %p452 = scmp.lt.s32.totalorder %s24, 0
      %s453 = scalar_select %p452, %s24, 0
      %s454 = scalar_lea.vmem %s5, %s453
      %s455 = smul.u32 32, %s23
      %p456 = scmp.lt.s32.totalorder %s22, 1
      %s457 = scalar_select %p456, %s22, 1
      %p458 = scmp.lt.s32.totalorder %s455, 31
      %s459 = scalar_select %p458, %s455, 31
      %p460 = scmp.lt.s32.totalorder %s24, 0
      %s461 = scalar_select %p460, %s24, 0
      %s462 = sadd.s32 %s461, %s459
      %s463 = smul.addr %s457, 32
      %s464 = sadd.s32 %s462, %s463
      %s465 = smul.addr %s464, 8
      %s466 = scalar_lea.vmem %s6, %s465
      %s467 = smul.u32 32, %s23
      %v469 = vld [vmem:[%s423] sm:$0xf]
      %v470 = vld [vmem:[%s423 + $0x4] sm:$0xf]
      %v471 = vld [vmem:[%s441] sm:$0xf]
      %v472 = vld [vmem:[%s441 + $0x4] sm:$0xf]
      %p473 = scmp.gt.s32.totalorder %s23, 0
      %s474 = scalar_select %p473, 1, 0
      %s475 = scvt.s32.f32 %s474
      %p477 = scmp.ne.f32.partialorder %s475, %s475
      %s478 = sshrl.u32 %s475, 16
      %s479 = sand.u32 %s478, 1
      %s480 = sadd.s32 32767, %s479
      %s481 = sadd.s32 %s475, %s480
      %s482 = sand.u32 %s481, 4294901760
      %s483 = scalar_select %p477, 2143289344, %s482
      %s485 = sshrl.u32 %s483, 16
      %s486 = sshll.u32 %s485, 16
      %s487 = sor.u32 %s485, %s486
      %v488 = vstv %s487
      %v490 = vmul.bf16 %v469, %v488
      %v491 = vmul.bf16 %v470, %v488
      %p492 = scmp.lt.s32.totalorder %s23, 0
      %s493 = scalar_select %p492, 1, 0
      %s494 = scvt.s32.f32 %s493
      %p496 = scmp.ne.f32.partialorder %s494, %s494
      %s497 = sshrl.u32 %s494, 16
      %s498 = sand.u32 %s497, 1
      %s499 = sadd.s32 32767, %s498
      %s500 = sadd.s32 %s494, %s499
      %s501 = sand.u32 %s500, 4294901760
      %s502 = scalar_select %p496, 2143289344, %s501
      %s504 = sshrl.u32 %s502, 16
      %s505 = sshll.u32 %s504, 16
      %s506 = sor.u32 %s504, %s505
      %v507 = vstv %s506
      %v509 = vmul.bf16 %v471, %v507
      %v510 = vmul.bf16 %v472, %v507
      %v511 = vld [vmem:[%s409] sm:$0xf]
      %v512 = vld [vmem:[%s409 + $0x4] sm:$0xf]
      %v513 = vld [vmem:[%s409 + $0x8] sm:$0xf]
      %v514 = vld [vmem:[%s409 + $0xc] sm:$0xf]
      %v515 = vld [vmem:[%s409 + $0x10] sm:$0xf]
      %v516 = vld [vmem:[%s409 + $0x14] sm:$0xf]
      %v517 = vld [vmem:[%s409 + $0x18] sm:$0xf]
      %v518 = vld [vmem:[%s409 + $0x1c] sm:$0xf]
      %v519 = vld [vmem:[%s409 + $0x20] sm:$0xf]
      %v520 = vld [vmem:[%s409 + $0x24] sm:$0xf]
      %v521 = vld [vmem:[%s409 + $0x28] sm:$0xf]
      %v522 = vld [vmem:[%s409 + $0x2c] sm:$0xf]
      %v523 = vld [vmem:[%s409 + $0x30] sm:$0xf]
      %v524 = vld [vmem:[%s409 + $0x34] sm:$0xf]
      %v525 = vld [vmem:[%s409 + $0x38] sm:$0xf]
      %v526 = vld [vmem:[%s409 + $0x3c] sm:$0xf]
      %v527 = vld [vmem:[%s409 + $0x40] sm:$0xf]
      %v528 = vld [vmem:[%s409 + $0x44] sm:$0xf]
      %v529 = vld [vmem:[%s409 + $0x48] sm:$0xf]
      %v530 = vld [vmem:[%s409 + $0x4c] sm:$0xf]
      %v531 = vld [vmem:[%s409 + $0x50] sm:$0xf]
      %v532 = vld [vmem:[%s409 + $0x54] sm:$0xf]
      %v533 = vld [vmem:[%s409 + $0x58] sm:$0xf]
      %v534 = vld [vmem:[%s409 + $0x5c] sm:$0xf]
      %v535 = vld [vmem:[%s409 + $0x60] sm:$0xf]
      %v536 = vld [vmem:[%s409 + $0x64] sm:$0xf]
      %v537 = vld [vmem:[%s409 + $0x68] sm:$0xf]
      %v538 = vld [vmem:[%s409 + $0x6c] sm:$0xf]
      %v539 = vld [vmem:[%s409 + $0x70] sm:$0xf]
      %v540 = vld [vmem:[%s409 + $0x74] sm:$0xf]
      %v541 = vld [vmem:[%s409 + $0x78] sm:$0xf]
      %v542 = vld [vmem:[%s409 + $0x7c] sm:$0xf]
      %v545 = vunpack.c.l.b16 %v490
      %v546 = vunpack.c.l.b16 %v491
      %v547 = vpack.c.b16 %v546, %v545
      %v580 = vunpack.c.l.b16 %v511
      %v581 = vunpack.c.l.b16 %v512
      %v582 = vunpack.c.l.b16 %v513
      %v583 = vunpack.c.l.b16 %v514
      %v584 = vunpack.c.l.b16 %v515
      %v585 = vunpack.c.l.b16 %v516
      %v586 = vunpack.c.l.b16 %v517
      %v587 = vunpack.c.l.b16 %v518
      %v588 = vunpack.c.l.b16 %v519
      %v589 = vunpack.c.l.b16 %v520
      %v590 = vunpack.c.l.b16 %v521
      %v591 = vunpack.c.l.b16 %v522
      %v592 = vunpack.c.l.b16 %v523
      %v593 = vunpack.c.l.b16 %v524
      %v594 = vunpack.c.l.b16 %v525
      %v595 = vunpack.c.l.b16 %v526
      %v596 = vunpack.c.l.b16 %v527
      %v597 = vunpack.c.l.b16 %v528
      %v598 = vunpack.c.l.b16 %v529
      %v599 = vunpack.c.l.b16 %v530
      %v600 = vunpack.c.l.b16 %v531
      %v601 = vunpack.c.l.b16 %v532
      %v602 = vunpack.c.l.b16 %v533
      %v603 = vunpack.c.l.b16 %v534
      %v604 = vunpack.c.l.b16 %v535
      %v605 = vunpack.c.l.b16 %v536
      %v606 = vunpack.c.l.b16 %v537
      %v607 = vunpack.c.l.b16 %v538
      %v608 = vunpack.c.l.b16 %v539
      %v609 = vunpack.c.l.b16 %v540
      %v610 = vunpack.c.l.b16 %v541
      %v611 = vunpack.c.l.b16 %v542
      %v612 = vpack.c.b16 %v581, %v580
      %v613 = vpack.c.b16 %v583, %v582
      %v614 = vpack.c.b16 %v585, %v584
      %v615 = vpack.c.b16 %v587, %v586
      %v616 = vpack.c.b16 %v589, %v588
      %v617 = vpack.c.b16 %v591, %v590
      %v618 = vpack.c.b16 %v593, %v592
      %v619 = vpack.c.b16 %v595, %v594
      %v620 = vpack.c.b16 %v597, %v596
      %v621 = vpack.c.b16 %v599, %v598
      %v622 = vpack.c.b16 %v601, %v600
      %v623 = vpack.c.b16 %v603, %v602
      %v624 = vpack.c.b16 %v605, %v604
      %v625 = vpack.c.b16 %v607, %v606
      %v626 = vpack.c.b16 %v609, %v608
      %v627 = vpack.c.b16 %v611, %v610
      %v630 = vunpack.c.l.b16 %v509
      %v631 = vunpack.c.l.b16 %v510
      %v632 = vpack.c.b16 %v631, %v630
      %v633 = vld [vmem:[%s3] sm:$0xff]
      %v634 = vld [vmem:[%s3 + $0x8] sm:$0xff]
      %v635 = vld [vmem:[%s3 + $0x10] sm:$0xff]
      %v636 = vld [vmem:[%s3 + $0x18] sm:$0xff]
      %v637 = vld [vmem:[%s3 + $0x20] sm:$0xff]
      %v638 = vld [vmem:[%s3 + $0x28] sm:$0xff]
      %v639 = vld [vmem:[%s3 + $0x30] sm:$0xff]
      %v640 = vld [vmem:[%s3 + $0x38] sm:$0xff]
      %v641 = vld [vmem:[%s3 + $0x40] sm:$0xff]
      %v642 = vld [vmem:[%s3 + $0x48] sm:$0xff]
      %v643 = vld [vmem:[%s3 + $0x50] sm:$0xff]
      %v644 = vld [vmem:[%s3 + $0x58] sm:$0xff]
      %v645 = vld [vmem:[%s3 + $0x60] sm:$0xff]
      %v646 = vld [vmem:[%s3 + $0x68] sm:$0xff]
      %v647 = vld [vmem:[%s3 + $0x70] sm:$0xff]
      %v648 = vld [vmem:[%s3 + $0x78] sm:$0xff]
      %v649 = vld [vmem:[%s3 + $0x80] sm:$0xff]
      %v650 = vld [vmem:[%s3 + $0x88] sm:$0xff]
      %v651 = vld [vmem:[%s3 + $0x90] sm:$0xff]
      %v652 = vld [vmem:[%s3 + $0x98] sm:$0xff]
      %v653 = vld [vmem:[%s3 + $0xa0] sm:$0xff]
      %v654 = vld [vmem:[%s3 + $0xa8] sm:$0xff]
      %v655 = vld [vmem:[%s3 + $0xb0] sm:$0xff]
      %v656 = vld [vmem:[%s3 + $0xb8] sm:$0xff]
      %v657 = vld [vmem:[%s3 + $0xc0] sm:$0xff]
      %v658 = vld [vmem:[%s3 + $0xc8] sm:$0xff]
      %v659 = vld [vmem:[%s3 + $0xd0] sm:$0xff]
      %v660 = vld [vmem:[%s3 + $0xd8] sm:$0xff]
      %v661 = vld [vmem:[%s3 + $0xe0] sm:$0xff]
      %v662 = vld [vmem:[%s3 + $0xe8] sm:$0xff]
      %v663 = vld [vmem:[%s3 + $0xf0] sm:$0xff]
      %v664 = vld [vmem:[%s3 + $0xf8] sm:$0xff]
      %v665 = vld [vmem:[%s454] sm:$0x1]
      %v667 = vlaneseq
      %v668 = vshrl.u32 %v667, 7
      %v669 = vsub.s32 0, %v668
      %v670 = vrot.slane %v665, %v669
      %v672 = vld [vmem:[%s451] sm:$0x3f]
      %v674 = vcombine.high %v672, %v672
      %v676 = vunpack.c.l.s4 1983009808
      %v677 = vunpack.c.0.s8 %v676
      %v678 = vlaneseq
      %v679 = vshrl.u32 %v678, 7
      %v680 = vsub.s32 %v677, %v679
      %v681 = vrot.slane %v672, %v680
      %v683 = vunpack.c.l.s4 1983009808
      %v684 = vunpack.c.0.s8 %v683
      %v685 = vlaneseq
      %v686 = vshrl.u32 %v685, 7
      %v687 = vsub.s32 %v684, %v686
      %v688 = vrot.slane %v674, %v687
      %v689 = vcombine.high %v681, %v681
      %vm690 = vcmask 31744
      %v692 = vsel %vm690, %v547, 0
      %v695 = vsel %vm690, %v612, 0
      %v698 = vsel %vm690, %v613, 0
      %v701 = vsel %vm690, %v614, 0
      %v704 = vsel %vm690, %v615, 0
      %v707 = vsel %vm690, %v616, 0
      %v710 = vsel %vm690, %v617, 0
      %v713 = vsel %vm690, %v618, 0
      %v716 = vsel %vm690, %v619, 0
      %v719 = vsel %vm690, %v620, 0
      %v722 = vsel %vm690, %v621, 0
      %v725 = vsel %vm690, %v622, 0
      %v728 = vsel %vm690, %v623, 0
      %v731 = vsel %vm690, %v624, 0
      %v734 = vsel %vm690, %v625, 0
      %v737 = vsel %vm690, %v626, 0
      %vm739 = vcmask 1041408
      %v741 = vsel %vm739, %v681, 0
      %v744 = vsel %vm739, %v689, 0
      %v747 = vsel %vm739, %v688, 0
      %749 = vmatprep.subr.bf16.mxu0 %v744
      %750 = vmatpush1.bf16.msra.mxu0 %v741
      %751 = vmatprep.subr.bf16.mxu0 0
      %752 = vmatpush1.bf16.msra.mxu0 0
      %753 = vmatprep.subr.bf16.mxu0 0
      %754 = vmatpush1.bf16.msra.mxu0 0
      %755 = vmatprep.subr.bf16.mxu0 0
      %756 = vmatpush1.bf16.msra.mxu0 0
      %757 = vmatprep.subr.bf16.mxu0 0
      %758 = vmatpush1.bf16.msra.mxu0 0
      %759 = vmatprep.subr.bf16.mxu0 0
      %760 = vmatpush1.bf16.msra.mxu0 0
      %761 = vmatprep.subr.bf16.mxu0 0
      %762 = vmatpush1.bf16.msra.mxu0 0
      %763 = vmatprep.subr.bf16.mxu0 0
      %764 = vmatpush1.bf16.msra.mxu0 0
      %765 = vmatprep.subr.bf16.mxu0 0
      %766 = vmatpush1.bf16.msra.mxu0 0
      %767 = vmatprep.subr.bf16.mxu0 0
      %768 = vmatpush1.bf16.msra.mxu0 0
      %769 = vmatprep.subr.bf16.mxu0 0
      %770 = vmatpush1.bf16.msra.mxu0 0
      %771 = vmatprep.subr.bf16.mxu0 0
      %772 = vmatpush1.bf16.msra.mxu0 0
      %773 = vmatprep.subr.bf16.mxu0 0
      %774 = vmatpush1.bf16.msra.mxu0 0
      %775 = vmatprep.subr.bf16.mxu0 0
      %776 = vmatpush1.bf16.msra.mxu0 0
      %777 = vmatprep.subr.bf16.mxu0 0
      %778 = vmatpush1.bf16.msra.mxu0 0
      %779 = vmatprep.subr.bf16.mxu0 0
      %780 = vmatpush1.bf16.msra.mxu0 0
      %781 = vmatprep.mubr.bf16.mxu0 0
      %782 = vmatmul.mubr.bf16.gmra.mrb[0].mxu0 %v692
      %v783 = vpop.f32.mrb[0].mxu0
      %v784 = vadd.f32 0.0, %v783
      %v785 = vpop.f32.mrb[0].mxu0
      %v786 = vadd.f32 0.0, %v785
      %v787 = vpop.f32.mrb[0].mxu0
      %v788 = vadd.f32 0.0, %v787
      %v789 = vpop.f32.mrb[0].mxu0
      %v790 = vadd.f32 0.0, %v789
      %791 = vmatprep.mubr.bf16.mxu0 0
      %792 = vmatmul.mubr.bf16.gmra.mrb[0].mxu0 %v695
      %v793 = vpop.f32.mrb[0].mxu0
      %v794 = vadd.f32 0.0, %v793
      %v795 = vpop.f32.mrb[0].mxu0
      %v796 = vadd.f32 0.0, %v795
      %v797 = vpop.f32.mrb[0].mxu0
      %v798 = vadd.f32 0.0, %v797
      %v799 = vpop.f32.mrb[0].mxu0
      %v800 = vadd.f32 0.0, %v799
      %801 = vmatprep.mubr.bf16.mxu0 0
      %802 = vmatmul.mubr.bf16.gmra.mrb[0].mxu0 %v698
      %v803 = vpop.f32.mrb[0].mxu0
      %v804 = vadd.f32 0.0, %v803
      %v805 = vpop.f32.mrb[0].mxu0
      %v806 = vadd.f32 0.0, %v805
      %v807 = vpop.f32.mrb[0].mxu0
      %v808 = vadd.f32 0.0, %v807
      %v809 = vpop.f32.mrb[0].mxu0
      %v810 = vadd.f32 0.0, %v809
      %811 = vmatprep.mubr.bf16.mxu0 0
      %812 = vmatmul.mubr.bf16.gmra.mrb[0].mxu0 %v701
      %v813 = vpop.f32.mrb[0].mxu0
      %v814 = vadd.f32 0.0, %v813
      %v815 = vpop.f32.mrb[0].mxu0
      %v816 = vadd.f32 0.0, %v815
      %v817 = vpop.f32.mrb[0].mxu0
      %v818 = vadd.f32 0.0, %v817
      %v819 = vpop.f32.mrb[0].mxu0
      %v820 = vadd.f32 0.0, %v819
      %821 = vmatprep.mubr.bf16.mxu0 0
      %822 = vmatmul.mubr.bf16.gmra.mrb[0].mxu0 %v704
      %v823 = vpop.f32.mrb[0].mxu0
      %v824 = vadd.f32 0.0, %v823
      %v825 = vpop.f32.mrb[0].mxu0
      %v826 = vadd.f32 0.0, %v825
      %v827 = vpop.f32.mrb[0].mxu0
      %v828 = vadd.f32 0.0, %v827
      %v829 = vpop.f32.mrb[0].mxu0
      %v830 = vadd.f32 0.0, %v829
      %831 = vmatprep.mubr.bf16.mxu0 0
      %832 = vmatmul.mubr.bf16.gmra.mrb[0].mxu0 %v707
      %v833 = vpop.f32.mrb[0].mxu0
      %v834 = vadd.f32 0.0, %v833
      %v835 = vpop.f32.mrb[0].mxu0
      %v836 = vadd.f32 0.0, %v835
      %v837 = vpop.f32.mrb[0].mxu0
      %v838 = vadd.f32 0.0, %v837
      %v839 = vpop.f32.mrb[0].mxu0
      %v840 = vadd.f32 0.0, %v839
      %841 = vmatprep.mubr.bf16.mxu0 0
      %842 = vmatmul.mubr.bf16.gmra.mrb[0].mxu0 %v710
      %v843 = vpop.f32.mrb[0].mxu0
      %v844 = vadd.f32 0.0, %v843
      %v845 = vpop.f32.mrb[0].mxu0
      %v846 = vadd.f32 0.0, %v845
      %v847 = vpop.f32.mrb[0].mxu0
      %v848 = vadd.f32 0.0, %v847
      %v849 = vpop.f32.mrb[0].mxu0
      %v850 = vadd.f32 0.0, %v849
      %851 = vmatprep.mubr.bf16.mxu0 0
      %852 = vmatmul.mubr.bf16.gmra.mrb[0].mxu0 %v713
      %v853 = vpop.f32.mrb[0].mxu0
      %v854 = vadd.f32 0.0, %v853
      %v855 = vpop.f32.mrb[0].mxu0
      %v856 = vadd.f32 0.0, %v855
      %v857 = vpop.f32.mrb[0].mxu0
      %v858 = vadd.f32 0.0, %v857
      %v859 = vpop.f32.mrb[0].mxu0
      %v860 = vadd.f32 0.0, %v859
      %861 = vmatprep.mubr.bf16.mxu0 0
      %862 = vmatmul.mubr.bf16.gmra.mrb[0].mxu0 %v716
      %v863 = vpop.f32.mrb[0].mxu0
      %v864 = vadd.f32 0.0, %v863
      %v865 = vpop.f32.mrb[0].mxu0
      %v866 = vadd.f32 0.0, %v865
      %v867 = vpop.f32.mrb[0].mxu0
      %v868 = vadd.f32 0.0, %v867
      %v869 = vpop.f32.mrb[0].mxu0
      %v870 = vadd.f32 0.0, %v869
      %871 = vmatprep.mubr.bf16.mxu0 0
      %872 = vmatmul.mubr.bf16.gmra.mrb[0].mxu0 %v719
      %v873 = vpop.f32.mrb[0].mxu0
      %v874 = vadd.f32 0.0, %v873
      %v875 = vpop.f32.mrb[0].mxu0
      %v876 = vadd.f32 0.0, %v875
      %v877 = vpop.f32.mrb[0].mxu0
      %v878 = vadd.f32 0.0, %v877
      %v879 = vpop.f32.mrb[0].mxu0
      %v880 = vadd.f32 0.0, %v879
      %881 = vmatprep.mubr.bf16.mxu0 0
      %882 = vmatmul.mubr.bf16.gmra.mrb[0].mxu0 %v722
      %v883 = vpop.f32.mrb[0].mxu0
      %v884 = vadd.f32 0.0, %v883
      %v885 = vpop.f32.mrb[0].mxu0
      %v886 = vadd.f32 0.0, %v885
      %v887 = vpop.f32.mrb[0].mxu0
      %v888 = vadd.f32 0.0, %v887
      %v889 = vpop.f32.mrb[0].mxu0
      %v890 = vadd.f32 0.0, %v889
      %891 = vmatprep.mubr.bf16.mxu0 0
      %892 = vmatmul.mubr.bf16.gmra.mrb[0].mxu0 %v725
      %v893 = vpop.f32.mrb[0].mxu0
      %v894 = vadd.f32 0.0, %v893
      %v895 = vpop.f32.mrb[0].mxu0
      %v896 = vadd.f32 0.0, %v895
      %v897 = vpop.f32.mrb[0].mxu0
      %v898 = vadd.f32 0.0, %v897
      %v899 = vpop.f32.mrb[0].mxu0
      %v900 = vadd.f32 0.0, %v899
      %901 = vmatprep.mubr.bf16.mxu0 0
      %902 = vmatmul.mubr.bf16.gmra.mrb[0].mxu0 %v728
      %v903 = vpop.f32.mrb[0].mxu0
      %v904 = vadd.f32 0.0, %v903
      %v905 = vpop.f32.mrb[0].mxu0
      %v906 = vadd.f32 0.0, %v905
      %v907 = vpop.f32.mrb[0].mxu0
      %v908 = vadd.f32 0.0, %v907
      %v909 = vpop.f32.mrb[0].mxu0
      %v910 = vadd.f32 0.0, %v909
      %911 = vmatprep.mubr.bf16.mxu0 0
      %912 = vmatmul.mubr.bf16.gmra.mrb[0].mxu0 %v731
      %v913 = vpop.f32.mrb[0].mxu0
      %v914 = vadd.f32 0.0, %v913
      %v915 = vpop.f32.mrb[0].mxu0
      %v916 = vadd.f32 0.0, %v915
      %v917 = vpop.f32.mrb[0].mxu0
      %v918 = vadd.f32 0.0, %v917
      %v919 = vpop.f32.mrb[0].mxu0
      %v920 = vadd.f32 0.0, %v919
      %921 = vmatprep.mubr.bf16.mxu0 0
      %922 = vmatmul.mubr.bf16.gmra.mrb[0].mxu0 %v734
      %v923 = vpop.f32.mrb[0].mxu0
      %v924 = vadd.f32 0.0, %v923
      %v925 = vpop.f32.mrb[0].mxu0
      %v926 = vadd.f32 0.0, %v925
      %v927 = vpop.f32.mrb[0].mxu0
      %v928 = vadd.f32 0.0, %v927
      %v929 = vpop.f32.mrb[0].mxu0
      %v930 = vadd.f32 0.0, %v929
      %931 = vmatprep.mubr.bf16.mxu0 0
      %932 = vmatmul.mubr.bf16.gmra.mrb[0].mxu0 %v737
      %v933 = vpop.f32.mrb[0].mxu0
      %v934 = vadd.f32 0.0, %v933
      %v935 = vpop.f32.mrb[0].mxu0
      %v936 = vadd.f32 0.0, %v935
      %v937 = vpop.f32.mrb[0].mxu0
      %v938 = vadd.f32 0.0, %v937
      %v939 = vpop.f32.mrb[0].mxu0
      %v940 = vadd.f32 0.0, %v939
      %941 = vdwg.mxu0
      %942 = vmatprep.subr.bf16.mxu0 0
      %943 = vmatpush1.bf16.msra.mxu0 %v747
      %944 = vmatprep.subr.bf16.mxu0 0
      %945 = vmatpush1.bf16.msra.mxu0 0
      %946 = vmatprep.subr.bf16.mxu0 0
      %947 = vmatpush1.bf16.msra.mxu0 0
      %948 = vmatprep.subr.bf16.mxu0 0
      %949 = vmatpush1.bf16.msra.mxu0 0
      %950 = vmatprep.subr.bf16.mxu0 0
      %951 = vmatpush1.bf16.msra.mxu0 0
      %952 = vmatprep.subr.bf16.mxu0 0
      %953 = vmatpush1.bf16.msra.mxu0 0
      %954 = vmatprep.subr.bf16.mxu0 0
      %955 = vmatpush1.bf16.msra.mxu0 0
      %956 = vmatprep.subr.bf16.mxu0 0
      %957 = vmatpush1.bf16.msra.mxu0 0
      %958 = vmatprep.subr.bf16.mxu0 0
      %959 = vmatpush1.bf16.msra.mxu0 0
      %960 = vmatprep.subr.bf16.mxu0 0
      %961 = vmatpush1.bf16.msra.mxu0 0
      %962 = vmatprep.subr.bf16.mxu0 0
      %963 = vmatpush1.bf16.msra.mxu0 0
      %964 = vmatprep.subr.bf16.mxu0 0
      %965 = vmatpush1.bf16.msra.mxu0 0
      %966 = vmatprep.subr.bf16.mxu0 0
      %967 = vmatpush1.bf16.msra.mxu0 0
      %968 = vmatprep.subr.bf16.mxu0 0
      %969 = vmatpush1.bf16.msra.mxu0 0
      %970 = vmatprep.subr.bf16.mxu0 0
      %971 = vmatpush1.bf16.msra.mxu0 0
      %972 = vmatprep.subr.bf16.mxu0 0
      %973 = vmatpush1.bf16.msra.mxu0 0
      %974 = vmatprep.mubr.bf16.mxu0 0
      %975 = vmatmul.mubr.bf16.gmra.mrb[0].mxu0 %v692
      %v976 = vpop.f32.mrb[0].mxu0
      %v977 = vadd.f32 0.0, %v976
      %v978 = vpop.f32.mrb[0].mxu0
      %v979 = vpop.f32.mrb[0].mxu0
      %v980 = vadd.f32 0.0, %v979
      %v981 = vpop.f32.mrb[0].mxu0
      %982 = vmatprep.mubr.bf16.mxu0 0
      %983 = vmatmul.mubr.bf16.gmra.mrb[0].mxu0 %v695
      %v984 = vpop.f32.mrb[0].mxu0
      %v985 = vadd.f32 0.0, %v984
      %v986 = vpop.f32.mrb[0].mxu0
      %v987 = vpop.f32.mrb[0].mxu0
      %v988 = vadd.f32 0.0, %v987
      %v989 = vpop.f32.mrb[0].mxu0
      %990 = vmatprep.mubr.bf16.mxu0 0
      %991 = vmatmul.mubr.bf16.gmra.mrb[0].mxu0 %v698
      %v992 = vpop.f32.mrb[0].mxu0
      %v993 = vadd.f32 0.0, %v992
      %v994 = vpop.f32.mrb[0].mxu0
      %v995 = vpop.f32.mrb[0].mxu0
      %v996 = vadd.f32 0.0, %v995
      %v997 = vpop.f32.mrb[0].mxu0
      %998 = vmatprep.mubr.bf16.mxu0 0
      %999 = vmatmul.mubr.bf16.gmra.mrb[0].mxu0 %v701
      %v1000 = vpop.f32.mrb[0].mxu0
      %v1001 = vadd.f32 0.0, %v1000
      %v1002 = vpop.f32.mrb[0].mxu0
      %v1003 = vpop.f32.mrb[0].mxu0
      %v1004 = vadd.f32 0.0, %v1003
      %v1005 = vpop.f32.mrb[0].mxu0
      %1006 = vmatprep.mubr.bf16.mxu0 0
      %1007 = vmatmul.mubr.bf16.gmra.mrb[0].mxu0 %v704
      %v1008 = vpop.f32.mrb[0].mxu0
      %v1009 = vadd.f32 0.0, %v1008
      %v1010 = vpop.f32.mrb[0].mxu0
      %v1011 = vpop.f32.mrb[0].mxu0
      %v1012 = vadd.f32 0.0, %v1011
      %v1013 = vpop.f32.mrb[0].mxu0
      %1014 = vmatprep.mubr.bf16.mxu0 0
      %1015 = vmatmul.mubr.bf16.gmra.mrb[0].mxu0 %v707
      %v1016 = vpop.f32.mrb[0].mxu0
      %v1017 = vadd.f32 0.0, %v1016
      %v1018 = vpop.f32.mrb[0].mxu0
      %v1019 = vpop.f32.mrb[0].mxu0
      %v1020 = vadd.f32 0.0, %v1019
      %v1021 = vpop.f32.mrb[0].mxu0
      %1022 = vmatprep.mubr.bf16.mxu0 0
      %1023 = vmatmul.mubr.bf16.gmra.mrb[0].mxu0 %v710
      %v1024 = vpop.f32.mrb[0].mxu0
      %v1025 = vadd.f32 0.0, %v1024
      %v1026 = vpop.f32.mrb[0].mxu0
      %v1027 = vpop.f32.mrb[0].mxu0
      %v1028 = vadd.f32 0.0, %v1027
      %v1029 = vpop.f32.mrb[0].mxu0
      %1030 = vmatprep.mubr.bf16.mxu0 0
      %1031 = vmatmul.mubr.bf16.gmra.mrb[0].mxu0 %v713
      %v1032 = vpop.f32.mrb[0].mxu0
      %v1033 = vadd.f32 0.0, %v1032
      %v1034 = vpop.f32.mrb[0].mxu0
      %v1035 = vpop.f32.mrb[0].mxu0
      %v1036 = vadd.f32 0.0, %v1035
      %v1037 = vpop.f32.mrb[0].mxu0
      %1038 = vmatprep.mubr.bf16.mxu0 0
      %1039 = vmatmul.mubr.bf16.gmra.mrb[0].mxu0 %v716
      %v1040 = vpop.f32.mrb[0].mxu0
      %v1041 = vadd.f32 0.0, %v1040
      %v1042 = vpop.f32.mrb[0].mxu0
      %v1043 = vpop.f32.mrb[0].mxu0
      %v1044 = vadd.f32 0.0, %v1043
      %v1045 = vpop.f32.mrb[0].mxu0
      %1046 = vmatprep.mubr.bf16.mxu0 0
      %1047 = vmatmul.mubr.bf16.gmra.mrb[0].mxu0 %v719
      %v1048 = vpop.f32.mrb[0].mxu0
      %v1049 = vadd.f32 0.0, %v1048
      %v1050 = vpop.f32.mrb[0].mxu0
      %v1051 = vpop.f32.mrb[0].mxu0
      %v1052 = vadd.f32 0.0, %v1051
      %v1053 = vpop.f32.mrb[0].mxu0
      %1054 = vmatprep.mubr.bf16.mxu0 0
      %1055 = vmatmul.mubr.bf16.gmra.mrb[0].mxu0 %v722
      %v1056 = vpop.f32.mrb[0].mxu0
      %v1057 = vadd.f32 0.0, %v1056
      %v1058 = vpop.f32.mrb[0].mxu0
      %v1059 = vpop.f32.mrb[0].mxu0
      %v1060 = vadd.f32 0.0, %v1059
      %v1061 = vpop.f32.mrb[0].mxu0
      %1062 = vmatprep.mubr.bf16.mxu0 0
      %1063 = vmatmul.mubr.bf16.gmra.mrb[0].mxu0 %v725
      %v1064 = vpop.f32.mrb[0].mxu0
      %v1065 = vadd.f32 0.0, %v1064
      %v1066 = vpop.f32.mrb[0].mxu0
      %v1067 = vpop.f32.mrb[0].mxu0
      %v1068 = vadd.f32 0.0, %v1067
      %v1069 = vpop.f32.mrb[0].mxu0
      %1070 = vmatprep.mubr.bf16.mxu0 0
      %1071 = vmatmul.mubr.bf16.gmra.mrb[0].mxu0 %v728
      %v1072 = vpop.f32.mrb[0].mxu0
      %v1073 = vadd.f32 0.0, %v1072
      %v1074 = vpop.f32.mrb[0].mxu0
      %v1075 = vpop.f32.mrb[0].mxu0
      %v1076 = vadd.f32 0.0, %v1075
      %v1077 = vpop.f32.mrb[0].mxu0
      %1078 = vmatprep.mubr.bf16.mxu0 0
      %1079 = vmatmul.mubr.bf16.gmra.mrb[0].mxu0 %v731
      %v1080 = vpop.f32.mrb[0].mxu0
      %v1081 = vadd.f32 0.0, %v1080
      %v1082 = vpop.f32.mrb[0].mxu0
      %v1083 = vpop.f32.mrb[0].mxu0
      %v1084 = vadd.f32 0.0, %v1083
      %v1085 = vpop.f32.mrb[0].mxu0
      %1086 = vmatprep.mubr.bf16.mxu0 0
      %1087 = vmatmul.mubr.bf16.gmra.mrb[0].mxu0 %v734
      %v1088 = vpop.f32.mrb[0].mxu0
      %v1089 = vadd.f32 0.0, %v1088
      %v1090 = vpop.f32.mrb[0].mxu0
      %v1091 = vpop.f32.mrb[0].mxu0
      %v1092 = vadd.f32 0.0, %v1091
      %v1093 = vpop.f32.mrb[0].mxu0
      %1094 = vmatprep.mubr.bf16.mxu0 0
      %1095 = vmatmul.mubr.bf16.gmra.mrb[0].mxu0 %v737
      %v1096 = vpop.f32.mrb[0].mxu0
      %v1097 = vadd.f32 0.0, %v1096
      %v1098 = vpop.f32.mrb[0].mxu0
      %v1099 = vpop.f32.mrb[0].mxu0
      %v1100 = vadd.f32 0.0, %v1099
      %v1101 = vpop.f32.mrb[0].mxu0
      %1102 = vdwg.mxu0
      %v1103 = vadd.f32 %v670, %v786
      %v1104 = vadd.f32 %v670, %v790
      %v1105 = vadd.f32 %v670, %v796
      %v1106 = vadd.f32 %v670, %v800
      %v1107 = vadd.f32 %v670, %v806
      %v1108 = vadd.f32 %v670, %v810
      %v1109 = vadd.f32 %v670, %v816
      %v1110 = vadd.f32 %v670, %v820
      %v1111 = vadd.f32 %v670, %v826
      %v1112 = vadd.f32 %v670, %v830
      %v1113 = vadd.f32 %v670, %v836
      %v1114 = vadd.f32 %v670, %v840
      %v1115 = vadd.f32 %v670, %v846
      %v1116 = vadd.f32 %v670, %v850
      %v1117 = vadd.f32 %v670, %v856
      %v1118 = vadd.f32 %v670, %v860
      %v1119 = vadd.f32 %v670, %v866
      %v1120 = vadd.f32 %v670, %v870
      %v1121 = vadd.f32 %v670, %v876
      %v1122 = vadd.f32 %v670, %v880
      %v1123 = vadd.f32 %v670, %v886
      %v1124 = vadd.f32 %v670, %v890
      %v1125 = vadd.f32 %v670, %v896
      %v1126 = vadd.f32 %v670, %v900
      %v1127 = vadd.f32 %v670, %v906
      %v1128 = vadd.f32 %v670, %v910
      %v1129 = vadd.f32 %v670, %v916
      %v1130 = vadd.f32 %v670, %v920
      %v1131 = vadd.f32 %v670, %v926
      %v1132 = vadd.f32 %v670, %v930
      %v1133 = vadd.f32 %v670, %v936
      %v1134 = vadd.f32 %v670, %v940
      %vm1167 = vcmask 1040384
      %v1168 = vrot.slane %v784, 7
      %v1169 = vrot.slane %v788, 7
      %v1170 = vsel %vm1167, %v1168, %v1169
      %v1171 = vrot.slane %v794, 7
      %v1172 = vsel %vm1167, %v1169, %v1171
      %v1173 = vrot.slane %v798, 7
      %v1174 = vsel %vm1167, %v1171, %v1173
      %v1175 = vrot.slane %v804, 7
      %v1176 = vsel %vm1167, %v1173, %v1175
      %v1177 = vrot.slane %v808, 7
      %v1178 = vsel %vm1167, %v1175, %v1177
      %v1179 = vrot.slane %v814, 7
      %v1180 = vsel %vm1167, %v1177, %v1179
      %v1181 = vrot.slane %v818, 7
      %v1182 = vsel %vm1167, %v1179, %v1181
      %v1183 = vrot.slane %v824, 7
      %v1184 = vsel %vm1167, %v1181, %v1183
      %v1185 = vrot.slane %v828, 7
      %v1186 = vsel %vm1167, %v1183, %v1185
      %v1187 = vrot.slane %v834, 7
      %v1188 = vsel %vm1167, %v1185, %v1187
      %v1189 = vrot.slane %v838, 7
      %v1190 = vsel %vm1167, %v1187, %v1189
      %v1191 = vrot.slane %v844, 7
      %v1192 = vsel %vm1167, %v1189, %v1191
      %v1193 = vrot.slane %v848, 7
      %v1194 = vsel %vm1167, %v1191, %v1193
      %v1195 = vrot.slane %v854, 7
      %v1196 = vsel %vm1167, %v1193, %v1195
      %v1197 = vrot.slane %v858, 7
      %v1198 = vsel %vm1167, %v1195, %v1197
      %v1199 = vrot.slane %v864, 7
      %v1200 = vsel %vm1167, %v1197, %v1199
      %v1201 = vrot.slane %v868, 7
      %v1202 = vsel %vm1167, %v1199, %v1201
      %v1203 = vrot.slane %v874, 7
      %v1204 = vsel %vm1167, %v1201, %v1203
      %v1205 = vrot.slane %v878, 7
      %v1206 = vsel %vm1167, %v1203, %v1205
      %v1207 = vrot.slane %v884, 7
      %v1208 = vsel %vm1167, %v1205, %v1207
      %v1209 = vrot.slane %v888, 7
      %v1210 = vsel %vm1167, %v1207, %v1209
      %v1211 = vrot.slane %v894, 7
      %v1212 = vsel %vm1167, %v1209, %v1211
      %v1213 = vrot.slane %v898, 7
      %v1214 = vsel %vm1167, %v1211, %v1213
      %v1215 = vrot.slane %v904, 7
      %v1216 = vsel %vm1167, %v1213, %v1215
      %v1217 = vrot.slane %v908, 7
      %v1218 = vsel %vm1167, %v1215, %v1217
      %v1219 = vrot.slane %v914, 7
      %v1220 = vsel %vm1167, %v1217, %v1219
      %v1221 = vrot.slane %v918, 7
      %v1222 = vsel %vm1167, %v1219, %v1221
      %v1223 = vrot.slane %v924, 7
      %v1224 = vsel %vm1167, %v1221, %v1223
      %v1225 = vrot.slane %v928, 7
      %v1226 = vsel %vm1167, %v1223, %v1225
      %v1227 = vrot.slane %v934, 7
      %v1228 = vsel %vm1167, %v1225, %v1227
      %v1229 = vrot.slane %v938, 7
      %v1230 = vsel %vm1167, %v1227, %v1229
      %v1263 = vsel %vm1167, 0.0, %v1168
      %1265 = vset.pattern.permute.xlu0 0
      %1266 = vperm.xlu0 %1265, %v633
      %v1267 = vpop.permute.xlu0 %1266
      %1270 = vset.pattern.permute.xlu0 0
      %1271 = vperm.xlu0 %1270, %v634
      %v1272 = vpop.permute.xlu0 %1271
      %1275 = vset.pattern.permute.xlu0 0
      %1276 = vperm.xlu0 %1275, %v635
      %v1277 = vpop.permute.xlu0 %1276
      %1280 = vset.pattern.permute.xlu0 0
      %1281 = vperm.xlu0 %1280, %v636
      %v1282 = vpop.permute.xlu0 %1281
      %1285 = vset.pattern.permute.xlu0 0
      %1286 = vperm.xlu0 %1285, %v637
      %v1287 = vpop.permute.xlu0 %1286
      %1290 = vset.pattern.permute.xlu0 0
      %1291 = vperm.xlu0 %1290, %v638
      %v1292 = vpop.permute.xlu0 %1291
      %1295 = vset.pattern.permute.xlu0 0
      %1296 = vperm.xlu0 %1295, %v639
      %v1297 = vpop.permute.xlu0 %1296
      %1300 = vset.pattern.permute.xlu0 0
      %1301 = vperm.xlu0 %1300, %v640
      %v1302 = vpop.permute.xlu0 %1301
      %1305 = vset.pattern.permute.xlu0 0
      %1306 = vperm.xlu0 %1305, %v641
      %v1307 = vpop.permute.xlu0 %1306
      %1310 = vset.pattern.permute.xlu0 0
      %1311 = vperm.xlu0 %1310, %v642
      %v1312 = vpop.permute.xlu0 %1311
      %1315 = vset.pattern.permute.xlu0 0
      %1316 = vperm.xlu0 %1315, %v643
      %v1317 = vpop.permute.xlu0 %1316
      %1320 = vset.pattern.permute.xlu0 0
      %1321 = vperm.xlu0 %1320, %v644
      %v1322 = vpop.permute.xlu0 %1321
      %1325 = vset.pattern.permute.xlu0 0
      %1326 = vperm.xlu0 %1325, %v645
      %v1327 = vpop.permute.xlu0 %1326
      %1330 = vset.pattern.permute.xlu0 0
      %1331 = vperm.xlu0 %1330, %v646
      %v1332 = vpop.permute.xlu0 %1331
      %1335 = vset.pattern.permute.xlu0 0
      %1336 = vperm.xlu0 %1335, %v647
      %v1337 = vpop.permute.xlu0 %1336
      %1340 = vset.pattern.permute.xlu0 0
      %1341 = vperm.xlu0 %1340, %v648
      %v1342 = vpop.permute.xlu0 %1341
      %1345 = vset.pattern.permute.xlu0 0
      %1346 = vperm.xlu0 %1345, %v649
      %v1347 = vpop.permute.xlu0 %1346
      %1350 = vset.pattern.permute.xlu0 0
      %1351 = vperm.xlu0 %1350, %v650
      %v1352 = vpop.permute.xlu0 %1351
      %1355 = vset.pattern.permute.xlu0 0
      %1356 = vperm.xlu0 %1355, %v651
      %v1357 = vpop.permute.xlu0 %1356
      %1360 = vset.pattern.permute.xlu0 0
      %1361 = vperm.xlu0 %1360, %v652
      %v1362 = vpop.permute.xlu0 %1361
      %1365 = vset.pattern.permute.xlu0 0
      %1366 = vperm.xlu0 %1365, %v653
      %v1367 = vpop.permute.xlu0 %1366
      %1370 = vset.pattern.permute.xlu0 0
      %1371 = vperm.xlu0 %1370, %v654
      %v1372 = vpop.permute.xlu0 %1371
      %1375 = vset.pattern.permute.xlu0 0
      %1376 = vperm.xlu0 %1375, %v655
      %v1377 = vpop.permute.xlu0 %1376
      %1380 = vset.pattern.permute.xlu0 0
      %1381 = vperm.xlu0 %1380, %v656
      %v1382 = vpop.permute.xlu0 %1381
      %1385 = vset.pattern.permute.xlu0 0
      %1386 = vperm.xlu0 %1385, %v657
      %v1387 = vpop.permute.xlu0 %1386
      %1390 = vset.pattern.permute.xlu0 0
      %1391 = vperm.xlu0 %1390, %v658
      %v1392 = vpop.permute.xlu0 %1391
      %1395 = vset.pattern.permute.xlu0 0
      %1396 = vperm.xlu0 %1395, %v659
      %v1397 = vpop.permute.xlu0 %1396
      %1400 = vset.pattern.permute.xlu0 0
      %1401 = vperm.xlu0 %1400, %v660
      %v1402 = vpop.permute.xlu0 %1401
      %1405 = vset.pattern.permute.xlu0 0
      %1406 = vperm.xlu0 %1405, %v661
      %v1407 = vpop.permute.xlu0 %1406
      %1410 = vset.pattern.permute.xlu0 0
      %1411 = vperm.xlu0 %1410, %v662
      %v1412 = vpop.permute.xlu0 %1411
      %1415 = vset.pattern.permute.xlu0 0
      %1416 = vperm.xlu0 %1415, %v663
      %v1417 = vpop.permute.xlu0 %1416
      %1420 = vset.pattern.permute.xlu0 0
      %1421 = vperm.xlu0 %1420, %v664
      %v1422 = vpop.permute.xlu0 %1421
      %v1424 = vmul.f32 %v1263, %v1267
      %v1425 = vmul.f32 %v1170, %v1272
      %v1426 = vmul.f32 %v1172, %v1277
      %v1427 = vmul.f32 %v1174, %v1282
      %v1428 = vmul.f32 %v1176, %v1287
      %v1429 = vmul.f32 %v1178, %v1292
      %v1430 = vmul.f32 %v1180, %v1297
      %v1431 = vmul.f32 %v1182, %v1302
      %v1432 = vmul.f32 %v1184, %v1307
      %v1433 = vmul.f32 %v1186, %v1312
      %v1434 = vmul.f32 %v1188, %v1317
      %v1435 = vmul.f32 %v1190, %v1322
      %v1436 = vmul.f32 %v1192, %v1327
      %v1437 = vmul.f32 %v1194, %v1332
      %v1438 = vmul.f32 %v1196, %v1337
      %v1439 = vmul.f32 %v1198, %v1342
      %v1440 = vmul.f32 %v1200, %v1347
      %v1441 = vmul.f32 %v1202, %v1352
      %v1442 = vmul.f32 %v1204, %v1357
      %v1443 = vmul.f32 %v1206, %v1362
      %v1444 = vmul.f32 %v1208, %v1367
      %v1445 = vmul.f32 %v1210, %v1372
      %v1446 = vmul.f32 %v1212, %v1377
      %v1447 = vmul.f32 %v1214, %v1382
      %v1448 = vmul.f32 %v1216, %v1387
      %v1449 = vmul.f32 %v1218, %v1392
      %v1450 = vmul.f32 %v1220, %v1397
      %v1451 = vmul.f32 %v1222, %v1402
      %v1452 = vmul.f32 %v1224, %v1407
      %v1453 = vmul.f32 %v1226, %v1412
      %v1454 = vmul.f32 %v1228, %v1417
      %v1455 = vmul.f32 %v1230, %v1422
      %v1456 = vadd.f32 %v1103, %v1424
      %v1457 = vadd.f32 %v1104, %v1425
      %v1458 = vadd.f32 %v1105, %v1426
      %v1459 = vadd.f32 %v1106, %v1427
      %v1460 = vadd.f32 %v1107, %v1428
      %v1461 = vadd.f32 %v1108, %v1429
      %v1462 = vadd.f32 %v1109, %v1430
      %v1463 = vadd.f32 %v1110, %v1431
      %v1464 = vadd.f32 %v1111, %v1432
      %v1465 = vadd.f32 %v1112, %v1433
      %v1466 = vadd.f32 %v1113, %v1434
      %v1467 = vadd.f32 %v1114, %v1435
      %v1468 = vadd.f32 %v1115, %v1436
      %v1469 = vadd.f32 %v1116, %v1437
      %v1470 = vadd.f32 %v1117, %v1438
      %v1471 = vadd.f32 %v1118, %v1439
      %v1472 = vadd.f32 %v1119, %v1440
      %v1473 = vadd.f32 %v1120, %v1441
      %v1474 = vadd.f32 %v1121, %v1442
      %v1475 = vadd.f32 %v1122, %v1443
      %v1476 = vadd.f32 %v1123, %v1444
      %v1477 = vadd.f32 %v1124, %v1445
      %v1478 = vadd.f32 %v1125, %v1446
      %v1479 = vadd.f32 %v1126, %v1447
      %v1480 = vadd.f32 %v1127, %v1448
      %v1481 = vadd.f32 %v1128, %v1449
      %v1482 = vadd.f32 %v1129, %v1450
      %v1483 = vadd.f32 %v1130, %v1451
      %v1484 = vadd.f32 %v1131, %v1452
      %v1485 = vadd.f32 %v1132, %v1453
      %v1486 = vadd.f32 %v1133, %v1454
      %v1487 = vadd.f32 %v1134, %v1455
      %vm1520 = vcmask 1046528
      %v1521 = vrot.slane %v977, 1
      %v1522 = vrot.slane %v980, 1
      %v1523 = vsel %vm1520, %v1521, %v1522
      %v1524 = vrot.slane %v985, 1
      %v1525 = vsel %vm1520, %v1522, %v1524
      %v1526 = vrot.slane %v988, 1
      %v1527 = vsel %vm1520, %v1524, %v1526
      %v1528 = vrot.slane %v993, 1
      %v1529 = vsel %vm1520, %v1526, %v1528
      %v1530 = vrot.slane %v996, 1
      %v1531 = vsel %vm1520, %v1528, %v1530
      %v1532 = vrot.slane %v1001, 1
      %v1533 = vsel %vm1520, %v1530, %v1532
      %v1534 = vrot.slane %v1004, 1
      %v1535 = vsel %vm1520, %v1532, %v1534
      %v1536 = vrot.slane %v1009, 1
      %v1537 = vsel %vm1520, %v1534, %v1536
      %v1538 = vrot.slane %v1012, 1
      %v1539 = vsel %vm1520, %v1536, %v1538
      %v1540 = vrot.slane %v1017, 1
      %v1541 = vsel %vm1520, %v1538, %v1540
      %v1542 = vrot.slane %v1020, 1
      %v1543 = vsel %vm1520, %v1540, %v1542
      %v1544 = vrot.slane %v1025, 1
      %v1545 = vsel %vm1520, %v1542, %v1544
      %v1546 = vrot.slane %v1028, 1
      %v1547 = vsel %vm1520, %v1544, %v1546
      %v1548 = vrot.slane %v1033, 1
      %v1549 = vsel %vm1520, %v1546, %v1548
      %v1550 = vrot.slane %v1036, 1
      %v1551 = vsel %vm1520, %v1548, %v1550
      %v1552 = vrot.slane %v1041, 1
      %v1553 = vsel %vm1520, %v1550, %v1552
      %v1554 = vrot.slane %v1044, 1
      %v1555 = vsel %vm1520, %v1552, %v1554
      %v1556 = vrot.slane %v1049, 1
      %v1557 = vsel %vm1520, %v1554, %v1556
      %v1558 = vrot.slane %v1052, 1
      %v1559 = vsel %vm1520, %v1556, %v1558
      %v1560 = vrot.slane %v1057, 1
      %v1561 = vsel %vm1520, %v1558, %v1560
      %v1562 = vrot.slane %v1060, 1
      %v1563 = vsel %vm1520, %v1560, %v1562
      %v1564 = vrot.slane %v1065, 1
      %v1565 = vsel %vm1520, %v1562, %v1564
      %v1566 = vrot.slane %v1068, 1
      %v1567 = vsel %vm1520, %v1564, %v1566
      %v1568 = vrot.slane %v1073, 1
      %v1569 = vsel %vm1520, %v1566, %v1568
      %v1570 = vrot.slane %v1076, 1
      %v1571 = vsel %vm1520, %v1568, %v1570
      %v1572 = vrot.slane %v1081, 1
      %v1573 = vsel %vm1520, %v1570, %v1572
      %v1574 = vrot.slane %v1084, 1
      %v1575 = vsel %vm1520, %v1572, %v1574
      %v1576 = vrot.slane %v1089, 1
      %v1577 = vsel %vm1520, %v1574, %v1576
      %v1578 = vrot.slane %v1092, 1
      %v1579 = vsel %vm1520, %v1576, %v1578
      %v1580 = vrot.slane %v1097, 1
      %v1581 = vsel %vm1520, %v1578, %v1580
      %v1582 = vrot.slane %v1100, 1
      %v1583 = vsel %vm1520, %v1580, %v1582
      %v1616 = vsel %vm1520, %v1582, 0.0
      %1617 = vset.pattern.permute.xlu0 1
      %1618 = vperm.xlu0 %1617, %v633
      %v1619 = vpop.permute.xlu0 %1618
      %1621 = vset.pattern.permute.xlu0 1
      %1622 = vperm.xlu0 %1621, %v634
      %v1623 = vpop.permute.xlu0 %1622
      %1625 = vset.pattern.permute.xlu0 1
      %1626 = vperm.xlu0 %1625, %v635
      %v1627 = vpop.permute.xlu0 %1626
      %1629 = vset.pattern.permute.xlu0 1
      %1630 = vperm.xlu0 %1629, %v636
      %v1631 = vpop.permute.xlu0 %1630
      %1633 = vset.pattern.permute.xlu0 1
      %1634 = vperm.xlu0 %1633, %v637
      %v1635 = vpop.permute.xlu0 %1634
      %1637 = vset.pattern.permute.xlu0 1
      %1638 = vperm.xlu0 %1637, %v638
      %v1639 = vpop.permute.xlu0 %1638
      %1641 = vset.pattern.permute.xlu0 1
      %1642 = vperm.xlu0 %1641, %v639
      %v1643 = vpop.permute.xlu0 %1642
      %1645 = vset.pattern.permute.xlu0 1
      %1646 = vperm.xlu0 %1645, %v640
      %v1647 = vpop.permute.xlu0 %1646
      %1649 = vset.pattern.permute.xlu0 1
      %1650 = vperm.xlu0 %1649, %v641
      %v1651 = vpop.permute.xlu0 %1650
      %1653 = vset.pattern.permute.xlu0 1
      %1654 = vperm.xlu0 %1653, %v642
      %v1655 = vpop.permute.xlu0 %1654
      %1657 = vset.pattern.permute.xlu0 1
      %1658 = vperm.xlu0 %1657, %v643
      %v1659 = vpop.permute.xlu0 %1658
      %1661 = vset.pattern.permute.xlu0 1
      %1662 = vperm.xlu0 %1661, %v644
      %v1663 = vpop.permute.xlu0 %1662
      %1665 = vset.pattern.permute.xlu0 1
      %1666 = vperm.xlu0 %1665, %v645
      %v1667 = vpop.permute.xlu0 %1666
      %1669 = vset.pattern.permute.xlu0 1
      %1670 = vperm.xlu0 %1669, %v646
      %v1671 = vpop.permute.xlu0 %1670
      %1673 = vset.pattern.permute.xlu0 1
      %1674 = vperm.xlu0 %1673, %v647
      %v1675 = vpop.permute.xlu0 %1674
      %1677 = vset.pattern.permute.xlu0 1
      %1678 = vperm.xlu0 %1677, %v648
      %v1679 = vpop.permute.xlu0 %1678
      %1681 = vset.pattern.permute.xlu0 1
      %1682 = vperm.xlu0 %1681, %v649
      %v1683 = vpop.permute.xlu0 %1682
      %1685 = vset.pattern.permute.xlu0 1
      %1686 = vperm.xlu0 %1685, %v650
      %v1687 = vpop.permute.xlu0 %1686
      %1689 = vset.pattern.permute.xlu0 1
      %1690 = vperm.xlu0 %1689, %v651
      %v1691 = vpop.permute.xlu0 %1690
      %1693 = vset.pattern.permute.xlu0 1
      %1694 = vperm.xlu0 %1693, %v652
      %v1695 = vpop.permute.xlu0 %1694
      %1697 = vset.pattern.permute.xlu0 1
      %1698 = vperm.xlu0 %1697, %v653
      %v1699 = vpop.permute.xlu0 %1698
      %1701 = vset.pattern.permute.xlu0 1
      %1702 = vperm.xlu0 %1701, %v654
      %v1703 = vpop.permute.xlu0 %1702
      %1705 = vset.pattern.permute.xlu0 1
      %1706 = vperm.xlu0 %1705, %v655
      %v1707 = vpop.permute.xlu0 %1706
      %1709 = vset.pattern.permute.xlu0 1
      %1710 = vperm.xlu0 %1709, %v656
      %v1711 = vpop.permute.xlu0 %1710
      %1713 = vset.pattern.permute.xlu0 1
      %1714 = vperm.xlu0 %1713, %v657
      %v1715 = vpop.permute.xlu0 %1714
      %1717 = vset.pattern.permute.xlu0 1
      %1718 = vperm.xlu0 %1717, %v658
      %v1719 = vpop.permute.xlu0 %1718
      %1721 = vset.pattern.permute.xlu0 1
      %1722 = vperm.xlu0 %1721, %v659
      %v1723 = vpop.permute.xlu0 %1722
      %1725 = vset.pattern.permute.xlu0 1
      %1726 = vperm.xlu0 %1725, %v660
      %v1727 = vpop.permute.xlu0 %1726
      %1729 = vset.pattern.permute.xlu0 1
      %1730 = vperm.xlu0 %1729, %v661
      %v1731 = vpop.permute.xlu0 %1730
      %1733 = vset.pattern.permute.xlu0 1
      %1734 = vperm.xlu0 %1733, %v662
      %v1735 = vpop.permute.xlu0 %1734
      %1737 = vset.pattern.permute.xlu0 1
      %1738 = vperm.xlu0 %1737, %v663
      %v1739 = vpop.permute.xlu0 %1738
      %1741 = vset.pattern.permute.xlu0 1
      %1742 = vperm.xlu0 %1741, %v664
      %v1743 = vpop.permute.xlu0 %1742
      %v1745 = vmul.f32 %v1523, %v1619
      %v1746 = vmul.f32 %v1525, %v1623
      %v1747 = vmul.f32 %v1527, %v1627
      %v1748 = vmul.f32 %v1529, %v1631
      %v1749 = vmul.f32 %v1531, %v1635
      %v1750 = vmul.f32 %v1533, %v1639
      %v1751 = vmul.f32 %v1535, %v1643
      %v1752 = vmul.f32 %v1537, %v1647
      %v1753 = vmul.f32 %v1539, %v1651
      %v1754 = vmul.f32 %v1541, %v1655
      %v1755 = vmul.f32 %v1543, %v1659
      %v1756 = vmul.f32 %v1545, %v1663
      %v1757 = vmul.f32 %v1547, %v1667
      %v1758 = vmul.f32 %v1549, %v1671
      %v1759 = vmul.f32 %v1551, %v1675
      %v1760 = vmul.f32 %v1553, %v1679
      %v1761 = vmul.f32 %v1555, %v1683
      %v1762 = vmul.f32 %v1557, %v1687
      %v1763 = vmul.f32 %v1559, %v1691
      %v1764 = vmul.f32 %v1561, %v1695
      %v1765 = vmul.f32 %v1563, %v1699
      %v1766 = vmul.f32 %v1565, %v1703
      %v1767 = vmul.f32 %v1567, %v1707
      %v1768 = vmul.f32 %v1569, %v1711
      %v1769 = vmul.f32 %v1571, %v1715
      %v1770 = vmul.f32 %v1573, %v1719
      %v1771 = vmul.f32 %v1575, %v1723
      %v1772 = vmul.f32 %v1577, %v1727
      %v1773 = vmul.f32 %v1579, %v1731
      %v1774 = vmul.f32 %v1581, %v1735
      %v1775 = vmul.f32 %v1583, %v1739
      %v1776 = vmul.f32 %v1616, %v1743
      %v1777 = vadd.f32 %v1456, %v1745
      %v1778 = vadd.f32 %v1457, %v1746
      %v1779 = vadd.f32 %v1458, %v1747
      %v1780 = vadd.f32 %v1459, %v1748
      %v1781 = vadd.f32 %v1460, %v1749
      %v1782 = vadd.f32 %v1461, %v1750
      %v1783 = vadd.f32 %v1462, %v1751
      %v1784 = vadd.f32 %v1463, %v1752
      %v1785 = vadd.f32 %v1464, %v1753
      %v1786 = vadd.f32 %v1465, %v1754
      %v1787 = vadd.f32 %v1466, %v1755
      %v1788 = vadd.f32 %v1467, %v1756
      %v1789 = vadd.f32 %v1468, %v1757
      %v1790 = vadd.f32 %v1469, %v1758
      %v1791 = vadd.f32 %v1470, %v1759
      %v1792 = vadd.f32 %v1471, %v1760
      %v1793 = vadd.f32 %v1472, %v1761
      %v1794 = vadd.f32 %v1473, %v1762
      %v1795 = vadd.f32 %v1474, %v1763
      %v1796 = vadd.f32 %v1475, %v1764
      %v1797 = vadd.f32 %v1476, %v1765
      %v1798 = vadd.f32 %v1477, %v1766
      %v1799 = vadd.f32 %v1478, %v1767
      %v1800 = vadd.f32 %v1479, %v1768
      %v1801 = vadd.f32 %v1480, %v1769
      %v1802 = vadd.f32 %v1481, %v1770
      %v1803 = vadd.f32 %v1482, %v1771
      %v1804 = vadd.f32 %v1483, %v1772
      %v1805 = vadd.f32 %v1484, %v1773
      %v1806 = vadd.f32 %v1485, %v1774
      %v1807 = vadd.f32 %v1486, %v1775
      %v1808 = vadd.f32 %v1487, %v1776
      %s1809 = scalar_lea.vmem %s451, 6
      %v1810 = vld [vmem:[%s1809] sm:$0x3f]
      %v1812 = vcombine.high %v1810, %v1810
      %v1814 = vunpack.c.l.s4 1983009808
      %v1815 = vunpack.c.0.s8 %v1814
      %v1816 = vlaneseq
      %v1817 = vshrl.u32 %v1816, 7
      %v1818 = vsub.s32 %v1815, %v1817
      %v1819 = vrot.slane %v1810, %v1818
      %v1821 = vunpack.c.l.s4 1983009808
      %v1822 = vunpack.c.0.s8 %v1821
      %v1823 = vlaneseq
      %v1824 = vshrl.u32 %v1823, 7
      %v1825 = vsub.s32 %v1822, %v1824
      %v1826 = vrot.slane %v1812, %v1825
      %v1827 = vcombine.high %v1819, %v1819
      %v1829 = vsel %vm690, %v627, 0
      %v1832 = vsel %vm739, %v1819, 0
      %v1835 = vsel %vm739, %v1827, 0
      %v1838 = vsel %vm739, %v1826, 0
      %1840 = vmatprep.subr.bf16.mxu0 %v1835
      %1841 = vmatpush1.bf16.msra.mxu0 %v1832
      %1842 = vmatprep.subr.bf16.mxu0 0
      %1843 = vmatpush1.bf16.msra.mxu0 0
      %1844 = vmatprep.subr.bf16.mxu0 0
      %1845 = vmatpush1.bf16.msra.mxu0 0
      %1846 = vmatprep.subr.bf16.mxu0 0
      %1847 = vmatpush1.bf16.msra.mxu0 0
      %1848 = vmatprep.subr.bf16.mxu0 0
      %1849 = vmatpush1.bf16.msra.mxu0 0
      %1850 = vmatprep.subr.bf16.mxu0 0
      %1851 = vmatpush1.bf16.msra.mxu0 0
      %1852 = vmatprep.subr.bf16.mxu0 0
      %1853 = vmatpush1.bf16.msra.mxu0 0
      %1854 = vmatprep.subr.bf16.mxu0 0
      %1855 = vmatpush1.bf16.msra.mxu0 0
      %1856 = vmatprep.subr.bf16.mxu0 0
      %1857 = vmatpush1.bf16.msra.mxu0 0
      %1858 = vmatprep.subr.bf16.mxu0 0
      %1859 = vmatpush1.bf16.msra.mxu0 0
      %1860 = vmatprep.subr.bf16.mxu0 0
      %1861 = vmatpush1.bf16.msra.mxu0 0
      %1862 = vmatprep.subr.bf16.mxu0 0
      %1863 = vmatpush1.bf16.msra.mxu0 0
      %1864 = vmatprep.subr.bf16.mxu0 0
      %1865 = vmatpush1.bf16.msra.mxu0 0
      %1866 = vmatprep.subr.bf16.mxu0 0
      %1867 = vmatpush1.bf16.msra.mxu0 0
      %1868 = vmatprep.subr.bf16.mxu0 0
      %1869 = vmatpush1.bf16.msra.mxu0 0
      %1870 = vmatprep.subr.bf16.mxu0 0
      %1871 = vmatpush1.bf16.msra.mxu0 0
      %1872 = vmatprep.mubr.bf16.mxu0 0
      %1873 = vmatmul.mubr.bf16.gmra.mrb[0].mxu0 %v695
      %v1874 = vpop.f32.mrb[0].mxu0
      %v1875 = vadd.f32 0.0, %v1874
      %v1876 = vpop.f32.mrb[0].mxu0
      %v1877 = vadd.f32 0.0, %v1876
      %v1878 = vpop.f32.mrb[0].mxu0
      %v1879 = vadd.f32 0.0, %v1878
      %v1880 = vpop.f32.mrb[0].mxu0
      %v1881 = vadd.f32 0.0, %v1880
      %1882 = vmatprep.mubr.bf16.mxu0 0
      %1883 = vmatmul.mubr.bf16.gmra.mrb[0].mxu0 %v698
      %v1884 = vpop.f32.mrb[0].mxu0
      %v1885 = vadd.f32 0.0, %v1884
      %v1886 = vpop.f32.mrb[0].mxu0
      %v1887 = vadd.f32 0.0, %v1886
      %v1888 = vpop.f32.mrb[0].mxu0
      %v1889 = vadd.f32 0.0, %v1888
      %v1890 = vpop.f32.mrb[0].mxu0
      %v1891 = vadd.f32 0.0, %v1890
      %1892 = vmatprep.mubr.bf16.mxu0 0
      %1893 = vmatmul.mubr.bf16.gmra.mrb[0].mxu0 %v701
      %v1894 = vpop.f32.mrb[0].mxu0
      %v1895 = vadd.f32 0.0, %v1894
      %v1896 = vpop.f32.mrb[0].mxu0
      %v1897 = vadd.f32 0.0, %v1896
      %v1898 = vpop.f32.mrb[0].mxu0
      %v1899 = vadd.f32 0.0, %v1898
      %v1900 = vpop.f32.mrb[0].mxu0
      %v1901 = vadd.f32 0.0, %v1900
      %1902 = vmatprep.mubr.bf16.mxu0 0
      %1903 = vmatmul.mubr.bf16.gmra.mrb[0].mxu0 %v704
      %v1904 = vpop.f32.mrb[0].mxu0
      %v1905 = vadd.f32 0.0, %v1904
      %v1906 = vpop.f32.mrb[0].mxu0
      %v1907 = vadd.f32 0.0, %v1906
      %v1908 = vpop.f32.mrb[0].mxu0
      %v1909 = vadd.f32 0.0, %v1908
      %v1910 = vpop.f32.mrb[0].mxu0
      %v1911 = vadd.f32 0.0, %v1910
      %1912 = vmatprep.mubr.bf16.mxu0 0
      %1913 = vmatmul.mubr.bf16.gmra.mrb[0].mxu0 %v707
      %v1914 = vpop.f32.mrb[0].mxu0
      %v1915 = vadd.f32 0.0, %v1914
      %v1916 = vpop.f32.mrb[0].mxu0
      %v1917 = vadd.f32 0.0, %v1916
      %v1918 = vpop.f32.mrb[0].mxu0
      %v1919 = vadd.f32 0.0, %v1918
      %v1920 = vpop.f32.mrb[0].mxu0
      %v1921 = vadd.f32 0.0, %v1920
      %1922 = vmatprep.mubr.bf16.mxu0 0
      %1923 = vmatmul.mubr.bf16.gmra.mrb[0].mxu0 %v710
      %v1924 = vpop.f32.mrb[0].mxu0
      %v1925 = vadd.f32 0.0, %v1924
      %v1926 = vpop.f32.mrb[0].mxu0
      %v1927 = vadd.f32 0.0, %v1926
      %v1928 = vpop.f32.mrb[0].mxu0
      %v1929 = vadd.f32 0.0, %v1928
      %v1930 = vpop.f32.mrb[0].mxu0
      %v1931 = vadd.f32 0.0, %v1930
      %1932 = vmatprep.mubr.bf16.mxu0 0
      %1933 = vmatmul.mubr.bf16.gmra.mrb[0].mxu0 %v713
      %v1934 = vpop.f32.mrb[0].mxu0
      %v1935 = vadd.f32 0.0, %v1934
      %v1936 = vpop.f32.mrb[0].mxu0
      %v1937 = vadd.f32 0.0, %v1936
      %v1938 = vpop.f32.mrb[0].mxu0
      %v1939 = vadd.f32 0.0, %v1938
      %v1940 = vpop.f32.mrb[0].mxu0
      %v1941 = vadd.f32 0.0, %v1940
      %1942 = vmatprep.mubr.bf16.mxu0 0
      %1943 = vmatmul.mubr.bf16.gmra.mrb[0].mxu0 %v716
      %v1944 = vpop.f32.mrb[0].mxu0
      %v1945 = vadd.f32 0.0, %v1944
      %v1946 = vpop.f32.mrb[0].mxu0
      %v1947 = vadd.f32 0.0, %v1946
      %v1948 = vpop.f32.mrb[0].mxu0
      %v1949 = vadd.f32 0.0, %v1948
      %v1950 = vpop.f32.mrb[0].mxu0
      %v1951 = vadd.f32 0.0, %v1950
      %1952 = vmatprep.mubr.bf16.mxu0 0
      %1953 = vmatmul.mubr.bf16.gmra.mrb[0].mxu0 %v719
      %v1954 = vpop.f32.mrb[0].mxu0
      %v1955 = vadd.f32 0.0, %v1954
      %v1956 = vpop.f32.mrb[0].mxu0
      %v1957 = vadd.f32 0.0, %v1956
      %v1958 = vpop.f32.mrb[0].mxu0
      %v1959 = vadd.f32 0.0, %v1958
      %v1960 = vpop.f32.mrb[0].mxu0
      %v1961 = vadd.f32 0.0, %v1960
      %1962 = vmatprep.mubr.bf16.mxu0 0
      %1963 = vmatmul.mubr.bf16.gmra.mrb[0].mxu0 %v722
      %v1964 = vpop.f32.mrb[0].mxu0
      %v1965 = vadd.f32 0.0, %v1964
      %v1966 = vpop.f32.mrb[0].mxu0
      %v1967 = vadd.f32 0.0, %v1966
      %v1968 = vpop.f32.mrb[0].mxu0
      %v1969 = vadd.f32 0.0, %v1968
      %v1970 = vpop.f32.mrb[0].mxu0
      %v1971 = vadd.f32 0.0, %v1970
      %1972 = vmatprep.mubr.bf16.mxu0 0
      %1973 = vmatmul.mubr.bf16.gmra.mrb[0].mxu0 %v725
      %v1974 = vpop.f32.mrb[0].mxu0
      %v1975 = vadd.f32 0.0, %v1974
      %v1976 = vpop.f32.mrb[0].mxu0
      %v1977 = vadd.f32 0.0, %v1976
      %v1978 = vpop.f32.mrb[0].mxu0
      %v1979 = vadd.f32 0.0, %v1978
      %v1980 = vpop.f32.mrb[0].mxu0
      %v1981 = vadd.f32 0.0, %v1980
      %1982 = vmatprep.mubr.bf16.mxu0 0
      %1983 = vmatmul.mubr.bf16.gmra.mrb[0].mxu0 %v728
      %v1984 = vpop.f32.mrb[0].mxu0
      %v1985 = vadd.f32 0.0, %v1984
      %v1986 = vpop.f32.mrb[0].mxu0
      %v1987 = vadd.f32 0.0, %v1986
      %v1988 = vpop.f32.mrb[0].mxu0
      %v1989 = vadd.f32 0.0, %v1988
      %v1990 = vpop.f32.mrb[0].mxu0
      %v1991 = vadd.f32 0.0, %v1990
      %1992 = vmatprep.mubr.bf16.mxu0 0
      %1993 = vmatmul.mubr.bf16.gmra.mrb[0].mxu0 %v731
      %v1994 = vpop.f32.mrb[0].mxu0
      %v1995 = vadd.f32 0.0, %v1994
      %v1996 = vpop.f32.mrb[0].mxu0
      %v1997 = vadd.f32 0.0, %v1996
      %v1998 = vpop.f32.mrb[0].mxu0
      %v1999 = vadd.f32 0.0, %v1998
      %v2000 = vpop.f32.mrb[0].mxu0
      %v2001 = vadd.f32 0.0, %v2000
      %2002 = vmatprep.mubr.bf16.mxu0 0
      %2003 = vmatmul.mubr.bf16.gmra.mrb[0].mxu0 %v734
      %v2004 = vpop.f32.mrb[0].mxu0
      %v2005 = vadd.f32 0.0, %v2004
      %v2006 = vpop.f32.mrb[0].mxu0
      %v2007 = vadd.f32 0.0, %v2006
      %v2008 = vpop.f32.mrb[0].mxu0
      %v2009 = vadd.f32 0.0, %v2008
      %v2010 = vpop.f32.mrb[0].mxu0
      %v2011 = vadd.f32 0.0, %v2010
      %2012 = vmatprep.mubr.bf16.mxu0 0
      %2013 = vmatmul.mubr.bf16.gmra.mrb[0].mxu0 %v737
      %v2014 = vpop.f32.mrb[0].mxu0
      %v2015 = vadd.f32 0.0, %v2014
      %v2016 = vpop.f32.mrb[0].mxu0
      %v2017 = vadd.f32 0.0, %v2016
      %v2018 = vpop.f32.mrb[0].mxu0
      %v2019 = vadd.f32 0.0, %v2018
      %v2020 = vpop.f32.mrb[0].mxu0
      %v2021 = vadd.f32 0.0, %v2020
      %2022 = vmatprep.mubr.bf16.mxu0 0
      %2023 = vmatmul.mubr.bf16.gmra.mrb[0].mxu0 %v1829
      %v2024 = vpop.f32.mrb[0].mxu0
      %v2025 = vadd.f32 0.0, %v2024
      %v2026 = vpop.f32.mrb[0].mxu0
      %v2027 = vadd.f32 0.0, %v2026
      %v2028 = vpop.f32.mrb[0].mxu0
      %v2029 = vadd.f32 0.0, %v2028
      %v2030 = vpop.f32.mrb[0].mxu0
      %v2031 = vadd.f32 0.0, %v2030
      %2032 = vdwg.mxu0
      %2033 = vmatprep.subr.bf16.mxu0 0
      %2034 = vmatpush1.bf16.msra.mxu0 %v1838
      %2035 = vmatprep.subr.bf16.mxu0 0
      %2036 = vmatpush1.bf16.msra.mxu0 0
      %2037 = vmatprep.subr.bf16.mxu0 0
      %2038 = vmatpush1.bf16.msra.mxu0 0
      %2039 = vmatprep.subr.bf16.mxu0 0
      %2040 = vmatpush1.bf16.msra.mxu0 0
      %2041 = vmatprep.subr.bf16.mxu0 0
      %2042 = vmatpush1.bf16.msra.mxu0 0
      %2043 = vmatprep.subr.bf16.mxu0 0
      %2044 = vmatpush1.bf16.msra.mxu0 0
      %2045 = vmatprep.subr.bf16.mxu0 0
      %2046 = vmatpush1.bf16.msra.mxu0 0
      %2047 = vmatprep.subr.bf16.mxu0 0
      %2048 = vmatpush1.bf16.msra.mxu0 0
      %2049 = vmatprep.subr.bf16.mxu0 0
      %2050 = vmatpush1.bf16.msra.mxu0 0
      %2051 = vmatprep.subr.bf16.mxu0 0
      %2052 = vmatpush1.bf16.msra.mxu0 0
      %2053 = vmatprep.subr.bf16.mxu0 0
      %2054 = vmatpush1.bf16.msra.mxu0 0
      %2055 = vmatprep.subr.bf16.mxu0 0
      %2056 = vmatpush1.bf16.msra.mxu0 0
      %2057 = vmatprep.subr.bf16.mxu0 0
      %2058 = vmatpush1.bf16.msra.mxu0 0
      %2059 = vmatprep.subr.bf16.mxu0 0
      %2060 = vmatpush1.bf16.msra.mxu0 0
      %2061 = vmatprep.subr.bf16.mxu0 0
      %2062 = vmatpush1.bf16.msra.mxu0 0
      %2063 = vmatprep.subr.bf16.mxu0 0
      %2064 = vmatpush1.bf16.msra.mxu0 0
      %2065 = vmatprep.mubr.bf16.mxu0 0
      %2066 = vmatmul.mubr.bf16.gmra.mrb[0].mxu0 %v695
      %v2067 = vpop.f32.mrb[0].mxu0
      %v2068 = vadd.f32 0.0, %v2067
      %v2069 = vpop.f32.mrb[0].mxu0
      %v2070 = vpop.f32.mrb[0].mxu0
      %v2071 = vadd.f32 0.0, %v2070
      %v2072 = vpop.f32.mrb[0].mxu0
      %2073 = vmatprep.mubr.bf16.mxu0 0
      %2074 = vmatmul.mubr.bf16.gmra.mrb[0].mxu0 %v698
      %v2075 = vpop.f32.mrb[0].mxu0
      %v2076 = vadd.f32 0.0, %v2075
      %v2077 = vpop.f32.mrb[0].mxu0
      %v2078 = vpop.f32.mrb[0].mxu0
      %v2079 = vadd.f32 0.0, %v2078
      %v2080 = vpop.f32.mrb[0].mxu0
      %2081 = vmatprep.mubr.bf16.mxu0 0
      %2082 = vmatmul.mubr.bf16.gmra.mrb[0].mxu0 %v701
      %v2083 = vpop.f32.mrb[0].mxu0
      %v2084 = vadd.f32 0.0, %v2083
      %v2085 = vpop.f32.mrb[0].mxu0
      %v2086 = vpop.f32.mrb[0].mxu0
      %v2087 = vadd.f32 0.0, %v2086
      %v2088 = vpop.f32.mrb[0].mxu0
      %2089 = vmatprep.mubr.bf16.mxu0 0
      %2090 = vmatmul.mubr.bf16.gmra.mrb[0].mxu0 %v704
      %v2091 = vpop.f32.mrb[0].mxu0
      %v2092 = vadd.f32 0.0, %v2091
      %v2093 = vpop.f32.mrb[0].mxu0
      %v2094 = vpop.f32.mrb[0].mxu0
      %v2095 = vadd.f32 0.0, %v2094
      %v2096 = vpop.f32.mrb[0].mxu0
      %2097 = vmatprep.mubr.bf16.mxu0 0
      %2098 = vmatmul.mubr.bf16.gmra.mrb[0].mxu0 %v707
      %v2099 = vpop.f32.mrb[0].mxu0
      %v2100 = vadd.f32 0.0, %v2099
      %v2101 = vpop.f32.mrb[0].mxu0
      %v2102 = vpop.f32.mrb[0].mxu0
      %v2103 = vadd.f32 0.0, %v2102
      %v2104 = vpop.f32.mrb[0].mxu0
      %2105 = vmatprep.mubr.bf16.mxu0 0
      %2106 = vmatmul.mubr.bf16.gmra.mrb[0].mxu0 %v710
      %v2107 = vpop.f32.mrb[0].mxu0
      %v2108 = vadd.f32 0.0, %v2107
      %v2109 = vpop.f32.mrb[0].mxu0
      %v2110 = vpop.f32.mrb[0].mxu0
      %v2111 = vadd.f32 0.0, %v2110
      %v2112 = vpop.f32.mrb[0].mxu0
      %2113 = vmatprep.mubr.bf16.mxu0 0
      %2114 = vmatmul.mubr.bf16.gmra.mrb[0].mxu0 %v713
      %v2115 = vpop.f32.mrb[0].mxu0
      %v2116 = vadd.f32 0.0, %v2115
      %v2117 = vpop.f32.mrb[0].mxu0
      %v2118 = vpop.f32.mrb[0].mxu0
      %v2119 = vadd.f32 0.0, %v2118
      %v2120 = vpop.f32.mrb[0].mxu0
      %2121 = vmatprep.mubr.bf16.mxu0 0
      %2122 = vmatmul.mubr.bf16.gmra.mrb[0].mxu0 %v716
      %v2123 = vpop.f32.mrb[0].mxu0
      %v2124 = vadd.f32 0.0, %v2123
      %v2125 = vpop.f32.mrb[0].mxu0
      %v2126 = vpop.f32.mrb[0].mxu0
      %v2127 = vadd.f32 0.0, %v2126
      %v2128 = vpop.f32.mrb[0].mxu0
      %2129 = vmatprep.mubr.bf16.mxu0 0
      %2130 = vmatmul.mubr.bf16.gmra.mrb[0].mxu0 %v719
      %v2131 = vpop.f32.mrb[0].mxu0
      %v2132 = vadd.f32 0.0, %v2131
      %v2133 = vpop.f32.mrb[0].mxu0
      %v2134 = vpop.f32.mrb[0].mxu0
      %v2135 = vadd.f32 0.0, %v2134
      %v2136 = vpop.f32.mrb[0].mxu0
      %2137 = vmatprep.mubr.bf16.mxu0 0
      %2138 = vmatmul.mubr.bf16.gmra.mrb[0].mxu0 %v722
      %v2139 = vpop.f32.mrb[0].mxu0
      %v2140 = vadd.f32 0.0, %v2139
      %v2141 = vpop.f32.mrb[0].mxu0
      %v2142 = vpop.f32.mrb[0].mxu0
      %v2143 = vadd.f32 0.0, %v2142
      %v2144 = vpop.f32.mrb[0].mxu0
      %2145 = vmatprep.mubr.bf16.mxu0 0
      %2146 = vmatmul.mubr.bf16.gmra.mrb[0].mxu0 %v725
      %v2147 = vpop.f32.mrb[0].mxu0
      %v2148 = vadd.f32 0.0, %v2147
      %v2149 = vpop.f32.mrb[0].mxu0
      %v2150 = vpop.f32.mrb[0].mxu0
      %v2151 = vadd.f32 0.0, %v2150
      %v2152 = vpop.f32.mrb[0].mxu0
      %2153 = vmatprep.mubr.bf16.mxu0 0
      %2154 = vmatmul.mubr.bf16.gmra.mrb[0].mxu0 %v728
      %v2155 = vpop.f32.mrb[0].mxu0
      %v2156 = vadd.f32 0.0, %v2155
      %v2157 = vpop.f32.mrb[0].mxu0
      %v2158 = vpop.f32.mrb[0].mxu0
      %v2159 = vadd.f32 0.0, %v2158
      %v2160 = vpop.f32.mrb[0].mxu0
      %2161 = vmatprep.mubr.bf16.mxu0 0
      %2162 = vmatmul.mubr.bf16.gmra.mrb[0].mxu0 %v731
      %v2163 = vpop.f32.mrb[0].mxu0
      %v2164 = vadd.f32 0.0, %v2163
      %v2165 = vpop.f32.mrb[0].mxu0
      %v2166 = vpop.f32.mrb[0].mxu0
      %v2167 = vadd.f32 0.0, %v2166
      %v2168 = vpop.f32.mrb[0].mxu0
      %2169 = vmatprep.mubr.bf16.mxu0 0
      %2170 = vmatmul.mubr.bf16.gmra.mrb[0].mxu0 %v734
      %v2171 = vpop.f32.mrb[0].mxu0
      %v2172 = vadd.f32 0.0, %v2171
      %v2173 = vpop.f32.mrb[0].mxu0
      %v2174 = vpop.f32.mrb[0].mxu0
      %v2175 = vadd.f32 0.0, %v2174
      %v2176 = vpop.f32.mrb[0].mxu0
      %2177 = vmatprep.mubr.bf16.mxu0 0
      %2178 = vmatmul.mubr.bf16.gmra.mrb[0].mxu0 %v737
      %v2179 = vpop.f32.mrb[0].mxu0
      %v2180 = vadd.f32 0.0, %v2179
      %v2181 = vpop.f32.mrb[0].mxu0
      %v2182 = vpop.f32.mrb[0].mxu0
      %v2183 = vadd.f32 0.0, %v2182
      %v2184 = vpop.f32.mrb[0].mxu0
      %2185 = vmatprep.mubr.bf16.mxu0 0
      %2186 = vmatmul.mubr.bf16.gmra.mrb[0].mxu0 %v1829
      %v2187 = vpop.f32.mrb[0].mxu0
      %v2188 = vadd.f32 0.0, %v2187
      %v2189 = vpop.f32.mrb[0].mxu0
      %v2190 = vpop.f32.mrb[0].mxu0
      %v2191 = vadd.f32 0.0, %v2190
      %v2192 = vpop.f32.mrb[0].mxu0
      %2193 = vdwg.mxu0
      %v2194 = vadd.f32 %v1777, %v1877
      %v2195 = vadd.f32 %v1778, %v1881
      %v2196 = vadd.f32 %v1779, %v1887
      %v2197 = vadd.f32 %v1780, %v1891
      %v2198 = vadd.f32 %v1781, %v1897
      %v2199 = vadd.f32 %v1782, %v1901
      %v2200 = vadd.f32 %v1783, %v1907
      %v2201 = vadd.f32 %v1784, %v1911
      %v2202 = vadd.f32 %v1785, %v1917
      %v2203 = vadd.f32 %v1786, %v1921
      %v2204 = vadd.f32 %v1787, %v1927
      %v2205 = vadd.f32 %v1788, %v1931
      %v2206 = vadd.f32 %v1789, %v1937
      %v2207 = vadd.f32 %v1790, %v1941
      %v2208 = vadd.f32 %v1791, %v1947
      %v2209 = vadd.f32 %v1792, %v1951
      %v2210 = vadd.f32 %v1793, %v1957
      %v2211 = vadd.f32 %v1794, %v1961
      %v2212 = vadd.f32 %v1795, %v1967
      %v2213 = vadd.f32 %v1796, %v1971
      %v2214 = vadd.f32 %v1797, %v1977
      %v2215 = vadd.f32 %v1798, %v1981
      %v2216 = vadd.f32 %v1799, %v1987
      %v2217 = vadd.f32 %v1800, %v1991
      %v2218 = vadd.f32 %v1801, %v1997
      %v2219 = vadd.f32 %v1802, %v2001
      %v2220 = vadd.f32 %v1803, %v2007
      %v2221 = vadd.f32 %v1804, %v2011
      %v2222 = vadd.f32 %v1805, %v2017
      %v2223 = vadd.f32 %v1806, %v2021
      %v2224 = vadd.f32 %v1807, %v2027
      %v2225 = vadd.f32 %v1808, %v2031
      %v2258 = vrot.slane %v1875, 7
      %v2259 = vrot.slane %v1879, 7
      %v2260 = vsel %vm1167, %v2258, %v2259
      %v2261 = vrot.slane %v1885, 7
      %v2262 = vsel %vm1167, %v2259, %v2261
      %v2263 = vrot.slane %v1889, 7
      %v2264 = vsel %vm1167, %v2261, %v2263
      %v2265 = vrot.slane %v1895, 7
      %v2266 = vsel %vm1167, %v2263, %v2265
      %v2267 = vrot.slane %v1899, 7
      %v2268 = vsel %vm1167, %v2265, %v2267
      %v2269 = vrot.slane %v1905, 7
      %v2270 = vsel %vm1167, %v2267, %v2269
      %v2271 = vrot.slane %v1909, 7
      %v2272 = vsel %vm1167, %v2269, %v2271
      %v2273 = vrot.slane %v1915, 7
      %v2274 = vsel %vm1167, %v2271, %v2273
      %v2275 = vrot.slane %v1919, 7
      %v2276 = vsel %vm1167, %v2273, %v2275
      %v2277 = vrot.slane %v1925, 7
      %v2278 = vsel %vm1167, %v2275, %v2277
      %v2279 = vrot.slane %v1929, 7
      %v2280 = vsel %vm1167, %v2277, %v2279
      %v2281 = vrot.slane %v1935, 7
      %v2282 = vsel %vm1167, %v2279, %v2281
      %v2283 = vrot.slane %v1939, 7
      %v2284 = vsel %vm1167, %v2281, %v2283
      %v2285 = vrot.slane %v1945, 7
      %v2286 = vsel %vm1167, %v2283, %v2285
      %v2287 = vrot.slane %v1949, 7
      %v2288 = vsel %vm1167, %v2285, %v2287
      %v2289 = vrot.slane %v1955, 7
      %v2290 = vsel %vm1167, %v2287, %v2289
      %v2291 = vrot.slane %v1959, 7
      %v2292 = vsel %vm1167, %v2289, %v2291
      %v2293 = vrot.slane %v1965, 7
      %v2294 = vsel %vm1167, %v2291, %v2293
      %v2295 = vrot.slane %v1969, 7
      %v2296 = vsel %vm1167, %v2293, %v2295
      %v2297 = vrot.slane %v1975, 7
      %v2298 = vsel %vm1167, %v2295, %v2297
      %v2299 = vrot.slane %v1979, 7
      %v2300 = vsel %vm1167, %v2297, %v2299
      %v2301 = vrot.slane %v1985, 7
      %v2302 = vsel %vm1167, %v2299, %v2301
      %v2303 = vrot.slane %v1989, 7
      %v2304 = vsel %vm1167, %v2301, %v2303
      %v2305 = vrot.slane %v1995, 7
      %v2306 = vsel %vm1167, %v2303, %v2305
      %v2307 = vrot.slane %v1999, 7
      %v2308 = vsel %vm1167, %v2305, %v2307
      %v2309 = vrot.slane %v2005, 7
      %v2310 = vsel %vm1167, %v2307, %v2309
      %v2311 = vrot.slane %v2009, 7
      %v2312 = vsel %vm1167, %v2309, %v2311
      %v2313 = vrot.slane %v2015, 7
      %v2314 = vsel %vm1167, %v2311, %v2313
      %v2315 = vrot.slane %v2019, 7
      %v2316 = vsel %vm1167, %v2313, %v2315
      %v2317 = vrot.slane %v2025, 7
      %v2318 = vsel %vm1167, %v2315, %v2317
      %v2319 = vrot.slane %v2029, 7
      %v2320 = vsel %vm1167, %v2317, %v2319
      %v2353 = vsel %vm1167, 0.0, %v2258
      %v2354 = vmul.f32 %v2353, %v1267
      %v2355 = vmul.f32 %v2260, %v1272
      %v2356 = vmul.f32 %v2262, %v1277
      %v2357 = vmul.f32 %v2264, %v1282
      %v2358 = vmul.f32 %v2266, %v1287
      %v2359 = vmul.f32 %v2268, %v1292
      %v2360 = vmul.f32 %v2270, %v1297
      %v2361 = vmul.f32 %v2272, %v1302
      %v2362 = vmul.f32 %v2274, %v1307
      %v2363 = vmul.f32 %v2276, %v1312
      %v2364 = vmul.f32 %v2278, %v1317
      %v2365 = vmul.f32 %v2280, %v1322
      %v2366 = vmul.f32 %v2282, %v1327
      %v2367 = vmul.f32 %v2284, %v1332
      %v2368 = vmul.f32 %v2286, %v1337
      %v2369 = vmul.f32 %v2288, %v1342
      %v2370 = vmul.f32 %v2290, %v1347
      %v2371 = vmul.f32 %v2292, %v1352
      %v2372 = vmul.f32 %v2294, %v1357
      %v2373 = vmul.f32 %v2296, %v1362
      %v2374 = vmul.f32 %v2298, %v1367
      %v2375 = vmul.f32 %v2300, %v1372
      %v2376 = vmul.f32 %v2302, %v1377
      %v2377 = vmul.f32 %v2304, %v1382
      %v2378 = vmul.f32 %v2306, %v1387
      %v2379 = vmul.f32 %v2308, %v1392
      %v2380 = vmul.f32 %v2310, %v1397
      %v2381 = vmul.f32 %v2312, %v1402
      %v2382 = vmul.f32 %v2314, %v1407
      %v2383 = vmul.f32 %v2316, %v1412
      %v2384 = vmul.f32 %v2318, %v1417
      %v2385 = vmul.f32 %v2320, %v1422
      %v2386 = vadd.f32 %v2194, %v2354
      %v2387 = vadd.f32 %v2195, %v2355
      %v2388 = vadd.f32 %v2196, %v2356
      %v2389 = vadd.f32 %v2197, %v2357
      %v2390 = vadd.f32 %v2198, %v2358
      %v2391 = vadd.f32 %v2199, %v2359
      %v2392 = vadd.f32 %v2200, %v2360
      %v2393 = vadd.f32 %v2201, %v2361
      %v2394 = vadd.f32 %v2202, %v2362
      %v2395 = vadd.f32 %v2203, %v2363
      %v2396 = vadd.f32 %v2204, %v2364
      %v2397 = vadd.f32 %v2205, %v2365
      %v2398 = vadd.f32 %v2206, %v2366
      %v2399 = vadd.f32 %v2207, %v2367
      %v2400 = vadd.f32 %v2208, %v2368
      %v2401 = vadd.f32 %v2209, %v2369
      %v2402 = vadd.f32 %v2210, %v2370
      %v2403 = vadd.f32 %v2211, %v2371
      %v2404 = vadd.f32 %v2212, %v2372
      %v2405 = vadd.f32 %v2213, %v2373
      %v2406 = vadd.f32 %v2214, %v2374
      %v2407 = vadd.f32 %v2215, %v2375
      %v2408 = vadd.f32 %v2216, %v2376
      %v2409 = vadd.f32 %v2217, %v2377
      %v2410 = vadd.f32 %v2218, %v2378
      %v2411 = vadd.f32 %v2219, %v2379
      %v2412 = vadd.f32 %v2220, %v2380
      %v2413 = vadd.f32 %v2221, %v2381
      %v2414 = vadd.f32 %v2222, %v2382
      %v2415 = vadd.f32 %v2223, %v2383
      %v2416 = vadd.f32 %v2224, %v2384
      %v2417 = vadd.f32 %v2225, %v2385
      %v2450 = vrot.slane %v2068, 1
      %v2451 = vrot.slane %v2071, 1
      %v2452 = vsel %vm1520, %v2450, %v2451
      %v2453 = vrot.slane %v2076, 1
      %v2454 = vsel %vm1520, %v2451, %v2453
      %v2455 = vrot.slane %v2079, 1
      %v2456 = vsel %vm1520, %v2453, %v2455
      %v2457 = vrot.slane %v2084, 1
      %v2458 = vsel %vm1520, %v2455, %v2457
      %v2459 = vrot.slane %v2087, 1
      %v2460 = vsel %vm1520, %v2457, %v2459
      %v2461 = vrot.slane %v2092, 1
      %v2462 = vsel %vm1520, %v2459, %v2461
      %v2463 = vrot.slane %v2095, 1
      %v2464 = vsel %vm1520, %v2461, %v2463
      %v2465 = vrot.slane %v2100, 1
      %v2466 = vsel %vm1520, %v2463, %v2465
      %v2467 = vrot.slane %v2103, 1
      %v2468 = vsel %vm1520, %v2465, %v2467
      %v2469 = vrot.slane %v2108, 1
      %v2470 = vsel %vm1520, %v2467, %v2469
      %v2471 = vrot.slane %v2111, 1
      %v2472 = vsel %vm1520, %v2469, %v2471
      %v2473 = vrot.slane %v2116, 1
      %v2474 = vsel %vm1520, %v2471, %v2473
      %v2475 = vrot.slane %v2119, 1
      %v2476 = vsel %vm1520, %v2473, %v2475
      %v2477 = vrot.slane %v2124, 1
      %v2478 = vsel %vm1520, %v2475, %v2477
      %v2479 = vrot.slane %v2127, 1
      %v2480 = vsel %vm1520, %v2477, %v2479
      %v2481 = vrot.slane %v2132, 1
      %v2482 = vsel %vm1520, %v2479, %v2481
      %v2483 = vrot.slane %v2135, 1
      %v2484 = vsel %vm1520, %v2481, %v2483
      %v2485 = vrot.slane %v2140, 1
      %v2486 = vsel %vm1520, %v2483, %v2485
      %v2487 = vrot.slane %v2143, 1
      %v2488 = vsel %vm1520, %v2485, %v2487
      %v2489 = vrot.slane %v2148, 1
      %v2490 = vsel %vm1520, %v2487, %v2489
      %v2491 = vrot.slane %v2151, 1
      %v2492 = vsel %vm1520, %v2489, %v2491
      %v2493 = vrot.slane %v2156, 1
      %v2494 = vsel %vm1520, %v2491, %v2493
      %v2495 = vrot.slane %v2159, 1
      %v2496 = vsel %vm1520, %v2493, %v2495
      %v2497 = vrot.slane %v2164, 1
      %v2498 = vsel %vm1520, %v2495, %v2497
      %v2499 = vrot.slane %v2167, 1
      %v2500 = vsel %vm1520, %v2497, %v2499
      %v2501 = vrot.slane %v2172, 1
      %v2502 = vsel %vm1520, %v2499, %v2501
      %v2503 = vrot.slane %v2175, 1
      %v2504 = vsel %vm1520, %v2501, %v2503
      %v2505 = vrot.slane %v2180, 1
      %v2506 = vsel %vm1520, %v2503, %v2505
      %v2507 = vrot.slane %v2183, 1
      %v2508 = vsel %vm1520, %v2505, %v2507
      %v2509 = vrot.slane %v2188, 1
      %v2510 = vsel %vm1520, %v2507, %v2509
      %v2511 = vrot.slane %v2191, 1
      %v2512 = vsel %vm1520, %v2509, %v2511
      %v2545 = vsel %vm1520, %v2511, 0.0
      %v2546 = vmul.f32 %v2452, %v1619
      %v2547 = vmul.f32 %v2454, %v1623
      %v2548 = vmul.f32 %v2456, %v1627
      %v2549 = vmul.f32 %v2458, %v1631
      %v2550 = vmul.f32 %v2460, %v1635
      %v2551 = vmul.f32 %v2462, %v1639
      %v2552 = vmul.f32 %v2464, %v1643
      %v2553 = vmul.f32 %v2466, %v1647
      %v2554 = vmul.f32 %v2468, %v1651
      %v2555 = vmul.f32 %v2470, %v1655
      %v2556 = vmul.f32 %v2472, %v1659
      %v2557 = vmul.f32 %v2474, %v1663
      %v2558 = vmul.f32 %v2476, %v1667
      %v2559 = vmul.f32 %v2478, %v1671
      %v2560 = vmul.f32 %v2480, %v1675
      %v2561 = vmul.f32 %v2482, %v1679
      %v2562 = vmul.f32 %v2484, %v1683
      %v2563 = vmul.f32 %v2486, %v1687
      %v2564 = vmul.f32 %v2488, %v1691
      %v2565 = vmul.f32 %v2490, %v1695
      %v2566 = vmul.f32 %v2492, %v1699
      %v2567 = vmul.f32 %v2494, %v1703
      %v2568 = vmul.f32 %v2496, %v1707
      %v2569 = vmul.f32 %v2498, %v1711
      %v2570 = vmul.f32 %v2500, %v1715
      %v2571 = vmul.f32 %v2502, %v1719
      %v2572 = vmul.f32 %v2504, %v1723
      %v2573 = vmul.f32 %v2506, %v1727
      %v2574 = vmul.f32 %v2508, %v1731
      %v2575 = vmul.f32 %v2510, %v1735
      %v2576 = vmul.f32 %v2512, %v1739
      %v2577 = vmul.f32 %v2545, %v1743
      %v2578 = vadd.f32 %v2386, %v2546
      %v2579 = vadd.f32 %v2387, %v2547
      %v2580 = vadd.f32 %v2388, %v2548
      %v2581 = vadd.f32 %v2389, %v2549
      %v2582 = vadd.f32 %v2390, %v2550
      %v2583 = vadd.f32 %v2391, %v2551
      %v2584 = vadd.f32 %v2392, %v2552
      %v2585 = vadd.f32 %v2393, %v2553
      %v2586 = vadd.f32 %v2394, %v2554
      %v2587 = vadd.f32 %v2395, %v2555
      %v2588 = vadd.f32 %v2396, %v2556
      %v2589 = vadd.f32 %v2397, %v2557
      %v2590 = vadd.f32 %v2398, %v2558
      %v2591 = vadd.f32 %v2399, %v2559
      %v2592 = vadd.f32 %v2400, %v2560
      %v2593 = vadd.f32 %v2401, %v2561
      %v2594 = vadd.f32 %v2402, %v2562
      %v2595 = vadd.f32 %v2403, %v2563
      %v2596 = vadd.f32 %v2404, %v2564
      %v2597 = vadd.f32 %v2405, %v2565
      %v2598 = vadd.f32 %v2406, %v2566
      %v2599 = vadd.f32 %v2407, %v2567
      %v2600 = vadd.f32 %v2408, %v2568
      %v2601 = vadd.f32 %v2409, %v2569
      %v2602 = vadd.f32 %v2410, %v2570
      %v2603 = vadd.f32 %v2411, %v2571
      %v2604 = vadd.f32 %v2412, %v2572
      %v2605 = vadd.f32 %v2413, %v2573
      %v2606 = vadd.f32 %v2414, %v2574
      %v2607 = vadd.f32 %v2415, %v2575
      %v2608 = vadd.f32 %v2416, %v2576
      %v2609 = vadd.f32 %v2417, %v2577
      %s2610 = scalar_lea.vmem %s451, 12
      %v2611 = vld [vmem:[%s2610] sm:$0x3f]
      %v2613 = vcombine.high %v2611, %v2611
      %v2615 = vunpack.c.l.s4 1983009808
      %v2616 = vunpack.c.0.s8 %v2615
      %v2617 = vlaneseq
      %v2618 = vshrl.u32 %v2617, 7
      %v2619 = vsub.s32 %v2616, %v2618
      %v2620 = vrot.slane %v2611, %v2619
      %v2622 = vunpack.c.l.s4 1983009808
      %v2623 = vunpack.c.0.s8 %v2622
      %v2624 = vlaneseq
      %v2625 = vshrl.u32 %v2624, 7
      %v2626 = vsub.s32 %v2623, %v2625
      %v2627 = vrot.slane %v2613, %v2626
      %v2628 = vcombine.high %v2620, %v2620
      %v2630 = vsel %vm690, %v632, 0
      %v2633 = vsel %vm739, %v2620, 0
      %v2636 = vsel %vm739, %v2628, 0
      %v2639 = vsel %vm739, %v2627, 0
      %2641 = vmatprep.subr.bf16.mxu0 %v2636
      %2642 = vmatpush1.bf16.msra.mxu0 %v2633
      %2643 = vmatprep.subr.bf16.mxu0 0
      %2644 = vmatpush1.bf16.msra.mxu0 0
      %2645 = vmatprep.subr.bf16.mxu0 0
      %2646 = vmatpush1.bf16.msra.mxu0 0
      %2647 = vmatprep.subr.bf16.mxu0 0
      %2648 = vmatpush1.bf16.msra.mxu0 0
      %2649 = vmatprep.subr.bf16.mxu0 0
      %2650 = vmatpush1.bf16.msra.mxu0 0
      %2651 = vmatprep.subr.bf16.mxu0 0
      %2652 = vmatpush1.bf16.msra.mxu0 0
      %2653 = vmatprep.subr.bf16.mxu0 0
      %2654 = vmatpush1.bf16.msra.mxu0 0
      %2655 = vmatprep.subr.bf16.mxu0 0
      %2656 = vmatpush1.bf16.msra.mxu0 0
      %2657 = vmatprep.subr.bf16.mxu0 0
      %2658 = vmatpush1.bf16.msra.mxu0 0
      %2659 = vmatprep.subr.bf16.mxu0 0
      %2660 = vmatpush1.bf16.msra.mxu0 0
      %2661 = vmatprep.subr.bf16.mxu0 0
      %2662 = vmatpush1.bf16.msra.mxu0 0
      %2663 = vmatprep.subr.bf16.mxu0 0
      %2664 = vmatpush1.bf16.msra.mxu0 0
      %2665 = vmatprep.subr.bf16.mxu0 0
      %2666 = vmatpush1.bf16.msra.mxu0 0
      %2667 = vmatprep.subr.bf16.mxu0 0
      %2668 = vmatpush1.bf16.msra.mxu0 0
      %2669 = vmatprep.subr.bf16.mxu0 0
      %2670 = vmatpush1.bf16.msra.mxu0 0
      %2671 = vmatprep.subr.bf16.mxu0 0
      %2672 = vmatpush1.bf16.msra.mxu0 0
      %2673 = vmatprep.mubr.bf16.mxu0 0
      %2674 = vmatmul.mubr.bf16.gmra.mrb[0].mxu0 %v698
      %v2675 = vpop.f32.mrb[0].mxu0
      %v2676 = vadd.f32 0.0, %v2675
      %v2677 = vpop.f32.mrb[0].mxu0
      %v2678 = vadd.f32 0.0, %v2677
      %v2679 = vpop.f32.mrb[0].mxu0
      %v2680 = vadd.f32 0.0, %v2679
      %v2681 = vpop.f32.mrb[0].mxu0
      %v2682 = vadd.f32 0.0, %v2681
      %2683 = vmatprep.mubr.bf16.mxu0 0
      %2684 = vmatmul.mubr.bf16.gmra.mrb[0].mxu0 %v701
      %v2685 = vpop.f32.mrb[0].mxu0
      %v2686 = vadd.f32 0.0, %v2685
      %v2687 = vpop.f32.mrb[0].mxu0
      %v2688 = vadd.f32 0.0, %v2687
      %v2689 = vpop.f32.mrb[0].mxu0
      %v2690 = vadd.f32 0.0, %v2689
      %v2691 = vpop.f32.mrb[0].mxu0
      %v2692 = vadd.f32 0.0, %v2691
      %2693 = vmatprep.mubr.bf16.mxu0 0
      %2694 = vmatmul.mubr.bf16.gmra.mrb[0].mxu0 %v704
      %v2695 = vpop.f32.mrb[0].mxu0
      %v2696 = vadd.f32 0.0, %v2695
      %v2697 = vpop.f32.mrb[0].mxu0
      %v2698 = vadd.f32 0.0, %v2697
      %v2699 = vpop.f32.mrb[0].mxu0
      %v2700 = vadd.f32 0.0, %v2699
      %v2701 = vpop.f32.mrb[0].mxu0
      %v2702 = vadd.f32 0.0, %v2701
      %2703 = vmatprep.mubr.bf16.mxu0 0
      %2704 = vmatmul.mubr.bf16.gmra.mrb[0].mxu0 %v707
      %v2705 = vpop.f32.mrb[0].mxu0
      %v2706 = vadd.f32 0.0, %v2705
      %v2707 = vpop.f32.mrb[0].mxu0
      %v2708 = vadd.f32 0.0, %v2707
      %v2709 = vpop.f32.mrb[0].mxu0
      %v2710 = vadd.f32 0.0, %v2709
      %v2711 = vpop.f32.mrb[0].mxu0
      %v2712 = vadd.f32 0.0, %v2711
      %2713 = vmatprep.mubr.bf16.mxu0 0
      %2714 = vmatmul.mubr.bf16.gmra.mrb[0].mxu0 %v710
      %v2715 = vpop.f32.mrb[0].mxu0
      %v2716 = vadd.f32 0.0, %v2715
      %v2717 = vpop.f32.mrb[0].mxu0
      %v2718 = vadd.f32 0.0, %v2717
      %v2719 = vpop.f32.mrb[0].mxu0
      %v2720 = vadd.f32 0.0, %v2719
      %v2721 = vpop.f32.mrb[0].mxu0
      %v2722 = vadd.f32 0.0, %v2721
      %2723 = vmatprep.mubr.bf16.mxu0 0
      %2724 = vmatmul.mubr.bf16.gmra.mrb[0].mxu0 %v713
      %v2725 = vpop.f32.mrb[0].mxu0
      %v2726 = vadd.f32 0.0, %v2725
      %v2727 = vpop.f32.mrb[0].mxu0
      %v2728 = vadd.f32 0.0, %v2727
      %v2729 = vpop.f32.mrb[0].mxu0
      %v2730 = vadd.f32 0.0, %v2729
      %v2731 = vpop.f32.mrb[0].mxu0
      %v2732 = vadd.f32 0.0, %v2731
      %2733 = vmatprep.mubr.bf16.mxu0 0
      %2734 = vmatmul.mubr.bf16.gmra.mrb[0].mxu0 %v716
      %v2735 = vpop.f32.mrb[0].mxu0
      %v2736 = vadd.f32 0.0, %v2735
      %v2737 = vpop.f32.mrb[0].mxu0
      %v2738 = vadd.f32 0.0, %v2737
      %v2739 = vpop.f32.mrb[0].mxu0
      %v2740 = vadd.f32 0.0, %v2739
      %v2741 = vpop.f32.mrb[0].mxu0
      %v2742 = vadd.f32 0.0, %v2741
      %2743 = vmatprep.mubr.bf16.mxu0 0
      %2744 = vmatmul.mubr.bf16.gmra.mrb[0].mxu0 %v719
      %v2745 = vpop.f32.mrb[0].mxu0
      %v2746 = vadd.f32 0.0, %v2745
      %v2747 = vpop.f32.mrb[0].mxu0
      %v2748 = vadd.f32 0.0, %v2747
      %v2749 = vpop.f32.mrb[0].mxu0
      %v2750 = vadd.f32 0.0, %v2749
      %v2751 = vpop.f32.mrb[0].mxu0
      %v2752 = vadd.f32 0.0, %v2751
      %2753 = vmatprep.mubr.bf16.mxu0 0
      %2754 = vmatmul.mubr.bf16.gmra.mrb[0].mxu0 %v722
      %v2755 = vpop.f32.mrb[0].mxu0
      %v2756 = vadd.f32 0.0, %v2755
      %v2757 = vpop.f32.mrb[0].mxu0
      %v2758 = vadd.f32 0.0, %v2757
      %v2759 = vpop.f32.mrb[0].mxu0
      %v2760 = vadd.f32 0.0, %v2759
      %v2761 = vpop.f32.mrb[0].mxu0
      %v2762 = vadd.f32 0.0, %v2761
      %2763 = vmatprep.mubr.bf16.mxu0 0
      %2764 = vmatmul.mubr.bf16.gmra.mrb[0].mxu0 %v725
      %v2765 = vpop.f32.mrb[0].mxu0
      %v2766 = vadd.f32 0.0, %v2765
      %v2767 = vpop.f32.mrb[0].mxu0
      %v2768 = vadd.f32 0.0, %v2767
      %v2769 = vpop.f32.mrb[0].mxu0
      %v2770 = vadd.f32 0.0, %v2769
      %v2771 = vpop.f32.mrb[0].mxu0
      %v2772 = vadd.f32 0.0, %v2771
      %2773 = vmatprep.mubr.bf16.mxu0 0
      %2774 = vmatmul.mubr.bf16.gmra.mrb[0].mxu0 %v728
      %v2775 = vpop.f32.mrb[0].mxu0
      %v2776 = vadd.f32 0.0, %v2775
      %v2777 = vpop.f32.mrb[0].mxu0
      %v2778 = vadd.f32 0.0, %v2777
      %v2779 = vpop.f32.mrb[0].mxu0
      %v2780 = vadd.f32 0.0, %v2779
      %v2781 = vpop.f32.mrb[0].mxu0
      %v2782 = vadd.f32 0.0, %v2781
      %2783 = vmatprep.mubr.bf16.mxu0 0
      %2784 = vmatmul.mubr.bf16.gmra.mrb[0].mxu0 %v731
      %v2785 = vpop.f32.mrb[0].mxu0
      %v2786 = vadd.f32 0.0, %v2785
      %v2787 = vpop.f32.mrb[0].mxu0
      %v2788 = vadd.f32 0.0, %v2787
      %v2789 = vpop.f32.mrb[0].mxu0
      %v2790 = vadd.f32 0.0, %v2789
      %v2791 = vpop.f32.mrb[0].mxu0
      %v2792 = vadd.f32 0.0, %v2791
      %2793 = vmatprep.mubr.bf16.mxu0 0
      %2794 = vmatmul.mubr.bf16.gmra.mrb[0].mxu0 %v734
      %v2795 = vpop.f32.mrb[0].mxu0
      %v2796 = vadd.f32 0.0, %v2795
      %v2797 = vpop.f32.mrb[0].mxu0
      %v2798 = vadd.f32 0.0, %v2797
      %v2799 = vpop.f32.mrb[0].mxu0
      %v2800 = vadd.f32 0.0, %v2799
      %v2801 = vpop.f32.mrb[0].mxu0
      %v2802 = vadd.f32 0.0, %v2801
      %2803 = vmatprep.mubr.bf16.mxu0 0
      %2804 = vmatmul.mubr.bf16.gmra.mrb[0].mxu0 %v737
      %v2805 = vpop.f32.mrb[0].mxu0
      %v2806 = vadd.f32 0.0, %v2805
      %v2807 = vpop.f32.mrb[0].mxu0
      %v2808 = vadd.f32 0.0, %v2807
      %v2809 = vpop.f32.mrb[0].mxu0
      %v2810 = vadd.f32 0.0, %v2809
      %v2811 = vpop.f32.mrb[0].mxu0
      %v2812 = vadd.f32 0.0, %v2811
      %2813 = vmatprep.mubr.bf16.mxu0 0
      %2814 = vmatmul.mubr.bf16.gmra.mrb[0].mxu0 %v1829
      %v2815 = vpop.f32.mrb[0].mxu0
      %v2816 = vadd.f32 0.0, %v2815
      %v2817 = vpop.f32.mrb[0].mxu0
      %v2818 = vadd.f32 0.0, %v2817
      %v2819 = vpop.f32.mrb[0].mxu0
      %v2820 = vadd.f32 0.0, %v2819
      %v2821 = vpop.f32.mrb[0].mxu0
      %v2822 = vadd.f32 0.0, %v2821
      %2823 = vmatprep.mubr.bf16.mxu0 0
      %2824 = vmatmul.mubr.bf16.gmra.mrb[0].mxu0 %v2630
      %v2825 = vpop.f32.mrb[0].mxu0
      %v2826 = vadd.f32 0.0, %v2825
      %v2827 = vpop.f32.mrb[0].mxu0
      %v2828 = vadd.f32 0.0, %v2827
      %v2829 = vpop.f32.mrb[0].mxu0
      %v2830 = vadd.f32 0.0, %v2829
      %v2831 = vpop.f32.mrb[0].mxu0
      %v2832 = vadd.f32 0.0, %v2831
      %2833 = vdwg.mxu0
      %2834 = vmatprep.subr.bf16.mxu0 0
      %2835 = vmatpush1.bf16.msra.mxu0 %v2639
      %2836 = vmatprep.subr.bf16.mxu0 0
      %2837 = vmatpush1.bf16.msra.mxu0 0
      %2838 = vmatprep.subr.bf16.mxu0 0
      %2839 = vmatpush1.bf16.msra.mxu0 0
      %2840 = vmatprep.subr.bf16.mxu0 0
      %2841 = vmatpush1.bf16.msra.mxu0 0
      %2842 = vmatprep.subr.bf16.mxu0 0
      %2843 = vmatpush1.bf16.msra.mxu0 0
      %2844 = vmatprep.subr.bf16.mxu0 0
      %2845 = vmatpush1.bf16.msra.mxu0 0
      %2846 = vmatprep.subr.bf16.mxu0 0
      %2847 = vmatpush1.bf16.msra.mxu0 0
      %2848 = vmatprep.subr.bf16.mxu0 0
      %2849 = vmatpush1.bf16.msra.mxu0 0
      %2850 = vmatprep.subr.bf16.mxu0 0
      %2851 = vmatpush1.bf16.msra.mxu0 0
      %2852 = vmatprep.subr.bf16.mxu0 0
      %2853 = vmatpush1.bf16.msra.mxu0 0
      %2854 = vmatprep.subr.bf16.mxu0 0
      %2855 = vmatpush1.bf16.msra.mxu0 0
      %2856 = vmatprep.subr.bf16.mxu0 0
      %2857 = vmatpush1.bf16.msra.mxu0 0
      %2858 = vmatprep.subr.bf16.mxu0 0
      %2859 = vmatpush1.bf16.msra.mxu0 0
      %2860 = vmatprep.subr.bf16.mxu0 0
      %2861 = vmatpush1.bf16.msra.mxu0 0
      %2862 = vmatprep.subr.bf16.mxu0 0
      %2863 = vmatpush1.bf16.msra.mxu0 0
      %2864 = vmatprep.subr.bf16.mxu0 0
      %2865 = vmatpush1.bf16.msra.mxu0 0
      %2866 = vmatprep.mubr.bf16.mxu0 0
      %2867 = vmatmul.mubr.bf16.gmra.mrb[0].mxu0 %v698
      %v2868 = vpop.f32.mrb[0].mxu0
      %v2869 = vadd.f32 0.0, %v2868
      %v2870 = vpop.f32.mrb[0].mxu0
      %v2871 = vpop.f32.mrb[0].mxu0
      %v2872 = vadd.f32 0.0, %v2871
      %v2873 = vpop.f32.mrb[0].mxu0
      %2874 = vmatprep.mubr.bf16.mxu0 0
      %2875 = vmatmul.mubr.bf16.gmra.mrb[0].mxu0 %v701
      %v2876 = vpop.f32.mrb[0].mxu0
      %v2877 = vadd.f32 0.0, %v2876
      %v2878 = vpop.f32.mrb[0].mxu0
      %v2879 = vpop.f32.mrb[0].mxu0
      %v2880 = vadd.f32 0.0, %v2879
      %v2881 = vpop.f32.mrb[0].mxu0
      %2882 = vmatprep.mubr.bf16.mxu0 0
      %2883 = vmatmul.mubr.bf16.gmra.mrb[0].mxu0 %v704
      %v2884 = vpop.f32.mrb[0].mxu0
      %v2885 = vadd.f32 0.0, %v2884
      %v2886 = vpop.f32.mrb[0].mxu0
      %v2887 = vpop.f32.mrb[0].mxu0
      %v2888 = vadd.f32 0.0, %v2887
      %v2889 = vpop.f32.mrb[0].mxu0
      %2890 = vmatprep.mubr.bf16.mxu0 0
      %2891 = vmatmul.mubr.bf16.gmra.mrb[0].mxu0 %v707
      %v2892 = vpop.f32.mrb[0].mxu0
      %v2893 = vadd.f32 0.0, %v2892
      %v2894 = vpop.f32.mrb[0].mxu0
      %v2895 = vpop.f32.mrb[0].mxu0
      %v2896 = vadd.f32 0.0, %v2895
      %v2897 = vpop.f32.mrb[0].mxu0
      %2898 = vmatprep.mubr.bf16.mxu0 0
      %2899 = vmatmul.mubr.bf16.gmra.mrb[0].mxu0 %v710
      %v2900 = vpop.f32.mrb[0].mxu0
      %v2901 = vadd.f32 0.0, %v2900
      %v2902 = vpop.f32.mrb[0].mxu0
      %v2903 = vpop.f32.mrb[0].mxu0
      %v2904 = vadd.f32 0.0, %v2903
      %v2905 = vpop.f32.mrb[0].mxu0
      %2906 = vmatprep.mubr.bf16.mxu0 0
      %2907 = vmatmul.mubr.bf16.gmra.mrb[0].mxu0 %v713
      %v2908 = vpop.f32.mrb[0].mxu0
      %v2909 = vadd.f32 0.0, %v2908
      %v2910 = vpop.f32.mrb[0].mxu0
      %v2911 = vpop.f32.mrb[0].mxu0
      %v2912 = vadd.f32 0.0, %v2911
      %v2913 = vpop.f32.mrb[0].mxu0
      %2914 = vmatprep.mubr.bf16.mxu0 0
      %2915 = vmatmul.mubr.bf16.gmra.mrb[0].mxu0 %v716
      %v2916 = vpop.f32.mrb[0].mxu0
      %v2917 = vadd.f32 0.0, %v2916
      %v2918 = vpop.f32.mrb[0].mxu0
      %v2919 = vpop.f32.mrb[0].mxu0
      %v2920 = vadd.f32 0.0, %v2919
      %v2921 = vpop.f32.mrb[0].mxu0
      %2922 = vmatprep.mubr.bf16.mxu0 0
      %2923 = vmatmul.mubr.bf16.gmra.mrb[0].mxu0 %v719
      %v2924 = vpop.f32.mrb[0].mxu0
      %v2925 = vadd.f32 0.0, %v2924
      %v2926 = vpop.f32.mrb[0].mxu0
      %v2927 = vpop.f32.mrb[0].mxu0
      %v2928 = vadd.f32 0.0, %v2927
      %v2929 = vpop.f32.mrb[0].mxu0
      %2930 = vmatprep.mubr.bf16.mxu0 0
      %2931 = vmatmul.mubr.bf16.gmra.mrb[0].mxu0 %v722
      %v2932 = vpop.f32.mrb[0].mxu0
      %v2933 = vadd.f32 0.0, %v2932
      %v2934 = vpop.f32.mrb[0].mxu0
      %v2935 = vpop.f32.mrb[0].mxu0
      %v2936 = vadd.f32 0.0, %v2935
      %v2937 = vpop.f32.mrb[0].mxu0
      %2938 = vmatprep.mubr.bf16.mxu0 0
      %2939 = vmatmul.mubr.bf16.gmra.mrb[0].mxu0 %v725
      %v2940 = vpop.f32.mrb[0].mxu0
      %v2941 = vadd.f32 0.0, %v2940
      %v2942 = vpop.f32.mrb[0].mxu0
      %v2943 = vpop.f32.mrb[0].mxu0
      %v2944 = vadd.f32 0.0, %v2943
      %v2945 = vpop.f32.mrb[0].mxu0
      %2946 = vmatprep.mubr.bf16.mxu0 0
      %2947 = vmatmul.mubr.bf16.gmra.mrb[0].mxu0 %v728
      %v2948 = vpop.f32.mrb[0].mxu0
      %v2949 = vadd.f32 0.0, %v2948
      %v2950 = vpop.f32.mrb[0].mxu0
      %v2951 = vpop.f32.mrb[0].mxu0
      %v2952 = vadd.f32 0.0, %v2951
      %v2953 = vpop.f32.mrb[0].mxu0
      %2954 = vmatprep.mubr.bf16.mxu0 0
      %2955 = vmatmul.mubr.bf16.gmra.mrb[0].mxu0 %v731
      %v2956 = vpop.f32.mrb[0].mxu0
      %v2957 = vadd.f32 0.0, %v2956
      %v2958 = vpop.f32.mrb[0].mxu0
      %v2959 = vpop.f32.mrb[0].mxu0
      %v2960 = vadd.f32 0.0, %v2959
      %v2961 = vpop.f32.mrb[0].mxu0
      %2962 = vmatprep.mubr.bf16.mxu0 0
      %2963 = vmatmul.mubr.bf16.gmra.mrb[0].mxu0 %v734
      %v2964 = vpop.f32.mrb[0].mxu0
      %v2965 = vadd.f32 0.0, %v2964
      %v2966 = vpop.f32.mrb[0].mxu0
      %v2967 = vpop.f32.mrb[0].mxu0
      %v2968 = vadd.f32 0.0, %v2967
      %v2969 = vpop.f32.mrb[0].mxu0
      %2970 = vmatprep.mubr.bf16.mxu0 0
      %2971 = vmatmul.mubr.bf16.gmra.mrb[0].mxu0 %v737
      %v2972 = vpop.f32.mrb[0].mxu0
      %v2973 = vadd.f32 0.0, %v2972
      %v2974 = vpop.f32.mrb[0].mxu0
      %v2975 = vpop.f32.mrb[0].mxu0
      %v2976 = vadd.f32 0.0, %v2975
      %v2977 = vpop.f32.mrb[0].mxu0
      %2978 = vmatprep.mubr.bf16.mxu0 0
      %2979 = vmatmul.mubr.bf16.gmra.mrb[0].mxu0 %v1829
      %v2980 = vpop.f32.mrb[0].mxu0
      %v2981 = vadd.f32 0.0, %v2980
      %v2982 = vpop.f32.mrb[0].mxu0
      %v2983 = vpop.f32.mrb[0].mxu0
      %v2984 = vadd.f32 0.0, %v2983
      %v2985 = vpop.f32.mrb[0].mxu0
      %2986 = vmatprep.mubr.bf16.mxu0 0
      %2987 = vmatmul.mubr.bf16.gmra.mrb[0].mxu0 %v2630
      %v2988 = vpop.f32.mrb[0].mxu0
      %v2989 = vadd.f32 0.0, %v2988
      %v2990 = vpop.f32.mrb[0].mxu0
      %v2991 = vpop.f32.mrb[0].mxu0
      %v2992 = vadd.f32 0.0, %v2991
      %v2993 = vpop.f32.mrb[0].mxu0
      %2994 = vdwg.mxu0
      %v2995 = vadd.f32 %v2578, %v2678
      %v2996 = vadd.f32 %v2579, %v2682
      %v2997 = vadd.f32 %v2580, %v2688
      %v2998 = vadd.f32 %v2581, %v2692
      %v2999 = vadd.f32 %v2582, %v2698
      %v3000 = vadd.f32 %v2583, %v2702
      %v3001 = vadd.f32 %v2584, %v2708
      %v3002 = vadd.f32 %v2585, %v2712
      %v3003 = vadd.f32 %v2586, %v2718
      %v3004 = vadd.f32 %v2587, %v2722
      %v3005 = vadd.f32 %v2588, %v2728
      %v3006 = vadd.f32 %v2589, %v2732
      %v3007 = vadd.f32 %v2590, %v2738
      %v3008 = vadd.f32 %v2591, %v2742
      %v3009 = vadd.f32 %v2592, %v2748
      %v3010 = vadd.f32 %v2593, %v2752
      %v3011 = vadd.f32 %v2594, %v2758
      %v3012 = vadd.f32 %v2595, %v2762
      %v3013 = vadd.f32 %v2596, %v2768
      %v3014 = vadd.f32 %v2597, %v2772
      %v3015 = vadd.f32 %v2598, %v2778
      %v3016 = vadd.f32 %v2599, %v2782
      %v3017 = vadd.f32 %v2600, %v2788
      %v3018 = vadd.f32 %v2601, %v2792
      %v3019 = vadd.f32 %v2602, %v2798
      %v3020 = vadd.f32 %v2603, %v2802
      %v3021 = vadd.f32 %v2604, %v2808
      %v3022 = vadd.f32 %v2605, %v2812
      %v3023 = vadd.f32 %v2606, %v2818
      %v3024 = vadd.f32 %v2607, %v2822
      %v3025 = vadd.f32 %v2608, %v2828
      %v3026 = vadd.f32 %v2609, %v2832
      %v3059 = vrot.slane %v2676, 7
      %v3060 = vrot.slane %v2680, 7
      %v3061 = vsel %vm1167, %v3059, %v3060
      %v3062 = vrot.slane %v2686, 7
      %v3063 = vsel %vm1167, %v3060, %v3062
      %v3064 = vrot.slane %v2690, 7
      %v3065 = vsel %vm1167, %v3062, %v3064
      %v3066 = vrot.slane %v2696, 7
      %v3067 = vsel %vm1167, %v3064, %v3066
      %v3068 = vrot.slane %v2700, 7
      %v3069 = vsel %vm1167, %v3066, %v3068
      %v3070 = vrot.slane %v2706, 7
      %v3071 = vsel %vm1167, %v3068, %v3070
      %v3072 = vrot.slane %v2710, 7
      %v3073 = vsel %vm1167, %v3070, %v3072
      %v3074 = vrot.slane %v2716, 7
      %v3075 = vsel %vm1167, %v3072, %v3074
      %v3076 = vrot.slane %v2720, 7
      %v3077 = vsel %vm1167, %v3074, %v3076
      %v3078 = vrot.slane %v2726, 7
      %v3079 = vsel %vm1167, %v3076, %v3078
      %v3080 = vrot.slane %v2730, 7
      %v3081 = vsel %vm1167, %v3078, %v3080
      %v3082 = vrot.slane %v2736, 7
      %v3083 = vsel %vm1167, %v3080, %v3082
      %v3084 = vrot.slane %v2740, 7
      %v3085 = vsel %vm1167, %v3082, %v3084
      %v3086 = vrot.slane %v2746, 7
      %v3087 = vsel %vm1167, %v3084, %v3086
      %v3088 = vrot.slane %v2750, 7
      %v3089 = vsel %vm1167, %v3086, %v3088
      %v3090 = vrot.slane %v2756, 7
      %v3091 = vsel %vm1167, %v3088, %v3090
      %v3092 = vrot.slane %v2760, 7
      %v3093 = vsel %vm1167, %v3090, %v3092
      %v3094 = vrot.slane %v2766, 7
      %v3095 = vsel %vm1167, %v3092, %v3094
      %v3096 = vrot.slane %v2770, 7
      %v3097 = vsel %vm1167, %v3094, %v3096
      %v3098 = vrot.slane %v2776, 7
      %v3099 = vsel %vm1167, %v3096, %v3098
      %v3100 = vrot.slane %v2780, 7
      %v3101 = vsel %vm1167, %v3098, %v3100
      %v3102 = vrot.slane %v2786, 7
      %v3103 = vsel %vm1167, %v3100, %v3102
      %v3104 = vrot.slane %v2790, 7
      %v3105 = vsel %vm1167, %v3102, %v3104
      %v3106 = vrot.slane %v2796, 7
      %v3107 = vsel %vm1167, %v3104, %v3106
      %v3108 = vrot.slane %v2800, 7
      %v3109 = vsel %vm1167, %v3106, %v3108
      %v3110 = vrot.slane %v2806, 7
      %v3111 = vsel %vm1167, %v3108, %v3110
      %v3112 = vrot.slane %v2810, 7
      %v3113 = vsel %vm1167, %v3110, %v3112
      %v3114 = vrot.slane %v2816, 7
      %v3115 = vsel %vm1167, %v3112, %v3114
      %v3116 = vrot.slane %v2820, 7
      %v3117 = vsel %vm1167, %v3114, %v3116
      %v3118 = vrot.slane %v2826, 7
      %v3119 = vsel %vm1167, %v3116, %v3118
      %v3120 = vrot.slane %v2830, 7
      %v3121 = vsel %vm1167, %v3118, %v3120
      %v3154 = vsel %vm1167, 0.0, %v3059
      %v3155 = vmul.f32 %v3154, %v1267
      %v3156 = vmul.f32 %v3061, %v1272
      %v3157 = vmul.f32 %v3063, %v1277
      %v3158 = vmul.f32 %v3065, %v1282
      %v3159 = vmul.f32 %v3067, %v1287
      %v3160 = vmul.f32 %v3069, %v1292
      %v3161 = vmul.f32 %v3071, %v1297
      %v3162 = vmul.f32 %v3073, %v1302
      %v3163 = vmul.f32 %v3075, %v1307
      %v3164 = vmul.f32 %v3077, %v1312
      %v3165 = vmul.f32 %v3079, %v1317
      %v3166 = vmul.f32 %v3081, %v1322
      %v3167 = vmul.f32 %v3083, %v1327
      %v3168 = vmul.f32 %v3085, %v1332
      %v3169 = vmul.f32 %v3087, %v1337
      %v3170 = vmul.f32 %v3089, %v1342
      %v3171 = vmul.f32 %v3091, %v1347
      %v3172 = vmul.f32 %v3093, %v1352
      %v3173 = vmul.f32 %v3095, %v1357
      %v3174 = vmul.f32 %v3097, %v1362
      %v3175 = vmul.f32 %v3099, %v1367
      %v3176 = vmul.f32 %v3101, %v1372
      %v3177 = vmul.f32 %v3103, %v1377
      %v3178 = vmul.f32 %v3105, %v1382
      %v3179 = vmul.f32 %v3107, %v1387
      %v3180 = vmul.f32 %v3109, %v1392
      %v3181 = vmul.f32 %v3111, %v1397
      %v3182 = vmul.f32 %v3113, %v1402
      %v3183 = vmul.f32 %v3115, %v1407
      %v3184 = vmul.f32 %v3117, %v1412
      %v3185 = vmul.f32 %v3119, %v1417
      %v3186 = vmul.f32 %v3121, %v1422
      %v3187 = vadd.f32 %v2995, %v3155
      %v3188 = vadd.f32 %v2996, %v3156
      %v3189 = vadd.f32 %v2997, %v3157
      %v3190 = vadd.f32 %v2998, %v3158
      %v3191 = vadd.f32 %v2999, %v3159
      %v3192 = vadd.f32 %v3000, %v3160
      %v3193 = vadd.f32 %v3001, %v3161
      %v3194 = vadd.f32 %v3002, %v3162
      %v3195 = vadd.f32 %v3003, %v3163
      %v3196 = vadd.f32 %v3004, %v3164
      %v3197 = vadd.f32 %v3005, %v3165
      %v3198 = vadd.f32 %v3006, %v3166
      %v3199 = vadd.f32 %v3007, %v3167
      %v3200 = vadd.f32 %v3008, %v3168
      %v3201 = vadd.f32 %v3009, %v3169
      %v3202 = vadd.f32 %v3010, %v3170
      %v3203 = vadd.f32 %v3011, %v3171
      %v3204 = vadd.f32 %v3012, %v3172
      %v3205 = vadd.f32 %v3013, %v3173
      %v3206 = vadd.f32 %v3014, %v3174
      %v3207 = vadd.f32 %v3015, %v3175
      %v3208 = vadd.f32 %v3016, %v3176
      %v3209 = vadd.f32 %v3017, %v3177
      %v3210 = vadd.f32 %v3018, %v3178
      %v3211 = vadd.f32 %v3019, %v3179
      %v3212 = vadd.f32 %v3020, %v3180
      %v3213 = vadd.f32 %v3021, %v3181
      %v3214 = vadd.f32 %v3022, %v3182
      %v3215 = vadd.f32 %v3023, %v3183
      %v3216 = vadd.f32 %v3024, %v3184
      %v3217 = vadd.f32 %v3025, %v3185
      %v3218 = vadd.f32 %v3026, %v3186
      %v3251 = vrot.slane %v2869, 1
      %v3252 = vrot.slane %v2872, 1
      %v3253 = vsel %vm1520, %v3251, %v3252
      %v3254 = vrot.slane %v2877, 1
      %v3255 = vsel %vm1520, %v3252, %v3254
      %v3256 = vrot.slane %v2880, 1
      %v3257 = vsel %vm1520, %v3254, %v3256
      %v3258 = vrot.slane %v2885, 1
      %v3259 = vsel %vm1520, %v3256, %v3258
      %v3260 = vrot.slane %v2888, 1
      %v3261 = vsel %vm1520, %v3258, %v3260
      %v3262 = vrot.slane %v2893, 1
      %v3263 = vsel %vm1520, %v3260, %v3262
      %v3264 = vrot.slane %v2896, 1
      %v3265 = vsel %vm1520, %v3262, %v3264
      %v3266 = vrot.slane %v2901, 1
      %v3267 = vsel %vm1520, %v3264, %v3266
      %v3268 = vrot.slane %v2904, 1
      %v3269 = vsel %vm1520, %v3266, %v3268
      %v3270 = vrot.slane %v2909, 1
      %v3271 = vsel %vm1520, %v3268, %v3270
      %v3272 = vrot.slane %v2912, 1
      %v3273 = vsel %vm1520, %v3270, %v3272
      %v3274 = vrot.slane %v2917, 1
      %v3275 = vsel %vm1520, %v3272, %v3274
      %v3276 = vrot.slane %v2920, 1
      %v3277 = vsel %vm1520, %v3274, %v3276
      %v3278 = vrot.slane %v2925, 1
      %v3279 = vsel %vm1520, %v3276, %v3278
      %v3280 = vrot.slane %v2928, 1
      %v3281 = vsel %vm1520, %v3278, %v3280
      %v3282 = vrot.slane %v2933, 1
      %v3283 = vsel %vm1520, %v3280, %v3282
      %v3284 = vrot.slane %v2936, 1
      %v3285 = vsel %vm1520, %v3282, %v3284
      %v3286 = vrot.slane %v2941, 1
      %v3287 = vsel %vm1520, %v3284, %v3286
      %v3288 = vrot.slane %v2944, 1
      %v3289 = vsel %vm1520, %v3286, %v3288
      %v3290 = vrot.slane %v2949, 1
      %v3291 = vsel %vm1520, %v3288, %v3290
      %v3292 = vrot.slane %v2952, 1
      %v3293 = vsel %vm1520, %v3290, %v3292
      %v3294 = vrot.slane %v2957, 1
      %v3295 = vsel %vm1520, %v3292, %v3294
      %v3296 = vrot.slane %v2960, 1
      %v3297 = vsel %vm1520, %v3294, %v3296
      %v3298 = vrot.slane %v2965, 1
      %v3299 = vsel %vm1520, %v3296, %v3298
      %v3300 = vrot.slane %v2968, 1
      %v3301 = vsel %vm1520, %v3298, %v3300
      %v3302 = vrot.slane %v2973, 1
      %v3303 = vsel %vm1520, %v3300, %v3302
      %v3304 = vrot.slane %v2976, 1
      %v3305 = vsel %vm1520, %v3302, %v3304
      %v3306 = vrot.slane %v2981, 1
      %v3307 = vsel %vm1520, %v3304, %v3306
      %v3308 = vrot.slane %v2984, 1
      %v3309 = vsel %vm1520, %v3306, %v3308
      %v3310 = vrot.slane %v2989, 1
      %v3311 = vsel %vm1520, %v3308, %v3310
      %v3312 = vrot.slane %v2992, 1
      %v3313 = vsel %vm1520, %v3310, %v3312
      %v3346 = vsel %vm1520, %v3312, 0.0
      %v3347 = vmul.f32 %v3253, %v1619
      %v3348 = vmul.f32 %v3255, %v1623
      %v3349 = vmul.f32 %v3257, %v1627
      %v3350 = vmul.f32 %v3259, %v1631
      %v3351 = vmul.f32 %v3261, %v1635
      %v3352 = vmul.f32 %v3263, %v1639
      %v3353 = vmul.f32 %v3265, %v1643
      %v3354 = vmul.f32 %v3267, %v1647
      %v3355 = vmul.f32 %v3269, %v1651
      %v3356 = vmul.f32 %v3271, %v1655
      %v3357 = vmul.f32 %v3273, %v1659
      %v3358 = vmul.f32 %v3275, %v1663
      %v3359 = vmul.f32 %v3277, %v1667
      %v3360 = vmul.f32 %v3279, %v1671
      %v3361 = vmul.f32 %v3281, %v1675
      %v3362 = vmul.f32 %v3283, %v1679
      %v3363 = vmul.f32 %v3285, %v1683
      %v3364 = vmul.f32 %v3287, %v1687
      %v3365 = vmul.f32 %v3289, %v1691
      %v3366 = vmul.f32 %v3291, %v1695
      %v3367 = vmul.f32 %v3293, %v1699
      %v3368 = vmul.f32 %v3295, %v1703
      %v3369 = vmul.f32 %v3297, %v1707
      %v3370 = vmul.f32 %v3299, %v1711
      %v3371 = vmul.f32 %v3301, %v1715
      %v3372 = vmul.f32 %v3303, %v1719
      %v3373 = vmul.f32 %v3305, %v1723
      %v3374 = vmul.f32 %v3307, %v1727
      %v3375 = vmul.f32 %v3309, %v1731
      %v3376 = vmul.f32 %v3311, %v1735
      %v3377 = vmul.f32 %v3313, %v1739
      %v3378 = vmul.f32 %v3346, %v1743
      %v3379 = vadd.f32 %v3187, %v3347
      %v3380 = vadd.f32 %v3188, %v3348
      %v3381 = vadd.f32 %v3189, %v3349
      %v3382 = vadd.f32 %v3190, %v3350
      %v3383 = vadd.f32 %v3191, %v3351
      %v3384 = vadd.f32 %v3192, %v3352
      %v3385 = vadd.f32 %v3193, %v3353
      %v3386 = vadd.f32 %v3194, %v3354
      %v3387 = vadd.f32 %v3195, %v3355
      %v3388 = vadd.f32 %v3196, %v3356
      %v3389 = vadd.f32 %v3197, %v3357
      %v3390 = vadd.f32 %v3198, %v3358
      %v3391 = vadd.f32 %v3199, %v3359
      %v3392 = vadd.f32 %v3200, %v3360
      %v3393 = vadd.f32 %v3201, %v3361
      %v3394 = vadd.f32 %v3202, %v3362
      %v3395 = vadd.f32 %v3203, %v3363
      %v3396 = vadd.f32 %v3204, %v3364
      %v3397 = vadd.f32 %v3205, %v3365
      %v3398 = vadd.f32 %v3206, %v3366
      %v3399 = vadd.f32 %v3207, %v3367
      %v3400 = vadd.f32 %v3208, %v3368
      %v3401 = vadd.f32 %v3209, %v3369
      %v3402 = vadd.f32 %v3210, %v3370
      %v3403 = vadd.f32 %v3211, %v3371
      %v3404 = vadd.f32 %v3212, %v3372
      %v3405 = vadd.f32 %v3213, %v3373
      %v3406 = vadd.f32 %v3214, %v3374
      %v3407 = vadd.f32 %v3215, %v3375
      %v3408 = vadd.f32 %v3216, %v3376
      %v3409 = vadd.f32 %v3217, %v3377
      %v3410 = vadd.f32 %v3218, %v3378
      %v3411 = vmax.f32 %v3379, 0.0
      %v3412 = vmax.f32 %v3380, 0.0
      %v3413 = vmax.f32 %v3381, 0.0
      %v3414 = vmax.f32 %v3382, 0.0
      %v3415 = vmax.f32 %v3383, 0.0
      %v3416 = vmax.f32 %v3384, 0.0
      %v3417 = vmax.f32 %v3385, 0.0
      %v3418 = vmax.f32 %v3386, 0.0
      %v3419 = vmax.f32 %v3387, 0.0
      %v3420 = vmax.f32 %v3388, 0.0
      %v3421 = vmax.f32 %v3389, 0.0
      %v3422 = vmax.f32 %v3390, 0.0
      %v3423 = vmax.f32 %v3391, 0.0
      %v3424 = vmax.f32 %v3392, 0.0
      %v3425 = vmax.f32 %v3393, 0.0
      %v3426 = vmax.f32 %v3394, 0.0
      %v3427 = vmax.f32 %v3395, 0.0
      %v3428 = vmax.f32 %v3396, 0.0
      %v3429 = vmax.f32 %v3397, 0.0
      %v3430 = vmax.f32 %v3398, 0.0
      %v3431 = vmax.f32 %v3399, 0.0
      %v3432 = vmax.f32 %v3400, 0.0
      %v3433 = vmax.f32 %v3401, 0.0
      %v3434 = vmax.f32 %v3402, 0.0
      %v3435 = vmax.f32 %v3403, 0.0
      %v3436 = vmax.f32 %v3404, 0.0
      %v3437 = vmax.f32 %v3405, 0.0
      %v3438 = vmax.f32 %v3406, 0.0
      %v3439 = vmax.f32 %v3407, 0.0
      %v3440 = vmax.f32 %v3408, 0.0
      %v3441 = vmax.f32 %v3409, 0.0
      %v3442 = vmax.f32 %v3410, 0.0
      %3443 = vst [vmem:[%s466] sm:$0xff] %v3411
      %3444 = vst [vmem:[%s466 + $0x8] sm:$0xff] %v3412
      %3445 = vst [vmem:[%s466 + $0x10] sm:$0xff] %v3413
      %3446 = vst [vmem:[%s466 + $0x18] sm:$0xff] %v3414
      %3447 = vst [vmem:[%s466 + $0x20] sm:$0xff] %v3415
      %3448 = vst [vmem:[%s466 + $0x28] sm:$0xff] %v3416
      %3449 = vst [vmem:[%s466 + $0x30] sm:$0xff] %v3417
      %3450 = vst [vmem:[%s466 + $0x38] sm:$0xff] %v3418
      %3451 = vst [vmem:[%s466 + $0x40] sm:$0xff] %v3419
      %3452 = vst [vmem:[%s466 + $0x48] sm:$0xff] %v3420
      %3453 = vst [vmem:[%s466 + $0x50] sm:$0xff] %v3421
      %3454 = vst [vmem:[%s466 + $0x58] sm:$0xff] %v3422
      %3455 = vst [vmem:[%s466 + $0x60] sm:$0xff] %v3423
      %3456 = vst [vmem:[%s466 + $0x68] sm:$0xff] %v3424
      %3457 = vst [vmem:[%s466 + $0x70] sm:$0xff] %v3425
      %3458 = vst [vmem:[%s466 + $0x78] sm:$0xff] %v3426
      %3459 = vst [vmem:[%s466 + $0x80] sm:$0xff] %v3427
      %3460 = vst [vmem:[%s466 + $0x88] sm:$0xff] %v3428
      %3461 = vst [vmem:[%s466 + $0x90] sm:$0xff] %v3429
      %3462 = vst [vmem:[%s466 + $0x98] sm:$0xff] %v3430
      %3463 = vst [vmem:[%s466 + $0xa0] sm:$0xff] %v3431
      %3464 = vst [vmem:[%s466 + $0xa8] sm:$0xff] %v3432
      %3465 = vst [vmem:[%s466 + $0xb0] sm:$0xff] %v3433
      %3466 = vst [vmem:[%s466 + $0xb8] sm:$0xff] %v3434
      %3467 = vst [vmem:[%s466 + $0xc0] sm:$0xff] %v3435
      %3468 = vst [vmem:[%s466 + $0xc8] sm:$0xff] %v3436
      %3469 = vst [vmem:[%s466 + $0xd0] sm:$0xff] %v3437
      %3470 = vst [vmem:[%s466 + $0xd8] sm:$0xff] %v3438
      %3471 = vst [vmem:[%s466 + $0xe0] sm:$0xff] %v3439
      %3472 = vst [vmem:[%s466 + $0xe8] sm:$0xff] %v3440
      %3473 = vst [vmem:[%s466 + $0xf0] sm:$0xff] %v3441
      %3474 = vst [vmem:[%s466 + $0xf8] sm:$0xff] %v3442
      %s3475 = smul.u32 32, %s23
      %p3476 = scmp.lt.s32.totalorder %s22, 1
      %s3477 = scalar_select %p3476, %s22, 1
      %p3478 = scmp.lt.s32.totalorder %s3475, 31
      %s3479 = scalar_select %p3478, %s3475, 31
      %p3480 = scmp.lt.s32.totalorder %s24, 0
      %s3481 = scalar_select %p3480, %s24, 0
      %s3482 = sadd.s32 %s3481, %s3479
      %s3483 = smul.addr %s3477, 32
      %s3484 = sadd.s32 %s3482, %s3483
      %s3485 = smul.addr %s3484, 8
      %s3486 = scalar_lea.vmem %s6, %s3485
      // Predicated region
      $region45: #{conv_relu_nchw.1} parent=43 // pred_check
        %p3487 = pneg %p231
      $region46: #{conv_relu_nchw.1} parent=43 // pred_check_branch
        %3489 = sbr.rel (%p3487) target = $region48
      $region47: #{conv_relu_nchw.1} parent=43 // pred_region
        %s3490 = smul.u32 32, %s23
      $region48: #{conv_relu_nchw.1} parent=43 // pred_fallthru
        _
    $region44: #{conv_relu_nchw.1} parent=5 // pred_fallthru
      _
    %p3491 = scmp.le.s32.totalorder 2, %s12
    // Predicated region
    $region49: #{conv_relu_nchw.1} parent=5 // pred_check
      %p3492 = pneg %p3491
    $region50: #{conv_relu_nchw.1} parent=5 // pred_check_branch
      %3494 = sbr.rel (%p3492) target = $region52
    $region51: #{conv_relu_nchw.1} parent=5 // pred_region
      %s3495 = ssub.s32 %s12, 2
      // Predicated region
      $region53: #{conv_relu_nchw.1} parent=51 // pred_check
        %p3496 = pneg %p237
      $region54: #{conv_relu_nchw.1} parent=51 // pred_check_branch
        %3498 = sbr.rel (%p3496) target = $region56
      $region55: #{conv_relu_nchw.1} parent=51 // pred_region
        %s3499 = smul.u32 32, %s26
        %p3500 = scmp.lt.s32.totalorder %s25, 1
        %s3501 = scalar_select %p3500, %s25, 1
        %p3502 = scmp.lt.s32.totalorder %s3499, 31
        %s3503 = scalar_select %p3502, %s3499, 31
        %p3504 = scmp.lt.s32.totalorder %s27, 0
        %s3505 = scalar_select %p3504, %s27, 0
        %s3506 = sadd.s32 %s3505, %s3503
        %s3507 = smul.addr %s3501, 32
        %s3508 = sadd.s32 %s3506, %s3507
        %s3509 = smul.addr %s3508, 8
        %s3510 = scalar_lea.vmem %s6, %s3509
      $region56: #{conv_relu_nchw.1} parent=51 // pred_fallthru
        _
    $region52: #{conv_relu_nchw.1} parent=5 // pred_fallthru
      _
  $region6: #{conv_relu_nchw.1} parent=0 // loop_footer
    %s16 = sadd.s32 1, %s12
  $region7: #{conv_relu_nchw.1} parent=0 // loop_footer_branch
    %11 = sbr.rel target = $region3
  $region8: #{conv_relu_nchw.1} parent=0 // loop_exit
    _

</llo_original>
